<compile_context>
chip_gen: v7x
topology: tpu7x:2x2x1
jax: 0.10.0
libtpu: 0.0.40
codegen_flags: <defaults>
</compile_context>

<pallas_src>
import math
import jax
import jax.numpy as jnp
from jax.experimental import pallas as pl
from jax.experimental.pallas import tpu as pltpu  # noqa: F401  (not needed: no grid/scratch)

# Model dimensions (small ABIDE-style config used in __main__).
B, T, N, NH = 2, 16, 32, 16          # batch, time points, nodes, GSL hidden
F1, F2 = 32, 8                        # DGCN1 / DGCN2 output features
K1, K2 = 30, 10                       # TopK pool sizes
HID = 16                              # MLP hidden
BT = B * T                            # = 32

GSL_ROWS = 40                         # gsl slab:  (40, N*NH)
PRM_ROWS = 152                        # param slab:(152, 128)
MLP_ROWS = 184                        # mlp slab:  (184, K2*HID)
OUT_ROWS = 40                         # out slab:  (40, 128)


# ----------------------------------------------------------------------------
# Fused kernel
# ----------------------------------------------------------------------------
def _crgnn_kernel(x_ref, gsl_ref, sel_ref, prm_ref, mlp_ref, out_ref):
    f32 = jnp.float32
    dn_bt = (((1,), (1,)), ((), ()))            # contract last dims: a @ b.T

    # ---- static parameter slices (packed slabs) ----
    weff = gsl_ref[0:N, :]                       # (32, 512)
    b1 = gsl_ref[N:N + 1, :]                     # (1, 512)
    v2 = gsl_ref[N + 1:N + 2, :]                 # (1, 512)

    adj = prm_ref[0:32, 0:32]                    # (32, 32)
    tri = prm_ref[0:32, 32:64]                   # (32, 32)  tri[i,j] = (i <= j)
    win1b = prm_ref[0:32, 64:128]                # (32, 64)  block-diag Win1
    wout1b = prm_ref[32:64, 0:64]                # (32, 64)  block-diag Wout1
    win2b = prm_ref[64:128, 0:16]                # (64, 16)  block-diag Win2
    wout2b = prm_ref[64:128, 16:32]              # (64, 16)  block-diag Wout2
    mw2 = prm_ref[128:144, 0:2]                  # (16, 2)   MLP layer-2 weight
    ones1 = prm_ref[144:145, 0:B * F1]           # (1, 64)   pool1 scale row
    ones2 = prm_ref[145:146, 0:B * F2]           # (1, 16)   pool2 scale row
    b2row = prm_ref[146:147, 0:32]               # (1, 32)   GSL output bias
    mb1 = prm_ref[147:148, 0:HID]                # (1, 16)   MLP bias 1
    mb2 = prm_ref[148:149, 0:2]                  # (1, 2)    MLP bias 2

    w1p = mlp_ref[0:F2, :]                       # (8, 160)  re-blocked Linear(80,16)
    emask = mlp_ref[8:8 + K2, :]                 # (10, 160) block-diag mask
    ffold = mlp_ref[24:24 + K2 * HID, 0:HID]     # (160, 16) column fold

    x2d = x_ref[...]                             # (B*T, N) rows ordered (b, t)

    # ---- GSL: pred = tanh(X @ Weff + b1) * v2 @ sel + b2 ----
    hsig = jnp.tanh(jnp.dot(x2d, weff, preferred_element_type=f32) + b1)
    pred = jnp.dot(hsig * v2, sel_ref[...], preferred_element_type=f32) + b2row

    # ---- DGCN layer 1 (batch folded into block-diagonal weights) ----
    xcat = x2d.T                                 # (N, B*T) columns ordered (b, t)
    adjt = adj.T
    h1 = 0.5 * (
        jnp.dot(adj, jnp.dot(xcat, win1b, preferred_element_type=f32),
                preferred_element_type=f32)
        + jnp.dot(adjt, jnp.dot(xcat, wout1b, preferred_element_type=f32),
                  preferred_element_type=f32))   # (N, B*32)

    # ---- TopK pool #1 (k = 30) via rank matrix ----
    ii = jax.lax.broadcasted_iota(jnp.int32, (N, N), 0)
    jj = jax.lax.broadcasted_iota(jnp.int32, (N, N), 1)
    ones_1n = jnp.ones((1, N), f32)

    s1_row = jax.lax.dot_general(ones1, h1, dn_bt, preferred_element_type=f32)
    sr1 = jnp.broadcast_to(s1_row, (N, N))       # [i, j] = score[j]
    sc1 = sr1.T                                  # [i, j] = score[i]  (exact copy)
    beats1 = jnp.logical_or(sc1 > sr1, jnp.logical_and(sc1 == sr1, ii < jj))
    rank1 = jnp.dot(ones_1n, beats1.astype(f32), preferred_element_type=f32)
    keep1 = rank1 < float(K1)                    # (1, N) bool
    keep1f = keep1.astype(f32)

    # Masked adjacency == pooled adjacency written back to full node ids.
    km = jnp.broadcast_to(keep1f, (N, N))        # [i, j] = keep[j]
    msym = km * km.T                             # keep[i] * keep[j]
    adj_m = adj * msym
    adj_mt = adjt * msym

    # ---- DGCN layer 2 (dropped nodes produce exactly-zero rows) ----
    h2 = 0.5 * (
        jnp.dot(adj_m, jnp.dot(h1, win2b, preferred_element_type=f32),
                preferred_element_type=f32)
        + jnp.dot(adj_mt, jnp.dot(h1, wout2b, preferred_element_type=f32),
                  preferred_element_type=f32))   # (N, B*8)

    # ---- TopK pool #2 (k = 10); dropped pool-1 nodes score -inf ----
    s2_raw = jax.lax.dot_general(ones2, h2, dn_bt, preferred_element_type=f32)
    s2_row = jnp.where(keep1, s2_raw, -1e30)
    sr2 = jnp.broadcast_to(s2_row, (N, N))
    sc2 = sr2.T
    beats2 = jnp.logical_or(sc2 > sr2, jnp.logical_and(sc2 == sr2, ii < jj))
    rank2 = jnp.dot(ones_1n, beats2.astype(f32), preferred_element_type=f32)
    keep2 = rank2 < float(K2)
    keep2f = keep2.astype(f32)

    pos1 = jnp.dot(keep1f, tri, preferred_element_type=f32) - 1.0   # pooled pos of node
    pos2 = jnp.dot(keep2f, tri, preferred_element_type=f32) - 1.0   # rank among kept2

    r_io = jax.lax.broadcasted_iota(jnp.int32, (K2, N), 0).astype(f32)
    sel2 = jnp.where(jnp.logical_and(r_io == jnp.broadcast_to(pos2, (K2, N)),
                                     jnp.broadcast_to(keep2, (K2, N))),
                     1.0, 0.0)                                       # (10, 32) one-hot
    idx2 = jax.lax.dot_general(pos1, sel2, dn_bt, preferred_element_type=f32)  # (1, 10)

    # ---- gather top-10 rows + MLP(80 -> 16 -> 2) + softmax ----
    h2r = jnp.dot(sel2, h2, preferred_element_type=f32)              # (10, B*8)
    ones_1k = jnp.ones((1, K2), f32)

    # lane-dense output slab (40, 128): full-width stores only
    out_ref[0:BT, :] = jnp.concatenate(
        [pred, jnp.zeros((BT, 128 - N), f32)], axis=1)
    out_ref[BT:BT + 1, :] = jnp.concatenate(
        [keep1f, idx2, jnp.zeros((1, 128 - N - K2), f32)], axis=1)

    for b in range(B):                                               # B = 2, unrolled
        h2b = h2r[:, b * F2:(b + 1) * F2]                            # (10, 8)
        g = jnp.dot(h2b, w1p, preferred_element_type=f32)            # (10, 160)
        v = jnp.dot(ones_1k, g * emask, preferred_element_type=f32)  # (1, 160)
        hid = jnp.maximum(jnp.dot(v, ffold, preferred_element_type=f32) + mb1, 0.0)
        lg = jnp.dot(hid, mw2, preferred_element_type=f32) + mb2     # (1, 2)
        mx = jnp.max(lg, axis=-1, keepdims=True)
        ex = jnp.exp(lg - mx)
        pr = ex / jnp.sum(ex, axis=-1, keepdims=True)                # (1, 2)
        out_ref[BT + 1 + b:BT + 2 + b, :] = jnp.concatenate(
            [pr, jnp.zeros((1, 126), f32)], axis=1)

    out_ref[BT + 1 + B:OUT_ROWS, :] = jnp.zeros((OUT_ROWS - BT - 1 - B, 128), f32)


# ----------------------------------------------------------------------------
# Host-side parameter folding / packing (one-time)
# ----------------------------------------------------------------------------
def build_gsl_params(W1, b1, W2, b2, adj, neurons):
    """Fold the Linear3D permutation/adjacency structure into dense weights."""
    Nn, Nm1, nh = W1.shape
    c_idx = jnp.arange(Nn)[:, None]
    j_idx = jnp.arange(Nn)[None, :]
    src = jnp.where(j_idx > c_idx, j_idx - 1, j_idx)
    src = jnp.clip(src, 0, Nm1 - 1)
    src = jnp.broadcast_to(src[:, :, None], (Nn, Nn, nh))
    W1full = jnp.take_along_axis(W1, src, axis=1)                    # (N, N, NH)
    W1full = jnp.where((j_idx == c_idx)[:, :, None], 0.0, W1full)
    weff = adj.T[:, :, None] * W1full                                # [c, j, h]
    weff2 = jnp.transpose(weff, (1, 0, 2)).reshape(Nn, Nn * nh)      # [j, c*NH+h]
    b1flat = b1.reshape(1, Nn * nh)
    v2flat = (neurons.T * W2[:, :, 0]).reshape(1, Nn * nh)
    selm = jnp.zeros((Nn * nh, Nn), jnp.float32)
    selm = selm.at[jnp.arange(Nn * nh), jnp.arange(Nn * nh) // nh].set(1.0)
    b2row = b2[:, 0].reshape(1, Nn)
    return weff2, b1flat, v2flat, selm, b2row


def block_diag(w, nb):
    k, o = w.shape
    out = jnp.zeros((nb * k, nb * o), jnp.float32)
    for b in range(nb):
        out = out.at[b * k:(b + 1) * k, b * o:(b + 1) * o].set(w)
    return out


def build_packed_params(W1, b1, W2, b2, adj, neurons, win1, wout1, win2, wout2,
                        mlp_w1, mlp_b1, mlp_w2, mlp_b2, pool1_w, pool2_w):
    f32 = jnp.float32
    weff2, b1flat, v2flat, selm, b2row = build_gsl_params(W1, b1, W2, b2, adj, neurons)

    gsl_big = jnp.zeros((GSL_ROWS, N * NH), f32)
    gsl_big = gsl_big.at[0:N, :].set(weff2)
    gsl_big = gsl_big.at[N, :].set(b1flat[0])
    gsl_big = gsl_big.at[N + 1, :].set(v2flat[0])

    tri = (jnp.arange(N)[:, None] <= jnp.arange(N)[None, :]).astype(f32)
    scale1 = (pool1_w / jnp.sqrt(pool1_w * pool1_w)).astype(f32)
    scale2 = (pool2_w / jnp.sqrt(pool2_w * pool2_w)).astype(f32)

    prm = jnp.zeros((PRM_ROWS, 128), f32)
    prm = prm.at[0:32, 0:32].set(adj)
    prm = prm.at[0:32, 32:64].set(tri)
    prm = prm.at[0:32, 64:128].set(block_diag(win1, B))
    prm = prm.at[32:64, 0:64].set(block_diag(wout1, B))
    prm = prm.at[64:128, 0:16].set(block_diag(win2, B))
    prm = prm.at[64:128, 16:32].set(block_diag(wout2, B))
    prm = prm.at[128:144, 0:2].set(mlp_w2)
    prm = prm.at[144, 0:B * F1].set(jnp.full((B * F1,), scale1, f32))
    prm = prm.at[145, 0:B * F2].set(jnp.full((B * F2,), scale2, f32))
    prm = prm.at[146, 0:32].set(b2row[0])
    prm = prm.at[147, 0:HID].set(mlp_b1.reshape(-1))
    prm = prm.at[148, 0:2].set(mlp_b2.reshape(-1))

    # Re-block Linear(80,16) so the (K2, F2) -> (K2*F2,) flatten is matmuls.
    w1p = jnp.transpose(mlp_w1.reshape(K2, F2, HID), (1, 0, 2)).reshape(F2, K2 * HID)
    cols = jnp.arange(K2 * HID)
    emask = (cols[None, :] // HID == jnp.arange(K2)[:, None]).astype(f32)
    ffold = (cols[:, None] % HID == jnp.arange(HID)[None, :]).astype(f32)
    mlps = jnp.zeros((MLP_ROWS, K2 * HID), f32)
    mlps = mlps.at[0:F2, :].set(w1p)
    mlps = mlps.at[8:8 + K2, :].set(emask)
    mlps = mlps.at[24:24 + K2 * HID, 0:HID].set(ffold)

    return gsl_big, selm, prm, mlps, adj


# ----------------------------------------------------------------------------
# Forward wrapper (one pallas_call + tiny epilogue)
# ----------------------------------------------------------------------------
def crgnn_forward(time_input, packed):
    gsl_big, selm, prm, mlps, adj = packed
    x2d = time_input.reshape(BT, N)

    slab = pl.pallas_call(
        _crgnn_kernel,
        out_shape=jax.ShapeDtypeStruct((OUT_ROWS, 128), jnp.float32),
    )(x2d, gsl_big, selm, prm, mlps)

    predictions = slab[0:BT, 0:N].reshape(B, T, N)
    keep1 = slab[BT, 0:N] > 0.5
    idx2 = jnp.round(slab[BT, N:N + K2]).astype(jnp.int32)
    out = slab[BT + 1:BT + 1 + B, 0:2]
    # TODO(synk): materializing the sorted index list from the in-kernel kept
    # mask (tiny 32-element sort) stays in plain JAX.
    idx1 = jnp.sort(jnp.where(keep1, jnp.arange(N), N))[:K1].astype(jnp.int32)

    reg_matrix = jnp.ones((N, N), jnp.float32)              # 1 - zeros(N, N)
    graphs = jnp.broadcast_to(adj * reg_matrix, (B, N, N))  # output only
    return predictions, graphs, out, idx1, idx2


# ----------------------------------------------------------------------------
# Deterministic synthetic parameters + example run
# ----------------------------------------------------------------------------
if __name__ == "__main__":
    key = jax.random.PRNGKey(0)
    ks = jax.random.split(key, 16)

    # CustomizedRelaModule / Linear3D params
    stdv1 = 1.0 / math.sqrt(N - 1)
    W1 = jax.random.uniform(ks[0], (N, N - 1, NH), minval=-stdv1, maxval=stdv1)
    b1 = jax.random.uniform(ks[1], (N, NH), minval=-stdv1, maxval=stdv1)
    stdv2 = 1.0 / math.sqrt(NH)
    W2 = jax.random.uniform(ks[2], (N, NH, 1), minval=-stdv2, maxval=stdv2)
    b2 = jax.random.uniform(ks[3], (N, 1), minval=-stdv2, maxval=stdv2)
    adj = jax.random.normal(ks[4], (N, N), jnp.float32)
    neurons = jax.random.normal(ks[5], (NH, N), jnp.float32)

    # DirectedGraphConvolution params (deterministic init)
    win1 = 0.1 * jax.random.normal(ks[6], (T, F1), jnp.float32)
    wout1 = 0.1 * jax.random.normal(ks[7], (T, F1), jnp.float32)
    win2 = 0.1 * jax.random.normal(ks[8], (F1, F2), jnp.float32)
    wout2 = 0.1 * jax.random.normal(ks[9], (F1, F2), jnp.float32)

    # MLP params (Linear(80,16) -> ReLU -> Linear(16,2)), x @ W convention.
    s1m = 1.0 / math.sqrt(K2 * F2)
    mlp_w1 = jax.random.uniform(ks[10], (K2 * F2, HID), minval=-s1m, maxval=s1m)
    mlp_b1 = jax.random.uniform(ks[11], (1, HID), minval=-s1m, maxval=s1m)
    s2m = 1.0 / math.sqrt(HID)
    mlp_w2 = jax.random.uniform(ks[12], (HID, 2), minval=-s2m, maxval=s2m)
    mlp_b2 = jax.random.uniform(ks[13], (1, 2), minval=-s2m, maxval=s2m)

    # TopKPool weights (reference init: float(num_feature) = 32.0)
    pool1_w = jnp.asarray(32.0, jnp.float32)
    pool2_w = jnp.asarray(32.0, jnp.float32)

    packed = build_packed_params(W1, b1, W2, b2, adj, neurons,
                                 win1, wout1, win2, wout2,
                                 mlp_w1, mlp_b1, mlp_w2, mlp_b2,
                                 pool1_w, pool2_w)

    time_input = jax.random.normal(ks[14], (B, T, N), jnp.float32)

    fwd = jax.jit(crgnn_forward)
    preds, graphs, out, i1, i2 = fwd(time_input, packed)
    jax.block_until_ready((preds, graphs, out, i1, i2))

    assert preds.shape == (B, T, N)
    assert graphs.shape == (B, N, N)
    assert out.shape == (B, 2)
    assert i1.shape == (K1,) and i2.shape == (K2,)
    assert bool(jnp.all(jnp.abs(jnp.sum(out, axis=-1) - 1.0) < 1e-4))
    assert bool(jnp.all((i2 >= 0) & (i2 < K1)))
    print("KERNEL_OK")
</pallas_src>

<mosaic_0001>
module attributes {stable_mosaic.version = 11 : i64} {
  func.func @_crgnn_kernel(%arg0: memref<32x32xf32, #tpu.memory_space<vmem>>, %arg1: memref<40x512xf32, #tpu.memory_space<vmem>>, %arg2: memref<512x32xf32, #tpu.memory_space<vmem>>, %arg3: memref<152x128xf32, #tpu.memory_space<vmem>>, %arg4: memref<184x160xf32, #tpu.memory_space<vmem>>, %arg5: memref<40x128xf32, #tpu.memory_space<vmem>>) attributes {dimension_semantics = [], scalar_prefetch = 0 : i64, scratch_operands = 0 : i64, tpu.core_type = #tpu.core_type<tc>} {
    %c0 = arith.constant 0 : index
    %c0_0 = arith.constant 0 : index
    %0 = vector.load %arg1[%c0, %c0_0] : memref<40x512xf32, #tpu.memory_space<vmem>>, vector<32x512xf32>
    %c32 = arith.constant 32 : index
    %c0_1 = arith.constant 0 : index
    %1 = vector.load %arg1[%c32, %c0_1] : memref<40x512xf32, #tpu.memory_space<vmem>>, vector<1x512xf32>
    %c33 = arith.constant 33 : index
    %c0_2 = arith.constant 0 : index
    %2 = vector.load %arg1[%c33, %c0_2] : memref<40x512xf32, #tpu.memory_space<vmem>>, vector<1x512xf32>
    %c0_3 = arith.constant 0 : index
    %c0_4 = arith.constant 0 : index
    %3 = vector.load %arg3[%c0_3, %c0_4] : memref<152x128xf32, #tpu.memory_space<vmem>>, vector<32x32xf32>
    %c0_5 = arith.constant 0 : index
    %c32_6 = arith.constant 32 : index
    %4 = vector.load %arg3[%c0_5, %c32_6] : memref<152x128xf32, #tpu.memory_space<vmem>>, vector<32x32xf32>
    %c0_7 = arith.constant 0 : index
    %c64 = arith.constant 64 : index
    %5 = vector.load %arg3[%c0_7, %c64] : memref<152x128xf32, #tpu.memory_space<vmem>>, vector<32x64xf32>
    %c32_8 = arith.constant 32 : index
    %c0_9 = arith.constant 0 : index
    %6 = vector.load %arg3[%c32_8, %c0_9] : memref<152x128xf32, #tpu.memory_space<vmem>>, vector<32x64xf32>
    %c64_10 = arith.constant 64 : index
    %c0_11 = arith.constant 0 : index
    %7 = vector.load %arg3[%c64_10, %c0_11] : memref<152x128xf32, #tpu.memory_space<vmem>>, vector<64x16xf32>
    %c64_12 = arith.constant 64 : index
    %c16 = arith.constant 16 : index
    %8 = vector.load %arg3[%c64_12, %c16] : memref<152x128xf32, #tpu.memory_space<vmem>>, vector<64x16xf32>
    %c128 = arith.constant 128 : index
    %c0_13 = arith.constant 0 : index
    %9 = vector.load %arg3[%c128, %c0_13] : memref<152x128xf32, #tpu.memory_space<vmem>>, vector<16x2xf32>
    %c144 = arith.constant 144 : index
    %c0_14 = arith.constant 0 : index
    %10 = vector.load %arg3[%c144, %c0_14] : memref<152x128xf32, #tpu.memory_space<vmem>>, vector<1x64xf32>
    %c145 = arith.constant 145 : index
    %c0_15 = arith.constant 0 : index
    %11 = vector.load %arg3[%c145, %c0_15] : memref<152x128xf32, #tpu.memory_space<vmem>>, vector<1x16xf32>
    %c146 = arith.constant 146 : index
    %c0_16 = arith.constant 0 : index
    %12 = vector.load %arg3[%c146, %c0_16] : memref<152x128xf32, #tpu.memory_space<vmem>>, vector<1x32xf32>
    %c147 = arith.constant 147 : index
    %c0_17 = arith.constant 0 : index
    %13 = vector.load %arg3[%c147, %c0_17] : memref<152x128xf32, #tpu.memory_space<vmem>>, vector<1x16xf32>
    %c148 = arith.constant 148 : index
    %c0_18 = arith.constant 0 : index
    %14 = vector.load %arg3[%c148, %c0_18] : memref<152x128xf32, #tpu.memory_space<vmem>>, vector<1x2xf32>
    %c0_19 = arith.constant 0 : index
    %c0_20 = arith.constant 0 : index
    %15 = vector.load %arg4[%c0_19, %c0_20] : memref<184x160xf32, #tpu.memory_space<vmem>>, vector<8x160xf32>
    %c8 = arith.constant 8 : index
    %c0_21 = arith.constant 0 : index
    %16 = vector.load %arg4[%c8, %c0_21] : memref<184x160xf32, #tpu.memory_space<vmem>>, vector<10x160xf32>
    %c24 = arith.constant 24 : index
    %c0_22 = arith.constant 0 : index
    %17 = vector.load %arg4[%c24, %c0_22] : memref<184x160xf32, #tpu.memory_space<vmem>>, vector<160x16xf32>
    %c0_23 = arith.constant 0 : index
    %c0_24 = arith.constant 0 : index
    %18 = vector.load %arg0[%c0_23, %c0_24] : memref<32x32xf32, #tpu.memory_space<vmem>>, vector<32x32xf32>
    %cst = arith.constant dense<0.000000e+00> : vector<32x512xf32>
    %19 = tpu.matmul %18, %0, %cst {dimension_numbers = #tpu.dot_dimension_numbers<[1], [0], [0], [1], [0, 0, 1, 1], [], []>} : vector<32x32xf32>, vector<32x512xf32>, vector<32x512xf32> -> vector<32x512xf32>
    %20 = vector.broadcast %1 : vector<1x512xf32> to vector<32x512xf32>
    %21 = arith.addf %19, %20 : vector<32x512xf32>
    %22 = math.tanh %21 : vector<32x512xf32>
    %23 = vector.broadcast %2 : vector<1x512xf32> to vector<32x512xf32>
    %24 = arith.mulf %22, %23 : vector<32x512xf32>
    %c0_25 = arith.constant 0 : index
    %c0_26 = arith.constant 0 : index
    %25 = vector.load %arg2[%c0_25, %c0_26] : memref<512x32xf32, #tpu.memory_space<vmem>>, vector<512x32xf32>
    %cst_27 = arith.constant dense<0.000000e+00> : vector<32x32xf32>
    %26 = tpu.matmul %24, %25, %cst_27 {dimension_numbers = #tpu.dot_dimension_numbers<[1], [0], [0], [1], [0, 0, 1, 1], [], []>} : vector<32x512xf32>, vector<512x32xf32>, vector<32x32xf32> -> vector<32x32xf32>
    %27 = vector.broadcast %12 : vector<1x32xf32> to vector<32x32xf32>
    %28 = arith.addf %26, %27 : vector<32x32xf32>
    %29 = tpu.transpose %18, [1, 0] : vector<32x32xf32> -> vector<32x32xf32>
    %30 = tpu.transpose %3, [1, 0] : vector<32x32xf32> -> vector<32x32xf32>
    %cst_28 = arith.constant dense<0.000000e+00> : vector<32x64xf32>
    %31 = tpu.matmul %29, %5, %cst_28 {dimension_numbers = #tpu.dot_dimension_numbers<[1], [0], [0], [1], [0, 0, 1, 1], [], []>} : vector<32x32xf32>, vector<32x64xf32>, vector<32x64xf32> -> vector<32x64xf32>
    %cst_29 = arith.constant dense<0.000000e+00> : vector<32x64xf32>
    %32 = tpu.matmul %3, %31, %cst_29 {dimension_numbers = #tpu.dot_dimension_numbers<[1], [0], [0], [1], [0, 0, 1, 1], [], []>} : vector<32x32xf32>, vector<32x64xf32>, vector<32x64xf32> -> vector<32x64xf32>
    %cst_30 = arith.constant dense<0.000000e+00> : vector<32x64xf32>
    %33 = tpu.matmul %29, %6, %cst_30 {dimension_numbers = #tpu.dot_dimension_numbers<[1], [0], [0], [1], [0, 0, 1, 1], [], []>} : vector<32x32xf32>, vector<32x64xf32>, vector<32x64xf32> -> vector<32x64xf32>
    %cst_31 = arith.constant dense<0.000000e+00> : vector<32x64xf32>
    %34 = tpu.matmul %30, %33, %cst_31 {dimension_numbers = #tpu.dot_dimension_numbers<[1], [0], [0], [1], [0, 0, 1, 1], [], []>} : vector<32x32xf32>, vector<32x64xf32>, vector<32x64xf32> -> vector<32x64xf32>
    %35 = arith.addf %32, %34 : vector<32x64xf32>
    %cst_32 = arith.constant 5.000000e-01 : f32
    %36 = vector.broadcast %cst_32 : f32 to vector<32x64xf32>
    %37 = arith.mulf %36, %35 : vector<32x64xf32>
    %38 = tpu.iota {dimensions = array<i32: 0>} : vector<32x32xi32>
    %39 = tpu.iota {dimensions = array<i32: 1>} : vector<32x32xi32>
    %cst_33 = arith.constant 1.000000e+00 : f32
    %40 = vector.broadcast %cst_33 : f32 to vector<1x32xf32>
    %cst_34 = arith.constant dense<0.000000e+00> : vector<1x32xf32>
    %41 = tpu.matmul %10, %37, %cst_34 {dimension_numbers = #tpu.dot_dimension_numbers<[1], [1], [0], [0], [0, 0, 1, 0], [], []>} : vector<1x64xf32>, vector<32x64xf32>, vector<1x32xf32> -> vector<1x32xf32>
    %42 = vector.shape_cast %41 : vector<1x32xf32> to vector<1x32xf32>
    %43 = vector.broadcast %42 : vector<1x32xf32> to vector<32x32xf32>
    %44 = tpu.transpose %43, [1, 0] : vector<32x32xf32> -> vector<32x32xf32>
    %45 = arith.cmpf ogt, %44, %43 : vector<32x32xf32>
    %46 = arith.cmpf oeq, %44, %43 : vector<32x32xf32>
    %47 = arith.cmpi slt, %38, %39 : vector<32x32xi32>
    %48 = arith.andi %46, %47 : vector<32x32xi1>
    %49 = arith.ori %45, %48 : vector<32x32xi1>
    %50 = arith.extui %49 : vector<32x32xi1> to vector<32x32xi32>
    %51 = arith.sitofp %50 : vector<32x32xi32> to vector<32x32xf32>
    %cst_35 = arith.constant dense<0.000000e+00> : vector<1x32xf32>
    %52 = tpu.matmul %40, %51, %cst_35 {dimension_numbers = #tpu.dot_dimension_numbers<[1], [0], [0], [1], [0, 0, 1, 1], [], []>} : vector<1x32xf32>, vector<32x32xf32>, vector<1x32xf32> -> vector<1x32xf32>
    %cst_36 = arith.constant 3.000000e+01 : f32
    %53 = vector.broadcast %cst_36 : f32 to vector<1x32xf32>
    %54 = arith.cmpf olt, %52, %53 : vector<1x32xf32>
    %55 = arith.extui %54 : vector<1x32xi1> to vector<1x32xi32>
    %56 = arith.sitofp %55 : vector<1x32xi32> to vector<1x32xf32>
    %57 = vector.shape_cast %56 : vector<1x32xf32> to vector<1x32xf32>
    %58 = vector.broadcast %57 : vector<1x32xf32> to vector<32x32xf32>
    %59 = tpu.transpose %58, [1, 0] : vector<32x32xf32> -> vector<32x32xf32>
    %60 = arith.mulf %58, %59 : vector<32x32xf32>
    %61 = arith.mulf %3, %60 : vector<32x32xf32>
    %62 = arith.mulf %30, %60 : vector<32x32xf32>
    %cst_37 = arith.constant dense<0.000000e+00> : vector<32x16xf32>
    %63 = tpu.matmul %37, %7, %cst_37 {dimension_numbers = #tpu.dot_dimension_numbers<[1], [0], [0], [1], [0, 0, 1, 1], [], []>} : vector<32x64xf32>, vector<64x16xf32>, vector<32x16xf32> -> vector<32x16xf32>
    %cst_38 = arith.constant dense<0.000000e+00> : vector<32x16xf32>
    %64 = tpu.matmul %61, %63, %cst_38 {dimension_numbers = #tpu.dot_dimension_numbers<[1], [0], [0], [1], [0, 0, 1, 1], [], []>} : vector<32x32xf32>, vector<32x16xf32>, vector<32x16xf32> -> vector<32x16xf32>
    %cst_39 = arith.constant dense<0.000000e+00> : vector<32x16xf32>
    %65 = tpu.matmul %37, %8, %cst_39 {dimension_numbers = #tpu.dot_dimension_numbers<[1], [0], [0], [1], [0, 0, 1, 1], [], []>} : vector<32x64xf32>, vector<64x16xf32>, vector<32x16xf32> -> vector<32x16xf32>
    %cst_40 = arith.constant dense<0.000000e+00> : vector<32x16xf32>
    %66 = tpu.matmul %62, %65, %cst_40 {dimension_numbers = #tpu.dot_dimension_numbers<[1], [0], [0], [1], [0, 0, 1, 1], [], []>} : vector<32x32xf32>, vector<32x16xf32>, vector<32x16xf32> -> vector<32x16xf32>
    %67 = arith.addf %64, %66 : vector<32x16xf32>
    %cst_41 = arith.constant 5.000000e-01 : f32
    %68 = vector.broadcast %cst_41 : f32 to vector<32x16xf32>
    %69 = arith.mulf %68, %67 : vector<32x16xf32>
    %cst_42 = arith.constant dense<0.000000e+00> : vector<1x32xf32>
    %70 = tpu.matmul %11, %69, %cst_42 {dimension_numbers = #tpu.dot_dimension_numbers<[1], [1], [0], [0], [0, 0, 1, 0], [], []>} : vector<1x16xf32>, vector<32x16xf32>, vector<1x32xf32> -> vector<1x32xf32>
    %cst_43 = arith.constant -1.000000e+30 : f32
    %71 = vector.broadcast %cst_43 : f32 to vector<1x32xf32>
    %72 = arith.select %54, %70, %71 : vector<1x32xi1>, vector<1x32xf32>
    %73 = vector.shape_cast %72 : vector<1x32xf32> to vector<1x32xf32>
    %74 = vector.broadcast %73 : vector<1x32xf32> to vector<32x32xf32>
    %75 = tpu.transpose %74, [1, 0] : vector<32x32xf32> -> vector<32x32xf32>
    %76 = arith.cmpf ogt, %75, %74 : vector<32x32xf32>
    %77 = arith.cmpf oeq, %75, %74 : vector<32x32xf32>
    %78 = arith.cmpi slt, %38, %39 : vector<32x32xi32>
    %79 = arith.andi %77, %78 : vector<32x32xi1>
    %80 = arith.ori %76, %79 : vector<32x32xi1>
    %81 = arith.extui %80 : vector<32x32xi1> to vector<32x32xi32>
    %82 = arith.sitofp %81 : vector<32x32xi32> to vector<32x32xf32>
    %cst_44 = arith.constant dense<0.000000e+00> : vector<1x32xf32>
    %83 = tpu.matmul %40, %82, %cst_44 {dimension_numbers = #tpu.dot_dimension_numbers<[1], [0], [0], [1], [0, 0, 1, 1], [], []>} : vector<1x32xf32>, vector<32x32xf32>, vector<1x32xf32> -> vector<1x32xf32>
    %cst_45 = arith.constant 1.000000e+01 : f32
    %84 = vector.broadcast %cst_45 : f32 to vector<1x32xf32>
    %85 = arith.cmpf olt, %83, %84 : vector<1x32xf32>
    %86 = arith.extui %85 : vector<1x32xi1> to vector<1x32xi32>
    %87 = arith.sitofp %86 : vector<1x32xi32> to vector<1x32xf32>
    %cst_46 = arith.constant dense<0.000000e+00> : vector<1x32xf32>
    %88 = tpu.matmul %56, %4, %cst_46 {dimension_numbers = #tpu.dot_dimension_numbers<[1], [0], [0], [1], [0, 0, 1, 1], [], []>} : vector<1x32xf32>, vector<32x32xf32>, vector<1x32xf32> -> vector<1x32xf32>
    %cst_47 = arith.constant 1.000000e+00 : f32
    %89 = vector.broadcast %cst_47 : f32 to vector<1x32xf32>
    %90 = arith.subf %88, %89 : vector<1x32xf32>
    %cst_48 = arith.constant dense<0.000000e+00> : vector<1x32xf32>
    %91 = tpu.matmul %87, %4, %cst_48 {dimension_numbers = #tpu.dot_dimension_numbers<[1], [0], [0], [1], [0, 0, 1, 1], [], []>} : vector<1x32xf32>, vector<32x32xf32>, vector<1x32xf32> -> vector<1x32xf32>
    %cst_49 = arith.constant 1.000000e+00 : f32
    %92 = vector.broadcast %cst_49 : f32 to vector<1x32xf32>
    %93 = arith.subf %91, %92 : vector<1x32xf32>
    %94 = tpu.iota {dimensions = array<i32: 0>} : vector<10x32xi32>
    %95 = arith.sitofp %94 : vector<10x32xi32> to vector<10x32xf32>
    %96 = vector.shape_cast %93 : vector<1x32xf32> to vector<1x32xf32>
    %97 = vector.broadcast %96 : vector<1x32xf32> to vector<10x32xf32>
    %98 = arith.cmpf oeq, %95, %97 : vector<10x32xf32>
    %99 = vector.shape_cast %85 : vector<1x32xi1> to vector<1x32xi1>
    %100 = vector.broadcast %99 : vector<1x32xi1> to vector<10x32xi1>
    %101 = arith.andi %98, %100 : vector<10x32xi1>
    %cst_50 = arith.constant 1.000000e+00 : f32
    %cst_51 = arith.constant 0.000000e+00 : f32
    %102 = vector.broadcast %cst_50 : f32 to vector<10x32xf32>
    %103 = vector.broadcast %cst_51 : f32 to vector<10x32xf32>
    %104 = arith.select %101, %102, %103 : vector<10x32xi1>, vector<10x32xf32>
    %cst_52 = arith.constant dense<0.000000e+00> : vector<1x10xf32>
    %105 = tpu.matmul %90, %104, %cst_52 {dimension_numbers = #tpu.dot_dimension_numbers<[1], [1], [0], [0], [0, 0, 1, 0], [], []>} : vector<1x32xf32>, vector<10x32xf32>, vector<1x10xf32> -> vector<1x10xf32>
    %cst_53 = arith.constant dense<0.000000e+00> : vector<10x16xf32>
    %106 = tpu.matmul %104, %69, %cst_53 {dimension_numbers = #tpu.dot_dimension_numbers<[1], [0], [0], [1], [0, 0, 1, 1], [], []>} : vector<10x32xf32>, vector<32x16xf32>, vector<10x16xf32> -> vector<10x16xf32>
    %cst_54 = arith.constant 1.000000e+00 : f32
    %107 = vector.broadcast %cst_54 : f32 to vector<1x10xf32>
    %cst_55 = arith.constant 0.000000e+00 : f32
    %108 = vector.broadcast %cst_55 : f32 to vector<32x96xf32>
    %109 = tpu.concatenate %28, %108 in 1 : vector<32x32xf32>, vector<32x96xf32> -> vector<32x128xf32>
    %c0_56 = arith.constant 0 : index
    %c0_57 = arith.constant 0 : index
    %110 = vector.load %arg5[%c0_56, %c0_57] : memref<40x128xf32, #tpu.memory_space<vmem>>, vector<32x128xf32>
    tpu.vector_store %arg5[%c0_56, %c0_57], %109 {strides = array<i32>} : memref<40x128xf32, #tpu.memory_space<vmem>>, vector<32x128xf32>,
    %cst_58 = arith.constant 0.000000e+00 : f32
    %111 = vector.broadcast %cst_58 : f32 to vector<1x86xf32>
    %112 = tpu.concatenate %56, %105, %111 in 1 : vector<1x32xf32>, vector<1x10xf32>, vector<1x86xf32> -> vector<1x128xf32>
    %c32_59 = arith.constant 32 : index
    %c0_60 = arith.constant 0 : index
    %113 = vector.load %arg5[%c32_59, %c0_60] : memref<40x128xf32, #tpu.memory_space<vmem>>, vector<1x128xf32>
    tpu.vector_store %arg5[%c32_59, %c0_60], %112 {strides = array<i32>} : memref<40x128xf32, #tpu.memory_space<vmem>>, vector<1x128xf32>,
    %114 = vector.extract_strided_slice %106 {offsets = [0, 0], sizes = [10, 8], strides = [1, 1]} : vector<10x16xf32> to vector<10x8xf32>
    %cst_61 = arith.constant dense<0.000000e+00> : vector<10x160xf32>
    %115 = tpu.matmul %114, %15, %cst_61 {dimension_numbers = #tpu.dot_dimension_numbers<[1], [0], [0], [1], [0, 0, 1, 1], [], []>} : vector<10x8xf32>, vector<8x160xf32>, vector<10x160xf32> -> vector<10x160xf32>
    %116 = arith.mulf %115, %16 : vector<10x160xf32>
    %cst_62 = arith.constant dense<0.000000e+00> : vector<1x160xf32>
    %117 = tpu.matmul %107, %116, %cst_62 {dimension_numbers = #tpu.dot_dimension_numbers<[1], [0], [0], [1], [0, 0, 1, 1], [], []>} : vector<1x10xf32>, vector<10x160xf32>, vector<1x160xf32> -> vector<1x160xf32>
    %cst_63 = arith.constant dense<0.000000e+00> : vector<1x16xf32>
    %118 = tpu.matmul %117, %17, %cst_63 {dimension_numbers = #tpu.dot_dimension_numbers<[1], [0], [0], [1], [0, 0, 1, 1], [], []>} : vector<1x160xf32>, vector<160x16xf32>, vector<1x16xf32> -> vector<1x16xf32>
    %119 = arith.addf %118, %13 : vector<1x16xf32>
    %cst_64 = arith.constant 0.000000e+00 : f32
    %120 = vector.broadcast %cst_64 : f32 to vector<1x16xf32>
    %121 = arith.maximumf %119, %120 : vector<1x16xf32>
    %cst_65 = arith.constant dense<0.000000e+00> : vector<1x2xf32>
    %122 = tpu.matmul %121, %9, %cst_65 {dimension_numbers = #tpu.dot_dimension_numbers<[1], [0], [0], [1], [0, 0, 1, 1], [], []>} : vector<1x16xf32>, vector<16x2xf32>, vector<1x2xf32> -> vector<1x2xf32>
    %123 = arith.addf %122, %14 : vector<1x2xf32>
    %cst_66 = arith.constant dense<0xFF800000> : vector<1xf32>
    %124 = vector.multi_reduction <maximumf>, %123, %cst_66 [1] : vector<1x2xf32> to vector<1xf32>
    %125 = vector.shape_cast %124 : vector<1xf32> to vector<1x1xf32>
    %126 = vector.broadcast %125 : vector<1x1xf32> to vector<1x2xf32>
    %127 = arith.subf %123, %126 : vector<1x2xf32>
    %128 = math.exp %127 : vector<1x2xf32>
    %cst_67 = arith.constant dense<0.000000e+00> : vector<1xf32>
    %129 = vector.multi_reduction <add>, %128, %cst_67 [1] : vector<1x2xf32> to vector<1xf32>
    %130 = vector.shape_cast %129 : vector<1xf32> to vector<1x1xf32>
    %131 = vector.broadcast %130 : vector<1x1xf32> to vector<1x2xf32>
    %132 = arith.divf %128, %131 : vector<1x2xf32>
    %cst_68 = arith.constant 0.000000e+00 : f32
    %133 = vector.broadcast %cst_68 : f32 to vector<1x126xf32>
    %134 = tpu.concatenate %132, %133 in 1 : vector<1x2xf32>, vector<1x126xf32> -> vector<1x128xf32>
    %c33_69 = arith.constant 33 : index
    %c0_70 = arith.constant 0 : index
    %135 = vector.load %arg5[%c33_69, %c0_70] : memref<40x128xf32, #tpu.memory_space<vmem>>, vector<1x128xf32>
    tpu.vector_store %arg5[%c33_69, %c0_70], %134 {strides = array<i32>} : memref<40x128xf32, #tpu.memory_space<vmem>>, vector<1x128xf32>,
    %136 = vector.extract_strided_slice %106 {offsets = [0, 8], sizes = [10, 8], strides = [1, 1]} : vector<10x16xf32> to vector<10x8xf32>
    %cst_71 = arith.constant dense<0.000000e+00> : vector<10x160xf32>
    %137 = tpu.matmul %136, %15, %cst_71 {dimension_numbers = #tpu.dot_dimension_numbers<[1], [0], [0], [1], [0, 0, 1, 1], [], []>} : vector<10x8xf32>, vector<8x160xf32>, vector<10x160xf32> -> vector<10x160xf32>
    %138 = arith.mulf %137, %16 : vector<10x160xf32>
    %cst_72 = arith.constant dense<0.000000e+00> : vector<1x160xf32>
    %139 = tpu.matmul %107, %138, %cst_72 {dimension_numbers = #tpu.dot_dimension_numbers<[1], [0], [0], [1], [0, 0, 1, 1], [], []>} : vector<1x10xf32>, vector<10x160xf32>, vector<1x160xf32> -> vector<1x160xf32>
    %cst_73 = arith.constant dense<0.000000e+00> : vector<1x16xf32>
    %140 = tpu.matmul %139, %17, %cst_73 {dimension_numbers = #tpu.dot_dimension_numbers<[1], [0], [0], [1], [0, 0, 1, 1], [], []>} : vector<1x160xf32>, vector<160x16xf32>, vector<1x16xf32> -> vector<1x16xf32>
    %141 = arith.addf %140, %13 : vector<1x16xf32>
    %cst_74 = arith.constant 0.000000e+00 : f32
    %142 = vector.broadcast %cst_74 : f32 to vector<1x16xf32>
    %143 = arith.maximumf %141, %142 : vector<1x16xf32>
    %cst_75 = arith.constant dense<0.000000e+00> : vector<1x2xf32>
    %144 = tpu.matmul %143, %9, %cst_75 {dimension_numbers = #tpu.dot_dimension_numbers<[1], [0], [0], [1], [0, 0, 1, 1], [], []>} : vector<1x16xf32>, vector<16x2xf32>, vector<1x2xf32> -> vector<1x2xf32>
    %145 = arith.addf %144, %14 : vector<1x2xf32>
    %cst_76 = arith.constant dense<0xFF800000> : vector<1xf32>
    %146 = vector.multi_reduction <maximumf>, %145, %cst_76 [1] : vector<1x2xf32> to vector<1xf32>
    %147 = vector.shape_cast %146 : vector<1xf32> to vector<1x1xf32>
    %148 = vector.broadcast %147 : vector<1x1xf32> to vector<1x2xf32>
    %149 = arith.subf %145, %148 : vector<1x2xf32>
    %150 = math.exp %149 : vector<1x2xf32>
    %cst_77 = arith.constant dense<0.000000e+00> : vector<1xf32>
    %151 = vector.multi_reduction <add>, %150, %cst_77 [1] : vector<1x2xf32> to vector<1xf32>
    %152 = vector.shape_cast %151 : vector<1xf32> to vector<1x1xf32>
    %153 = vector.broadcast %152 : vector<1x1xf32> to vector<1x2xf32>
    %154 = arith.divf %150, %153 : vector<1x2xf32>
    %cst_78 = arith.constant 0.000000e+00 : f32
    %155 = vector.broadcast %cst_78 : f32 to vector<1x126xf32>
    %156 = tpu.concatenate %154, %155 in 1 : vector<1x2xf32>, vector<1x126xf32> -> vector<1x128xf32>
    %c34 = arith.constant 34 : index
    %c0_79 = arith.constant 0 : index
    %157 = vector.load %arg5[%c34, %c0_79] : memref<40x128xf32, #tpu.memory_space<vmem>>, vector<1x128xf32>
    tpu.vector_store %arg5[%c34, %c0_79], %156 {strides = array<i32>} : memref<40x128xf32, #tpu.memory_space<vmem>>, vector<1x128xf32>,
    %cst_80 = arith.constant 0.000000e+00 : f32
    %158 = vector.broadcast %cst_80 : f32 to vector<5x128xf32>
    %c35 = arith.constant 35 : index
    %c0_81 = arith.constant 0 : index
    %159 = vector.load %arg5[%c35, %c0_81] : memref<40x128xf32, #tpu.memory_space<vmem>>, vector<5x128xf32>
    tpu.vector_store %arg5[%c35, %c0_81], %158 {strides = array<i32>} : memref<40x128xf32, #tpu.memory_space<vmem>>, vector<5x128xf32>,
    return
  }
}

</mosaic_0001>

<llo_original>
// kernel: crgnn_forward.1
$region0: #{crgnn_forward.1}
  #allocation0 [shape = 'u32[]', space=smem, size = 0x4, offset = 0x4, fixed_abs, tag = 'smem constant byte address 0x4 - core index']
  #allocation1 [shape = 'u32[144,128]{1,0:T(1,128)}', space=vmem, size = 0x12000, scoped, tag = 'internal scratch']
  %s0 = inlined_call_operand.vmem [shape: f32[32,32], index: 0, kind: input, shape index: {}]
  %s1 = inlined_call_operand.vmem [shape: f32[40,512], index: 1, kind: input, shape index: {}]
  %s2 = inlined_call_operand.vmem [shape: f32[512,32], index: 2, kind: input, shape index: {}]
  %s3 = inlined_call_operand.vmem [shape: f32[152,128], index: 3, kind: input, shape index: {}]
  %s4 = inlined_call_operand.vmem [shape: f32[184,160], index: 4, kind: input, shape index: {}]
  %s5 = inlined_call_operand.vmem [shape: f32[40,128], index: 5, kind: output, shape index: {}]
  %s6 = sld [smem:[#allocation0]]
  $region30: #{crgnn_forward.1} parent=0
    _
  %s8 = ssub.s32 1, %s6
  %s9 = scalar_select 0, %s8, %s6
  // Predicated region
  $region2: #{crgnn_forward.1} parent=0 // pred_check
    _
  $region3: #{crgnn_forward.1} parent=0 // pred_check_branch
    %11 = sbr.rel (0) target = $region5
  $region4: #{crgnn_forward.1} parent=0 // pred_region
    _
  $region5: #{crgnn_forward.1} parent=0 // pred_fallthru
    _
  // Predicated region
  $region6: #{crgnn_forward.1} parent=0 // pred_check
    _
  $region7: #{crgnn_forward.1} parent=0 // pred_check_branch
    %13 = sbr.rel (0) target = $region9
  $region8: #{crgnn_forward.1} parent=0 // pred_region
    _
  $region9: #{crgnn_forward.1} parent=0 // pred_fallthru
    _
  // Predicated region
  $region10: #{crgnn_forward.1} parent=0 // pred_check
    _
  $region11: #{crgnn_forward.1} parent=0 // pred_check_branch
    %15 = sbr.rel (0) target = $region13
  $region12: #{crgnn_forward.1} parent=0 // pred_region
    _
  $region13: #{crgnn_forward.1} parent=0 // pred_fallthru
    _
  // Predicated region
  $region14: #{crgnn_forward.1} parent=0 // pred_check
    _
  $region15: #{crgnn_forward.1} parent=0 // pred_check_branch
    %17 = sbr.rel (0) target = $region17
  $region16: #{crgnn_forward.1} parent=0 // pred_region
    _
  $region17: #{crgnn_forward.1} parent=0 // pred_fallthru
    _
  // Predicated region
  $region18: #{crgnn_forward.1} parent=0 // pred_check
    _
  $region19: #{crgnn_forward.1} parent=0 // pred_check_branch
    %19 = sbr.rel (0) target = $region21
  $region20: #{crgnn_forward.1} parent=0 // pred_region
    _
  $region21: #{crgnn_forward.1} parent=0 // pred_fallthru
    _
  %v20 = vld [vmem:[%s1] sm:$0xff]
  %v21 = vld [vmem:[%s1 + $0x8] sm:$0xff]
  %v22 = vld [vmem:[%s1 + $0x10] sm:$0xff]
  %v23 = vld [vmem:[%s1 + $0x18] sm:$0xff]
  %v24 = vld [vmem:[%s1 + $0x20] sm:$0xff]
  %v25 = vld [vmem:[%s1 + $0x28] sm:$0xff]
  %v26 = vld [vmem:[%s1 + $0x30] sm:$0xff]
  %v27 = vld [vmem:[%s1 + $0x38] sm:$0xff]
  %v28 = vld [vmem:[%s1 + $0x40] sm:$0xff]
  %v29 = vld [vmem:[%s1 + $0x48] sm:$0xff]
  %v30 = vld [vmem:[%s1 + $0x50] sm:$0xff]
  %v31 = vld [vmem:[%s1 + $0x58] sm:$0xff]
  %v32 = vld [vmem:[%s1 + $0x60] sm:$0xff]
  %v33 = vld [vmem:[%s1 + $0x68] sm:$0xff]
  %v34 = vld [vmem:[%s1 + $0x70] sm:$0xff]
  %v35 = vld [vmem:[%s1 + $0x78] sm:$0xff]
  %s36 = scalar_lea.vmem %s1, 128
  %v37 = vld [vmem:[%s36] ss:$8 sm:$0xf]
  %s38 = scalar_lea.vmem %s1, 129
  %v39 = vld [vmem:[%s38] ss:$8 sm:$0xf]
  %v40 = vld [vmem:[%s3] sm:$0xff]
  %v41 = vld [vmem:[%s3 + $0x8] sm:$0xff]
  %v42 = vld [vmem:[%s3 + $0x10] sm:$0xff]
  %v43 = vld [vmem:[%s3 + $0x18] sm:$0xff]
  %v44 = vld [vmem:[%s3 + $0x20] sm:$0xff]
  %v45 = vld [vmem:[%s3 + $0x28] sm:$0xff]
  %v46 = vld [vmem:[%s3 + $0x30] sm:$0xff]
  %v47 = vld [vmem:[%s3 + $0x38] sm:$0xff]
  %v48 = vld [vmem:[%s3 + $0x40] sm:$0xff]
  %v49 = vld [vmem:[%s3 + $0x48] sm:$0xff]
  %v50 = vld [vmem:[%s3 + $0x50] sm:$0xff]
  %v51 = vld [vmem:[%s3 + $0x58] sm:$0xff]
  %v52 = vld [vmem:[%s3 + $0x60] sm:$0xff]
  %v53 = vld [vmem:[%s3 + $0x68] sm:$0xff]
  %v54 = vld [vmem:[%s3 + $0x70] sm:$0xff]
  %v55 = vld [vmem:[%s3 + $0x78] sm:$0xff]
  %v56 = vld [vmem:[%s3 + $0x80] sm:$0xff]
  %v57 = vld [vmem:[%s3 + $0x88] sm:$0xff]
  %v58 = vld [vmem:[%s3 + $0x90] sm:$0x1]
  %v59 = vld [vmem:[%s3 + $0x91] sm:$0x1]
  %v60 = vld [vmem:[%s3 + $0x92] sm:$0x1]
  %v61 = vld [vmem:[%s3 + $0x93] sm:$0x1]
  %v62 = vld [vmem:[%s3 + $0x94] sm:$0x1]
  %v63 = vld [vmem:[%s4] sm:$0xff]
  %v64 = vld [vmem:[%s4 + $0x8] sm:$0xff]
  %v65 = vld [vmem:[%s4 + $0x10] sm:$0xff]
  %v66 = vld [vmem:[%s4 + $0x18] sm:$0xff]
  %v67 = vld [vmem:[%s4 + $0x20] sm:$0x3]
  %v68 = vld [vmem:[%s4 + $0x28] sm:$0x3]
  %v69 = vld [vmem:[%s4 + $0x30] sm:$0xff]
  %v70 = vld [vmem:[%s4 + $0x40] sm:$0xff]
  %v71 = vld [vmem:[%s4 + $0x50] sm:$0xff]
  %v72 = vld [vmem:[%s4 + $0x60] sm:$0xff]
  %v73 = vld [vmem:[%s4 + $0x70] sm:$0xff]
  %v74 = vld [vmem:[%s4 + $0x80] sm:$0xff]
  %v75 = vld [vmem:[%s4 + $0x90] sm:$0xff]
  %v76 = vld [vmem:[%s4 + $0xa0] sm:$0xff]
  %v77 = vld [vmem:[%s4 + $0xb0] sm:$0xff]
  %v78 = vld [vmem:[%s4 + $0xc0] sm:$0xff]
  %v79 = vld [vmem:[%s4 + $0xd0] sm:$0xff]
  %v80 = vld [vmem:[%s4 + $0xe0] sm:$0xff]
  %v81 = vld [vmem:[%s4 + $0xf0] sm:$0xff]
  %v82 = vld [vmem:[%s4 + $0x100] sm:$0xff]
  %v83 = vld [vmem:[%s4 + $0x110] sm:$0xff]
  %v84 = vld [vmem:[%s4 + $0x120] sm:$0xff]
  %v85 = vld [vmem:[%s4 + $0x130] sm:$0xff]
  %v86 = vld [vmem:[%s4 + $0x140] sm:$0xff]
  %v87 = vld [vmem:[%s4 + $0x150] sm:$0xff]
  %v88 = vld [vmem:[%s4 + $0x160] sm:$0xff]
  %v89 = vld [vmem:[%s0] sm:$0xff]
  %v90 = vld [vmem:[%s0 + $0x8] sm:$0xff]
  %v91 = vld [vmem:[%s0 + $0x10] sm:$0xff]
  %v92 = vld [vmem:[%s0 + $0x18] sm:$0xff]
  %v94 = vlaneseq
  %v95 = vshrl.u32 %v94, 7
  %v96 = vsub.s32 0, %v95
  %v97 = vrot.slane %v37, %v96
  %v98 = vlaneseq
  %v99 = vshrl.u32 %v98, 7
  %v100 = vsub.s32 1, %v99
  %v101 = vrot.slane %v37, %v100
  %v102 = vlaneseq
  %v103 = vshrl.u32 %v102, 7
  %v104 = vsub.s32 2, %v103
  %v105 = vrot.slane %v37, %v104
  %v106 = vlaneseq
  %v107 = vshrl.u32 %v106, 7
  %v108 = vsub.s32 3, %v107
  %v109 = vrot.slane %v37, %v108
  %vm114 = vcmask 261120
  %v116 = vsel %vm114, %v89, 0
  %v119 = vsel %vm114, %v90, 0
  %v122 = vsel %vm114, %v91, 0
  %v125 = vsel %vm114, %v92, 0
  %127 = vmatprep.subr.mxu0 %v21
  %128 = vmatpush1.msra.mxu0 %v20
  %129 = vmatprep.subr.mxu0 %v25
  %130 = vmatpush1.msra.mxu0 %v24
  %131 = vmatprep.subr.mxu0 %v29
  %132 = vmatpush1.msra.mxu0 %v28
  %133 = vmatprep.subr.mxu0 %v33
  %134 = vmatpush1.msra.mxu0 %v32
  %135 = vmatprep.subr.mxu0 0.0
  %136 = vmatpush1.msra.mxu0 0.0
  %137 = vmatprep.subr.mxu0 0.0
  %138 = vmatpush1.msra.mxu0 0.0
  %139 = vmatprep.subr.mxu0 0.0
  %140 = vmatpush1.msra.mxu0 0.0
  %141 = vmatprep.subr.mxu0 0.0
  %142 = vmatpush1.msra.mxu0 0.0
  %143 = vmatprep.subr.mxu0 0.0
  %144 = vmatpush1.msra.mxu0 0.0
  %145 = vmatprep.subr.mxu0 0.0
  %146 = vmatpush1.msra.mxu0 0.0
  %147 = vmatprep.subr.mxu0 0.0
  %148 = vmatpush1.msra.mxu0 0.0
  %149 = vmatprep.subr.mxu0 0.0
  %150 = vmatpush1.msra.mxu0 0.0
  %151 = vmatprep.subr.mxu0 0.0
  %152 = vmatpush1.msra.mxu0 0.0
  %153 = vmatprep.subr.mxu0 0.0
  %154 = vmatpush1.msra.mxu0 0.0
  %155 = vmatprep.subr.mxu0 0.0
  %156 = vmatpush1.msra.mxu0 0.0
  %157 = vmatprep.subr.mxu0 0.0
  %158 = vmatpush1.msra.mxu0 0.0
  %159 = vmatprep.subr.mxu0 0.0
  %160 = vmatpush1.msra.mxu0 0.0
  %161 = vmatprep.subr.mxu0 0.0
  %162 = vmatpush1.msra.mxu0 0.0
  %163 = vmatprep.subr.mxu0 0.0
  %164 = vmatpush1.msra.mxu0 0.0
  %165 = vmatprep.subr.mxu0 0.0
  %166 = vmatpush1.msra.mxu0 0.0
  %167 = vmatprep.subr.mxu0 0.0
  %168 = vmatpush1.msra.mxu0 0.0
  %169 = vmatprep.subr.mxu0 0.0
  %170 = vmatpush1.msra.mxu0 0.0
  %171 = vmatprep.subr.mxu0 0.0
  %172 = vmatpush1.msra.mxu0 0.0
  %173 = vmatprep.subr.mxu0 0.0
  %174 = vmatpush1.msra.mxu0 0.0
  %175 = vmatprep.subr.mxu0 0.0
  %176 = vmatpush1.msra.mxu0 0.0
  %177 = vmatprep.subr.mxu0 0.0
  %178 = vmatpush1.msra.mxu0 0.0
  %179 = vmatprep.subr.mxu0 0.0
  %180 = vmatpush1.msra.mxu0 0.0
  %181 = vmatprep.subr.mxu0 0.0
  %182 = vmatpush1.msra.mxu0 0.0
  %183 = vmatprep.subr.mxu0 0.0
  %184 = vmatpush1.msra.mxu0 0.0
  %185 = vmatprep.subr.mxu0 0.0
  %186 = vmatpush1.msra.mxu0 0.0
  %187 = vmatprep.subr.mxu0 0.0
  %188 = vmatpush1.msra.mxu0 0.0
  %189 = vmatprep.subr.mxu0 0.0
  %190 = vmatpush1.msra.mxu0 0.0
  %191 = vmatprep.mubr.f32.mxu0 0.0
  %192 = vmatmul.mubr.f32.gmra.mrb[0].mxu0 %v116
  %v193 = vpop.f32.mrb[0].mxu0
  %v194 = vadd.f32 %v97, %v193
  %v195 = vpop.f32.mrb[0].mxu0
  %v196 = vadd.f32 %v101, %v195
  %197 = vmatprep.mubr.f32.mxu0 0.0
  %198 = vmatmul.mubr.f32.gmra.mrb[0].mxu0 %v119
  %v199 = vpop.f32.mrb[0].mxu0
  %v200 = vadd.f32 %v97, %v199
  %v201 = vpop.f32.mrb[0].mxu0
  %v202 = vadd.f32 %v101, %v201
  %203 = vmatprep.mubr.f32.mxu0 0.0
  %204 = vmatmul.mubr.f32.gmra.mrb[0].mxu0 %v122
  %v205 = vpop.f32.mrb[0].mxu0
  %v206 = vadd.f32 %v97, %v205
  %v207 = vpop.f32.mrb[0].mxu0
  %v208 = vadd.f32 %v101, %v207
  %209 = vmatprep.mubr.f32.mxu0 0.0
  %210 = vmatmul.mubr.f32.gmra.mrb[0].mxu0 %v125
  %v211 = vpop.f32.mrb[0].mxu0
  %v212 = vadd.f32 %v97, %v211
  %v213 = vpop.f32.mrb[0].mxu0
  %v214 = vadd.f32 %v101, %v213
  %215 = vdwg.mxu0
  %216 = vmatprep.subr.mxu0 %v23
  %217 = vmatpush1.msra.mxu0 %v22
  %218 = vmatprep.subr.mxu0 %v27
  %219 = vmatpush1.msra.mxu0 %v26
  %220 = vmatprep.subr.mxu0 %v31
  %221 = vmatpush1.msra.mxu0 %v30
  %222 = vmatprep.subr.mxu0 %v35
  %223 = vmatpush1.msra.mxu0 %v34
  %224 = vmatprep.subr.mxu0 0.0
  %225 = vmatpush1.msra.mxu0 0.0
  %226 = vmatprep.subr.mxu0 0.0
  %227 = vmatpush1.msra.mxu0 0.0
  %228 = vmatprep.subr.mxu0 0.0
  %229 = vmatpush1.msra.mxu0 0.0
  %230 = vmatprep.subr.mxu0 0.0
  %231 = vmatpush1.msra.mxu0 0.0
  %232 = vmatprep.subr.mxu0 0.0
  %233 = vmatpush1.msra.mxu0 0.0
  %234 = vmatprep.subr.mxu0 0.0
  %235 = vmatpush1.msra.mxu0 0.0
  %236 = vmatprep.subr.mxu0 0.0
  %237 = vmatpush1.msra.mxu0 0.0
  %238 = vmatprep.subr.mxu0 0.0
  %239 = vmatpush1.msra.mxu0 0.0
  %240 = vmatprep.subr.mxu0 0.0
  %241 = vmatpush1.msra.mxu0 0.0
  %242 = vmatprep.subr.mxu0 0.0
  %243 = vmatpush1.msra.mxu0 0.0
  %244 = vmatprep.subr.mxu0 0.0
  %245 = vmatpush1.msra.mxu0 0.0
  %246 = vmatprep.subr.mxu0 0.0
  %247 = vmatpush1.msra.mxu0 0.0
  %248 = vmatprep.subr.mxu0 0.0
  %249 = vmatpush1.msra.mxu0 0.0
  %250 = vmatprep.subr.mxu0 0.0
  %251 = vmatpush1.msra.mxu0 0.0
  %252 = vmatprep.subr.mxu0 0.0
  %253 = vmatpush1.msra.mxu0 0.0
  %254 = vmatprep.subr.mxu0 0.0
  %255 = vmatpush1.msra.mxu0 0.0
  %256 = vmatprep.subr.mxu0 0.0
  %257 = vmatpush1.msra.mxu0 0.0
  %258 = vmatprep.subr.mxu0 0.0
  %259 = vmatpush1.msra.mxu0 0.0
  %260 = vmatprep.subr.mxu0 0.0
  %261 = vmatpush1.msra.mxu0 0.0
  %262 = vmatprep.subr.mxu0 0.0
  %263 = vmatpush1.msra.mxu0 0.0
  %264 = vmatprep.subr.mxu0 0.0
  %265 = vmatpush1.msra.mxu0 0.0
  %266 = vmatprep.subr.mxu0 0.0
  %267 = vmatpush1.msra.mxu0 0.0
  %268 = vmatprep.subr.mxu0 0.0
  %269 = vmatpush1.msra.mxu0 0.0
  %270 = vmatprep.subr.mxu0 0.0
  %271 = vmatpush1.msra.mxu0 0.0
  %272 = vmatprep.subr.mxu0 0.0
  %273 = vmatpush1.msra.mxu0 0.0
  %274 = vmatprep.subr.mxu0 0.0
  %275 = vmatpush1.msra.mxu0 0.0
  %276 = vmatprep.subr.mxu0 0.0
  %277 = vmatpush1.msra.mxu0 0.0
  %278 = vmatprep.subr.mxu0 0.0
  %279 = vmatpush1.msra.mxu0 0.0
  %280 = vmatprep.mubr.f32.mxu0 0.0
  %281 = vmatmul.mubr.f32.gmra.mrb[0].mxu0 %v116
  %v282 = vpop.f32.mrb[0].mxu0
  %v283 = vadd.f32 %v105, %v282
  %v284 = vpop.f32.mrb[0].mxu0
  %v285 = vadd.f32 %v109, %v284
  %286 = vmatprep.mubr.f32.mxu0 0.0
  %287 = vmatmul.mubr.f32.gmra.mrb[0].mxu0 %v119
  %v288 = vpop.f32.mrb[0].mxu0
  %v289 = vadd.f32 %v105, %v288
  %v290 = vpop.f32.mrb[0].mxu0
  %v291 = vadd.f32 %v109, %v290
  %292 = vmatprep.mubr.f32.mxu0 0.0
  %293 = vmatmul.mubr.f32.gmra.mrb[0].mxu0 %v122
  %v294 = vpop.f32.mrb[0].mxu0
  %v295 = vadd.f32 %v105, %v294
  %v296 = vpop.f32.mrb[0].mxu0
  %v297 = vadd.f32 %v109, %v296
  %298 = vmatprep.mubr.f32.mxu0 0.0
  %299 = vmatmul.mubr.f32.gmra.mrb[0].mxu0 %v125
  %v300 = vpop.f32.mrb[0].mxu0
  %v301 = vadd.f32 %v105, %v300
  %v302 = vpop.f32.mrb[0].mxu0
  %v303 = vadd.f32 %v109, %v302
  %304 = vdwg.mxu0
  %v305 = vtanh.pop %v194
  %v306 = vtanh.pop %v196
  %v307 = vtanh.pop %v283
  %v308 = vtanh.pop %v285
  %v309 = vtanh.pop %v200
  %v310 = vtanh.pop %v202
  %v311 = vtanh.pop %v289
  %v312 = vtanh.pop %v291
  %v313 = vtanh.pop %v206
  %v314 = vtanh.pop %v208
  %v315 = vtanh.pop %v295
  %v316 = vtanh.pop %v297
  %v317 = vtanh.pop %v212
  %v318 = vtanh.pop %v214
  %v319 = vtanh.pop %v301
  %v320 = vtanh.pop %v303
  %v322 = vlaneseq
  %v323 = vshrl.u32 %v322, 7
  %v324 = vsub.s32 0, %v323
  %v325 = vrot.slane %v39, %v324
  %v326 = vlaneseq
  %v327 = vshrl.u32 %v326, 7
  %v328 = vsub.s32 1, %v327
  %v329 = vrot.slane %v39, %v328
  %v330 = vlaneseq
  %v331 = vshrl.u32 %v330, 7
  %v332 = vsub.s32 2, %v331
  %v333 = vrot.slane %v39, %v332
  %v334 = vlaneseq
  %v335 = vshrl.u32 %v334, 7
  %v336 = vsub.s32 3, %v335
  %v337 = vrot.slane %v39, %v336
  %v342 = vmul.f32 %v305, %v325
  %v343 = vmul.f32 %v306, %v329
  %v344 = vmul.f32 %v307, %v333
  %v345 = vmul.f32 %v308, %v337
  %v346 = vmul.f32 %v309, %v325
  %v347 = vmul.f32 %v310, %v329
  %v348 = vmul.f32 %v311, %v333
  %v349 = vmul.f32 %v312, %v337
  %v350 = vmul.f32 %v313, %v325
  %v351 = vmul.f32 %v314, %v329
  %v352 = vmul.f32 %v315, %v333
  %v353 = vmul.f32 %v316, %v337
  %v354 = vmul.f32 %v317, %v325
  %v355 = vmul.f32 %v318, %v329
  %v356 = vmul.f32 %v319, %v333
  %v357 = vmul.f32 %v320, %v337
  %v358 = vld [vmem:[%s2] sm:$0xff]
  %v359 = vld [vmem:[%s2 + $0x8] sm:$0xff]
  %v360 = vld [vmem:[%s2 + $0x10] sm:$0xff]
  %v361 = vld [vmem:[%s2 + $0x18] sm:$0xff]
  %v362 = vld [vmem:[%s2 + $0x20] sm:$0xff]
  %v363 = vld [vmem:[%s2 + $0x28] sm:$0xff]
  %v364 = vld [vmem:[%s2 + $0x30] sm:$0xff]
  %v365 = vld [vmem:[%s2 + $0x38] sm:$0xff]
  %v366 = vld [vmem:[%s2 + $0x40] sm:$0xff]
  %v367 = vld [vmem:[%s2 + $0x48] sm:$0xff]
  %v368 = vld [vmem:[%s2 + $0x50] sm:$0xff]
  %v369 = vld [vmem:[%s2 + $0x58] sm:$0xff]
  %v370 = vld [vmem:[%s2 + $0x60] sm:$0xff]
  %v371 = vld [vmem:[%s2 + $0x68] sm:$0xff]
  %v372 = vld [vmem:[%s2 + $0x70] sm:$0xff]
  %v373 = vld [vmem:[%s2 + $0x78] sm:$0xff]
  %v374 = vld [vmem:[%s2 + $0x80] sm:$0xff]
  %v375 = vld [vmem:[%s2 + $0x88] sm:$0xff]
  %v376 = vld [vmem:[%s2 + $0x90] sm:$0xff]
  %v377 = vld [vmem:[%s2 + $0x98] sm:$0xff]
  %v378 = vld [vmem:[%s2 + $0xa0] sm:$0xff]
  %v379 = vld [vmem:[%s2 + $0xa8] sm:$0xff]
  %v380 = vld [vmem:[%s2 + $0xb0] sm:$0xff]
  %v381 = vld [vmem:[%s2 + $0xb8] sm:$0xff]
  %v382 = vld [vmem:[%s2 + $0xc0] sm:$0xff]
  %v383 = vld [vmem:[%s2 + $0xc8] sm:$0xff]
  %v384 = vld [vmem:[%s2 + $0xd0] sm:$0xff]
  %v385 = vld [vmem:[%s2 + $0xd8] sm:$0xff]
  %v386 = vld [vmem:[%s2 + $0xe0] sm:$0xff]
  %v387 = vld [vmem:[%s2 + $0xe8] sm:$0xff]
  %v388 = vld [vmem:[%s2 + $0xf0] sm:$0xff]
  %v389 = vld [vmem:[%s2 + $0xf8] sm:$0xff]
  %v390 = vld [vmem:[%s2 + $0x100] sm:$0xff]
  %v391 = vld [vmem:[%s2 + $0x108] sm:$0xff]
  %v392 = vld [vmem:[%s2 + $0x110] sm:$0xff]
  %v393 = vld [vmem:[%s2 + $0x118] sm:$0xff]
  %v394 = vld [vmem:[%s2 + $0x120] sm:$0xff]
  %v395 = vld [vmem:[%s2 + $0x128] sm:$0xff]
  %v396 = vld [vmem:[%s2 + $0x130] sm:$0xff]
  %v397 = vld [vmem:[%s2 + $0x138] sm:$0xff]
  %v398 = vld [vmem:[%s2 + $0x140] sm:$0xff]
  %v399 = vld [vmem:[%s2 + $0x148] sm:$0xff]
  %v400 = vld [vmem:[%s2 + $0x150] sm:$0xff]
  %v401 = vld [vmem:[%s2 + $0x158] sm:$0xff]
  %v402 = vld [vmem:[%s2 + $0x160] sm:$0xff]
  %v403 = vld [vmem:[%s2 + $0x168] sm:$0xff]
  %v404 = vld [vmem:[%s2 + $0x170] sm:$0xff]
  %v405 = vld [vmem:[%s2 + $0x178] sm:$0xff]
  %v406 = vld [vmem:[%s2 + $0x180] sm:$0xff]
  %v407 = vld [vmem:[%s2 + $0x188] sm:$0xff]
  %v408 = vld [vmem:[%s2 + $0x190] sm:$0xff]
  %v409 = vld [vmem:[%s2 + $0x198] sm:$0xff]
  %v410 = vld [vmem:[%s2 + $0x1a0] sm:$0xff]
  %v411 = vld [vmem:[%s2 + $0x1a8] sm:$0xff]
  %v412 = vld [vmem:[%s2 + $0x1b0] sm:$0xff]
  %v413 = vld [vmem:[%s2 + $0x1b8] sm:$0xff]
  %v414 = vld [vmem:[%s2 + $0x1c0] sm:$0xff]
  %v415 = vld [vmem:[%s2 + $0x1c8] sm:$0xff]
  %v416 = vld [vmem:[%s2 + $0x1d0] sm:$0xff]
  %v417 = vld [vmem:[%s2 + $0x1d8] sm:$0xff]
  %v418 = vld [vmem:[%s2 + $0x1e0] sm:$0xff]
  %v419 = vld [vmem:[%s2 + $0x1e8] sm:$0xff]
  %v420 = vld [vmem:[%s2 + $0x1f0] sm:$0xff]
  %v421 = vld [vmem:[%s2 + $0x1f8] sm:$0xff]
  %v422 = vlaneseq
  %v423 = vshrl.u32 %v422, 7
  %v424 = vsub.s32 0, %v423
  %v425 = vrot.slane %v60, %v424
  %426 = vmatprep.subr.mxu0 0.0
  %427 = vmatpush1.msra.mxu0 %v358
  %428 = vmatprep.subr.mxu0 0.0
  %429 = vmatpush1.msra.mxu0 %v359
  %430 = vmatprep.subr.mxu0 0.0
  %431 = vmatpush1.msra.mxu0 %v360
  %432 = vmatprep.subr.mxu0 0.0
  %433 = vmatpush1.msra.mxu0 %v361
  %434 = vmatprep.subr.mxu0 0.0
  %435 = vmatpush1.msra.mxu0 %v362
  %436 = vmatprep.subr.mxu0 0.0
  %437 = vmatpush1.msra.mxu0 %v363
  %438 = vmatprep.subr.mxu0 0.0
  %439 = vmatpush1.msra.mxu0 %v364
  %440 = vmatprep.subr.mxu0 0.0
  %441 = vmatpush1.msra.mxu0 %v365
  %442 = vmatprep.subr.mxu0 0.0
  %443 = vmatpush1.msra.mxu0 %v366
  %444 = vmatprep.subr.mxu0 0.0
  %445 = vmatpush1.msra.mxu0 %v367
  %446 = vmatprep.subr.mxu0 0.0
  %447 = vmatpush1.msra.mxu0 %v368
  %448 = vmatprep.subr.mxu0 0.0
  %449 = vmatpush1.msra.mxu0 %v369
  %450 = vmatprep.subr.mxu0 0.0
  %451 = vmatpush1.msra.mxu0 %v370
  %452 = vmatprep.subr.mxu0 0.0
  %453 = vmatpush1.msra.mxu0 %v371
  %454 = vmatprep.subr.mxu0 0.0
  %455 = vmatpush1.msra.mxu0 %v372
  %456 = vmatprep.subr.mxu0 0.0
  %457 = vmatpush1.msra.mxu0 %v373
  %458 = vmatprep.subr.mxu0 0.0
  %459 = vmatpush1.msra.mxu0 %v374
  %460 = vmatprep.subr.mxu0 0.0
  %461 = vmatpush1.msra.mxu0 %v375
  %462 = vmatprep.subr.mxu0 0.0
  %463 = vmatpush1.msra.mxu0 %v376
  %464 = vmatprep.subr.mxu0 0.0
  %465 = vmatpush1.msra.mxu0 %v377
  %466 = vmatprep.subr.mxu0 0.0
  %467 = vmatpush1.msra.mxu0 %v378
  %468 = vmatprep.subr.mxu0 0.0
  %469 = vmatpush1.msra.mxu0 %v379
  %470 = vmatprep.subr.mxu0 0.0
  %471 = vmatpush1.msra.mxu0 %v380
  %472 = vmatprep.subr.mxu0 0.0
  %473 = vmatpush1.msra.mxu0 %v381
  %474 = vmatprep.subr.mxu0 0.0
  %475 = vmatpush1.msra.mxu0 %v382
  %476 = vmatprep.subr.mxu0 0.0
  %477 = vmatpush1.msra.mxu0 %v383
  %478 = vmatprep.subr.mxu0 0.0
  %479 = vmatpush1.msra.mxu0 %v384
  %480 = vmatprep.subr.mxu0 0.0
  %481 = vmatpush1.msra.mxu0 %v385
  %482 = vmatprep.subr.mxu0 0.0
  %483 = vmatpush1.msra.mxu0 %v386
  %484 = vmatprep.subr.mxu0 0.0
  %485 = vmatpush1.msra.mxu0 %v387
  %486 = vmatprep.subr.mxu0 0.0
  %487 = vmatpush1.msra.mxu0 %v388
  %488 = vmatprep.subr.mxu0 0.0
  %489 = vmatpush1.msra.mxu0 %v389
  %490 = vmatprep.mubr.f32.mxu0 %v343
  %491 = vmatmul.mubr.f32.gmra.mrb[0].mxu0 %v342
  %v492 = vpop.f32.mrb[0].mxu0
  %v493 = vadd.f32 %v425, %v492
  %v494 = vpop.f32.mrb[0].mxu0
  %495 = vmatprep.mubr.f32.mxu0 %v347
  %496 = vmatmul.mubr.f32.gmra.mrb[0].mxu0 %v346
  %v497 = vpop.f32.mrb[0].mxu0
  %v498 = vadd.f32 %v425, %v497
  %v499 = vpop.f32.mrb[0].mxu0
  %500 = vmatprep.mubr.f32.mxu0 %v351
  %501 = vmatmul.mubr.f32.gmra.mrb[0].mxu0 %v350
  %v502 = vpop.f32.mrb[0].mxu0
  %v503 = vadd.f32 %v425, %v502
  %v504 = vpop.f32.mrb[0].mxu0
  %505 = vmatprep.mubr.f32.mxu0 %v355
  %506 = vmatmul.mubr.f32.gmra.mrb[0].mxu0 %v354
  %v507 = vpop.f32.mrb[0].mxu0
  %v508 = vadd.f32 %v425, %v507
  %v509 = vpop.f32.mrb[0].mxu0
  %510 = vdwg.mxu0
  %511 = vmatprep.subr.mxu0 0.0
  %512 = vmatpush1.msra.mxu0 %v390
  %513 = vmatprep.subr.mxu0 0.0
  %514 = vmatpush1.msra.mxu0 %v391
  %515 = vmatprep.subr.mxu0 0.0
  %516 = vmatpush1.msra.mxu0 %v392
  %517 = vmatprep.subr.mxu0 0.0
  %518 = vmatpush1.msra.mxu0 %v393
  %519 = vmatprep.subr.mxu0 0.0
  %520 = vmatpush1.msra.mxu0 %v394
  %521 = vmatprep.subr.mxu0 0.0
  %522 = vmatpush1.msra.mxu0 %v395
  %523 = vmatprep.subr.mxu0 0.0
  %524 = vmatpush1.msra.mxu0 %v396
  %525 = vmatprep.subr.mxu0 0.0
  %526 = vmatpush1.msra.mxu0 %v397
  %527 = vmatprep.subr.mxu0 0.0
  %528 = vmatpush1.msra.mxu0 %v398
  %529 = vmatprep.subr.mxu0 0.0
  %530 = vmatpush1.msra.mxu0 %v399
  %531 = vmatprep.subr.mxu0 0.0
  %532 = vmatpush1.msra.mxu0 %v400
  %533 = vmatprep.subr.mxu0 0.0
  %534 = vmatpush1.msra.mxu0 %v401
  %535 = vmatprep.subr.mxu0 0.0
  %536 = vmatpush1.msra.mxu0 %v402
  %537 = vmatprep.subr.mxu0 0.0
  %538 = vmatpush1.msra.mxu0 %v403
  %539 = vmatprep.subr.mxu0 0.0
  %540 = vmatpush1.msra.mxu0 %v404
  %541 = vmatprep.subr.mxu0 0.0
  %542 = vmatpush1.msra.mxu0 %v405
  %543 = vmatprep.subr.mxu0 0.0
  %544 = vmatpush1.msra.mxu0 %v406
  %545 = vmatprep.subr.mxu0 0.0
  %546 = vmatpush1.msra.mxu0 %v407
  %547 = vmatprep.subr.mxu0 0.0
  %548 = vmatpush1.msra.mxu0 %v408
  %549 = vmatprep.subr.mxu0 0.0
  %550 = vmatpush1.msra.mxu0 %v409
  %551 = vmatprep.subr.mxu0 0.0
  %552 = vmatpush1.msra.mxu0 %v410
  %553 = vmatprep.subr.mxu0 0.0
  %554 = vmatpush1.msra.mxu0 %v411
  %555 = vmatprep.subr.mxu0 0.0
  %556 = vmatpush1.msra.mxu0 %v412
  %557 = vmatprep.subr.mxu0 0.0
  %558 = vmatpush1.msra.mxu0 %v413
  %559 = vmatprep.subr.mxu0 0.0
  %560 = vmatpush1.msra.mxu0 %v414
  %561 = vmatprep.subr.mxu0 0.0
  %562 = vmatpush1.msra.mxu0 %v415
  %563 = vmatprep.subr.mxu0 0.0
  %564 = vmatpush1.msra.mxu0 %v416
  %565 = vmatprep.subr.mxu0 0.0
  %566 = vmatpush1.msra.mxu0 %v417
  %567 = vmatprep.subr.mxu0 0.0
  %568 = vmatpush1.msra.mxu0 %v418
  %569 = vmatprep.subr.mxu0 0.0
  %570 = vmatpush1.msra.mxu0 %v419
  %571 = vmatprep.subr.mxu0 0.0
  %572 = vmatpush1.msra.mxu0 %v420
  %573 = vmatprep.subr.mxu0 0.0
  %574 = vmatpush1.msra.mxu0 %v421
  %575 = vmatprep.mubr.f32.mxu0 %v345
  %576 = vmatmul.mubr.f32.gmra.mrb[0].mxu0 %v344
  %v577 = vpop.f32.mrb[0].mxu0
  %v578 = vadd.f32 %v493, %v577
  %v579 = vpop.f32.mrb[0].mxu0
  %580 = vmatprep.mubr.f32.mxu0 %v349
  %581 = vmatmul.mubr.f32.gmra.mrb[0].mxu0 %v348
  %v582 = vpop.f32.mrb[0].mxu0
  %v583 = vadd.f32 %v498, %v582
  %v584 = vpop.f32.mrb[0].mxu0
  %585 = vmatprep.mubr.f32.mxu0 %v353
  %586 = vmatmul.mubr.f32.gmra.mrb[0].mxu0 %v352
  %v587 = vpop.f32.mrb[0].mxu0
  %v588 = vadd.f32 %v503, %v587
  %v589 = vpop.f32.mrb[0].mxu0
  %590 = vmatprep.mubr.f32.mxu0 %v357
  %591 = vmatmul.mubr.f32.gmra.mrb[0].mxu0 %v356
  %v592 = vpop.f32.mrb[0].mxu0
  %v593 = vadd.f32 %v508, %v592
  %v594 = vpop.f32.mrb[0].mxu0
  %595 = vdwg.mxu0
  %596 = vxpose.xlu0.b32.start [1/16] %v89, 128
  %597 = vxpose.xlu0.b32.cont [2/16] %v90, 128
  %598 = vxpose.xlu0.b32.cont [3/16] %v91, 128
  %599 = vxpose.xlu0.b32.cont [4/16] %v92, 128
  %600 = vxpose.xlu0.b32.cont [5/16] 0.0, 128
  %601 = vxpose.xlu0.b32.cont [6/16] 0.0, 128
  %602 = vxpose.xlu0.b32.cont [7/16] 0.0, 128
  %603 = vxpose.xlu0.b32.cont [8/16] 0.0, 128
  %604 = vxpose.xlu0.b32.cont [9/16] 0.0, 128
  %605 = vxpose.xlu0.b32.cont [10/16] 0.0, 128
  %606 = vxpose.xlu0.b32.cont [11/16] 0.0, 128
  %607 = vxpose.xlu0.b32.cont [12/16] 0.0, 128
  %608 = vxpose.xlu0.b32.cont [13/16] 0.0, 128
  %609 = vxpose.xlu0.b32.cont [14/16] 0.0, 128
  %610 = vxpose.xlu0.b32.cont [15/16] 0.0, 128
  %611 = vxpose.xlu0.b32.end [16/16] 0.0, 128
  %v612 = vpop.trf.xlu0
  %v613 = vpop.trf.xlu0
  %v614 = vpop.trf.xlu0
  %v615 = vpop.trf.xlu0
  %v616 = vpop.trf.xlu0
  %v617 = vpop.trf.xlu0
  %v618 = vpop.trf.xlu0
  %v619 = vpop.trf.xlu0
  %v620 = vpop.trf.xlu0
  %v621 = vpop.trf.xlu0
  %v622 = vpop.trf.xlu0
  %v623 = vpop.trf.xlu0
  %v624 = vpop.trf.xlu0
  %v625 = vpop.trf.xlu0
  %v626 = vpop.trf.xlu0
  %v627 = vpop.trf.xlu0
  %628 = vxpose.xlu0.b32.start [1/16] %v40, 128
  %629 = vxpose.xlu0.b32.cont [2/16] %v41, 128
  %630 = vxpose.xlu0.b32.cont [3/16] %v42, 128
  %631 = vxpose.xlu0.b32.cont [4/16] %v43, 128
  %632 = vxpose.xlu0.b32.cont [5/16] 0.0, 128
  %633 = vxpose.xlu0.b32.cont [6/16] 0.0, 128
  %634 = vxpose.xlu0.b32.cont [7/16] 0.0, 128
  %635 = vxpose.xlu0.b32.cont [8/16] 0.0, 128
  %636 = vxpose.xlu0.b32.cont [9/16] 0.0, 128
  %637 = vxpose.xlu0.b32.cont [10/16] 0.0, 128
  %638 = vxpose.xlu0.b32.cont [11/16] 0.0, 128
  %639 = vxpose.xlu0.b32.cont [12/16] 0.0, 128
  %640 = vxpose.xlu0.b32.cont [13/16] 0.0, 128
  %641 = vxpose.xlu0.b32.cont [14/16] 0.0, 128
  %642 = vxpose.xlu0.b32.cont [15/16] 0.0, 128
  %643 = vxpose.xlu0.b32.end [16/16] 0.0, 128
  %v644 = vpop.trf.xlu0
  %v645 = vpop.trf.xlu0
  %v646 = vpop.trf.xlu0
  %v647 = vpop.trf.xlu0
  %v648 = vpop.trf.xlu0
  %v649 = vpop.trf.xlu0
  %v650 = vpop.trf.xlu0
  %v651 = vpop.trf.xlu0
  %v652 = vpop.trf.xlu0
  %v653 = vpop.trf.xlu0
  %v654 = vpop.trf.xlu0
  %v655 = vpop.trf.xlu0
  %v656 = vpop.trf.xlu0
  %v657 = vpop.trf.xlu0
  %v658 = vpop.trf.xlu0
  %v659 = vpop.trf.xlu0
  %664 = vrot.lane.b32.xlu0 %v40, 64
  %v665 = vpop.permute.xlu0 %664
  %666 = vrot.lane.b32.xlu0 %v41, 64
  %v667 = vpop.permute.xlu0 %666
  %668 = vrot.lane.b32.xlu0 %v42, 64
  %v669 = vpop.permute.xlu0 %668
  %670 = vrot.lane.b32.xlu0 %v43, 64
  %v671 = vpop.permute.xlu0 %670
  %v677 = vsel %vm114, %v612, 0
  %v680 = vsel %vm114, %v613, 0
  %v683 = vsel %vm114, %v614, 0
  %v686 = vsel %vm114, %v615, 0
  %688 = vmatprep.subr.mxu0 0.0
  %689 = vmatpush1.msra.mxu0 %v665
  %690 = vmatprep.subr.mxu0 0.0
  %691 = vmatpush1.msra.mxu0 %v667
  %692 = vmatprep.subr.mxu0 0.0
  %693 = vmatpush1.msra.mxu0 %v669
  %694 = vmatprep.subr.mxu0 0.0
  %695 = vmatpush1.msra.mxu0 %v671
  %696 = vmatprep.subr.mxu0 0.0
  %697 = vmatpush1.msra.mxu0 0.0
  %698 = vmatprep.subr.mxu0 0.0
  %699 = vmatpush1.msra.mxu0 0.0
  %700 = vmatprep.subr.mxu0 0.0
  %701 = vmatpush1.msra.mxu0 0.0
  %702 = vmatprep.subr.mxu0 0.0
  %703 = vmatpush1.msra.mxu0 0.0
  %704 = vmatprep.subr.mxu0 0.0
  %705 = vmatpush1.msra.mxu0 0.0
  %706 = vmatprep.subr.mxu0 0.0
  %707 = vmatpush1.msra.mxu0 0.0
  %708 = vmatprep.subr.mxu0 0.0
  %709 = vmatpush1.msra.mxu0 0.0
  %710 = vmatprep.subr.mxu0 0.0
  %711 = vmatpush1.msra.mxu0 0.0
  %712 = vmatprep.subr.mxu0 0.0
  %713 = vmatpush1.msra.mxu0 0.0
  %714 = vmatprep.subr.mxu0 0.0
  %715 = vmatpush1.msra.mxu0 0.0
  %716 = vmatprep.subr.mxu0 0.0
  %717 = vmatpush1.msra.mxu0 0.0
  %718 = vmatprep.subr.mxu0 0.0
  %719 = vmatpush1.msra.mxu0 0.0
  %720 = vmatprep.subr.mxu0 0.0
  %721 = vmatpush1.msra.mxu0 0.0
  %722 = vmatprep.subr.mxu0 0.0
  %723 = vmatpush1.msra.mxu0 0.0
  %724 = vmatprep.subr.mxu0 0.0
  %725 = vmatpush1.msra.mxu0 0.0
  %726 = vmatprep.subr.mxu0 0.0
  %727 = vmatpush1.msra.mxu0 0.0
  %728 = vmatprep.subr.mxu0 0.0
  %729 = vmatpush1.msra.mxu0 0.0
  %730 = vmatprep.subr.mxu0 0.0
  %731 = vmatpush1.msra.mxu0 0.0
  %732 = vmatprep.subr.mxu0 0.0
  %733 = vmatpush1.msra.mxu0 0.0
  %734 = vmatprep.subr.mxu0 0.0
  %735 = vmatpush1.msra.mxu0 0.0
  %736 = vmatprep.subr.mxu0 0.0
  %737 = vmatpush1.msra.mxu0 0.0
  %738 = vmatprep.subr.mxu0 0.0
  %739 = vmatpush1.msra.mxu0 0.0
  %740 = vmatprep.subr.mxu0 0.0
  %741 = vmatpush1.msra.mxu0 0.0
  %742 = vmatprep.subr.mxu0 0.0
  %743 = vmatpush1.msra.mxu0 0.0
  %744 = vmatprep.subr.mxu0 0.0
  %745 = vmatpush1.msra.mxu0 0.0
  %746 = vmatprep.subr.mxu0 0.0
  %747 = vmatpush1.msra.mxu0 0.0
  %748 = vmatprep.subr.mxu0 0.0
  %749 = vmatpush1.msra.mxu0 0.0
  %750 = vmatprep.subr.mxu0 0.0
  %751 = vmatpush1.msra.mxu0 0.0
  %752 = vmatprep.mubr.f32.mxu0 0.0
  %753 = vmatmul.mubr.f32.gmra.mrb[0].mxu0 %v677
  %v754 = vpop.f32.mrb[0].mxu0
  %v755 = vadd.f32 0.0, %v754
  %v756 = vpop.f32.mrb[0].mxu0
  %757 = vmatprep.mubr.f32.mxu0 0.0
  %758 = vmatmul.mubr.f32.gmra.mrb[0].mxu0 %v680
  %v759 = vpop.f32.mrb[0].mxu0
  %v760 = vadd.f32 0.0, %v759
  %v761 = vpop.f32.mrb[0].mxu0
  %762 = vmatprep.mubr.f32.mxu0 0.0
  %763 = vmatmul.mubr.f32.gmra.mrb[0].mxu0 %v683
  %v764 = vpop.f32.mrb[0].mxu0
  %v765 = vadd.f32 0.0, %v764
  %v766 = vpop.f32.mrb[0].mxu0
  %767 = vmatprep.mubr.f32.mxu0 0.0
  %768 = vmatmul.mubr.f32.gmra.mrb[0].mxu0 %v686
  %v769 = vpop.f32.mrb[0].mxu0
  %v770 = vadd.f32 0.0, %v769
  %v771 = vpop.f32.mrb[0].mxu0
  %772 = vdwg.mxu0
  %773 = vmatprep.subr.mxu0 0.0
  %774 = vmatpush1.msra.mxu0 %v44
  %775 = vmatprep.subr.mxu0 0.0
  %776 = vmatpush1.msra.mxu0 %v45
  %777 = vmatprep.subr.mxu0 0.0
  %778 = vmatpush1.msra.mxu0 %v46
  %779 = vmatprep.subr.mxu0 0.0
  %780 = vmatpush1.msra.mxu0 %v47
  %781 = vmatprep.subr.mxu0 0.0
  %782 = vmatpush1.msra.mxu0 0.0
  %783 = vmatprep.subr.mxu0 0.0
  %784 = vmatpush1.msra.mxu0 0.0
  %785 = vmatprep.subr.mxu0 0.0
  %786 = vmatpush1.msra.mxu0 0.0
  %787 = vmatprep.subr.mxu0 0.0
  %788 = vmatpush1.msra.mxu0 0.0
  %789 = vmatprep.subr.mxu0 0.0
  %790 = vmatpush1.msra.mxu0 0.0
  %791 = vmatprep.subr.mxu0 0.0
  %792 = vmatpush1.msra.mxu0 0.0
  %793 = vmatprep.subr.mxu0 0.0
  %794 = vmatpush1.msra.mxu0 0.0
  %795 = vmatprep.subr.mxu0 0.0
  %796 = vmatpush1.msra.mxu0 0.0
  %797 = vmatprep.subr.mxu0 0.0
  %798 = vmatpush1.msra.mxu0 0.0
  %799 = vmatprep.subr.mxu0 0.0
  %800 = vmatpush1.msra.mxu0 0.0
  %801 = vmatprep.subr.mxu0 0.0
  %802 = vmatpush1.msra.mxu0 0.0
  %803 = vmatprep.subr.mxu0 0.0
  %804 = vmatpush1.msra.mxu0 0.0
  %805 = vmatprep.subr.mxu0 0.0
  %806 = vmatpush1.msra.mxu0 0.0
  %807 = vmatprep.subr.mxu0 0.0
  %808 = vmatpush1.msra.mxu0 0.0
  %809 = vmatprep.subr.mxu0 0.0
  %810 = vmatpush1.msra.mxu0 0.0
  %811 = vmatprep.subr.mxu0 0.0
  %812 = vmatpush1.msra.mxu0 0.0
  %813 = vmatprep.subr.mxu0 0.0
  %814 = vmatpush1.msra.mxu0 0.0
  %815 = vmatprep.subr.mxu0 0.0
  %816 = vmatpush1.msra.mxu0 0.0
  %817 = vmatprep.subr.mxu0 0.0
  %818 = vmatpush1.msra.mxu0 0.0
  %819 = vmatprep.subr.mxu0 0.0
  %820 = vmatpush1.msra.mxu0 0.0
  %821 = vmatprep.subr.mxu0 0.0
  %822 = vmatpush1.msra.mxu0 0.0
  %823 = vmatprep.subr.mxu0 0.0
  %824 = vmatpush1.msra.mxu0 0.0
  %825 = vmatprep.subr.mxu0 0.0
  %826 = vmatpush1.msra.mxu0 0.0
  %827 = vmatprep.subr.mxu0 0.0
  %828 = vmatpush1.msra.mxu0 0.0
  %829 = vmatprep.subr.mxu0 0.0
  %830 = vmatpush1.msra.mxu0 0.0
  %831 = vmatprep.subr.mxu0 0.0
  %832 = vmatpush1.msra.mxu0 0.0
  %833 = vmatprep.subr.mxu0 0.0
  %834 = vmatpush1.msra.mxu0 0.0
  %835 = vmatprep.subr.mxu0 0.0
  %836 = vmatpush1.msra.mxu0 0.0
  %837 = vmatprep.mubr.f32.mxu0 0.0
  %838 = vmatmul.mubr.f32.gmra.mrb[0].mxu0 %v677
  %v839 = vpop.f32.mrb[0].mxu0
  %v840 = vadd.f32 0.0, %v839
  %v841 = vpop.f32.mrb[0].mxu0
  %842 = vmatprep.mubr.f32.mxu0 0.0
  %843 = vmatmul.mubr.f32.gmra.mrb[0].mxu0 %v680
  %v844 = vpop.f32.mrb[0].mxu0
  %v845 = vadd.f32 0.0, %v844
  %v846 = vpop.f32.mrb[0].mxu0
  %847 = vmatprep.mubr.f32.mxu0 0.0
  %848 = vmatmul.mubr.f32.gmra.mrb[0].mxu0 %v683
  %v849 = vpop.f32.mrb[0].mxu0
  %v850 = vadd.f32 0.0, %v849
  %v851 = vpop.f32.mrb[0].mxu0
  %852 = vmatprep.mubr.f32.mxu0 0.0
  %853 = vmatmul.mubr.f32.gmra.mrb[0].mxu0 %v686
  %v854 = vpop.f32.mrb[0].mxu0
  %v855 = vadd.f32 0.0, %v854
  %v856 = vpop.f32.mrb[0].mxu0
  %857 = vdwg.mxu0
  %v859 = vsel %vm114, %v644, 0
  %v862 = vsel %vm114, %v645, 0
  %v865 = vsel %vm114, %v646, 0
  %v868 = vsel %vm114, %v647, 0
  %870 = vmatprep.subr.mxu0 0.0
  %871 = vmatpush1.msra.mxu0 %v840
  %872 = vmatprep.subr.mxu0 0.0
  %873 = vmatpush1.msra.mxu0 %v845
  %874 = vmatprep.subr.mxu0 0.0
  %875 = vmatpush1.msra.mxu0 %v850
  %876 = vmatprep.subr.mxu0 0.0
  %877 = vmatpush1.msra.mxu0 %v855
  %878 = vmatprep.subr.mxu0 0.0
  %879 = vmatpush1.msra.mxu0 0.0
  %880 = vmatprep.subr.mxu0 0.0
  %881 = vmatpush1.msra.mxu0 0.0
  %882 = vmatprep.subr.mxu0 0.0
  %883 = vmatpush1.msra.mxu0 0.0
  %884 = vmatprep.subr.mxu0 0.0
  %885 = vmatpush1.msra.mxu0 0.0
  %886 = vmatprep.subr.mxu0 0.0
  %887 = vmatpush1.msra.mxu0 0.0
  %888 = vmatprep.subr.mxu0 0.0
  %889 = vmatpush1.msra.mxu0 0.0
  %890 = vmatprep.subr.mxu0 0.0
  %891 = vmatpush1.msra.mxu0 0.0
  %892 = vmatprep.subr.mxu0 0.0
  %893 = vmatpush1.msra.mxu0 0.0
  %894 = vmatprep.subr.mxu0 0.0
  %895 = vmatpush1.msra.mxu0 0.0
  %896 = vmatprep.subr.mxu0 0.0
  %897 = vmatpush1.msra.mxu0 0.0
  %898 = vmatprep.subr.mxu0 0.0
  %899 = vmatpush1.msra.mxu0 0.0
  %900 = vmatprep.subr.mxu0 0.0
  %901 = vmatpush1.msra.mxu0 0.0
  %902 = vmatprep.subr.mxu0 0.0
  %903 = vmatpush1.msra.mxu0 0.0
  %904 = vmatprep.subr.mxu0 0.0
  %905 = vmatpush1.msra.mxu0 0.0
  %906 = vmatprep.subr.mxu0 0.0
  %907 = vmatpush1.msra.mxu0 0.0
  %908 = vmatprep.subr.mxu0 0.0
  %909 = vmatpush1.msra.mxu0 0.0
  %910 = vmatprep.subr.mxu0 0.0
  %911 = vmatpush1.msra.mxu0 0.0
  %912 = vmatprep.subr.mxu0 0.0
  %913 = vmatpush1.msra.mxu0 0.0
  %914 = vmatprep.subr.mxu0 0.0
  %915 = vmatpush1.msra.mxu0 0.0
  %916 = vmatprep.subr.mxu0 0.0
  %917 = vmatpush1.msra.mxu0 0.0
  %918 = vmatprep.subr.mxu0 0.0
  %919 = vmatpush1.msra.mxu0 0.0
  %920 = vmatprep.subr.mxu0 0.0
  %921 = vmatpush1.msra.mxu0 0.0
  %922 = vmatprep.subr.mxu0 0.0
  %923 = vmatpush1.msra.mxu0 0.0
  %924 = vmatprep.subr.mxu0 0.0
  %925 = vmatpush1.msra.mxu0 0.0
  %926 = vmatprep.subr.mxu0 0.0
  %927 = vmatpush1.msra.mxu0 0.0
  %928 = vmatprep.subr.mxu0 0.0
  %929 = vmatpush1.msra.mxu0 0.0
  %930 = vmatprep.subr.mxu0 0.0
  %931 = vmatpush1.msra.mxu0 0.0
  %932 = vmatprep.subr.mxu0 0.0
  %933 = vmatpush1.msra.mxu0 0.0
  %934 = vmatprep.mubr.f32.mxu0 0.0
  %935 = vmatmul.mubr.f32.gmra.mrb[0].mxu0 %v859
  %v936 = vpop.f32.mrb[0].mxu0
  %v937 = vadd.f32 0.0, %v936
  %v938 = vpop.f32.mrb[0].mxu0
  %939 = vmatprep.mubr.f32.mxu0 0.0
  %940 = vmatmul.mubr.f32.gmra.mrb[0].mxu0 %v862
  %v941 = vpop.f32.mrb[0].mxu0
  %v942 = vadd.f32 0.0, %v941
  %v943 = vpop.f32.mrb[0].mxu0
  %944 = vmatprep.mubr.f32.mxu0 0.0
  %945 = vmatmul.mubr.f32.gmra.mrb[0].mxu0 %v865
  %v946 = vpop.f32.mrb[0].mxu0
  %v947 = vadd.f32 0.0, %v946
  %v948 = vpop.f32.mrb[0].mxu0
  %949 = vmatprep.mubr.f32.mxu0 0.0
  %950 = vmatmul.mubr.f32.gmra.mrb[0].mxu0 %v868
  %v951 = vpop.f32.mrb[0].mxu0
  %v952 = vadd.f32 0.0, %v951
  %v953 = vpop.f32.mrb[0].mxu0
  %954 = vdwg.mxu0
  %v955 = vsel %vm114, %v40, 0
  %v957 = vsel %vm114, %v41, 0
  %v959 = vsel %vm114, %v42, 0
  %v961 = vsel %vm114, %v43, 0
  %963 = vmatprep.subr.mxu0 0.0
  %964 = vmatpush1.msra.mxu0 %v755
  %965 = vmatprep.subr.mxu0 0.0
  %966 = vmatpush1.msra.mxu0 %v760
  %967 = vmatprep.subr.mxu0 0.0
  %968 = vmatpush1.msra.mxu0 %v765
  %969 = vmatprep.subr.mxu0 0.0
  %970 = vmatpush1.msra.mxu0 %v770
  %971 = vmatprep.subr.mxu0 0.0
  %972 = vmatpush1.msra.mxu0 0.0
  %973 = vmatprep.subr.mxu0 0.0
  %974 = vmatpush1.msra.mxu0 0.0
  %975 = vmatprep.subr.mxu0 0.0
  %976 = vmatpush1.msra.mxu0 0.0
  %977 = vmatprep.subr.mxu0 0.0
  %978 = vmatpush1.msra.mxu0 0.0
  %979 = vmatprep.subr.mxu0 0.0
  %980 = vmatpush1.msra.mxu0 0.0
  %981 = vmatprep.subr.mxu0 0.0
  %982 = vmatpush1.msra.mxu0 0.0
  %983 = vmatprep.subr.mxu0 0.0
  %984 = vmatpush1.msra.mxu0 0.0
  %985 = vmatprep.subr.mxu0 0.0
  %986 = vmatpush1.msra.mxu0 0.0
  %987 = vmatprep.subr.mxu0 0.0
  %988 = vmatpush1.msra.mxu0 0.0
  %989 = vmatprep.subr.mxu0 0.0
  %990 = vmatpush1.msra.mxu0 0.0
  %991 = vmatprep.subr.mxu0 0.0
  %992 = vmatpush1.msra.mxu0 0.0
  %993 = vmatprep.subr.mxu0 0.0
  %994 = vmatpush1.msra.mxu0 0.0
  %995 = vmatprep.subr.mxu0 0.0
  %996 = vmatpush1.msra.mxu0 0.0
  %997 = vmatprep.subr.mxu0 0.0
  %998 = vmatpush1.msra.mxu0 0.0
  %999 = vmatprep.subr.mxu0 0.0
  %1000 = vmatpush1.msra.mxu0 0.0
  %1001 = vmatprep.subr.mxu0 0.0
  %1002 = vmatpush1.msra.mxu0 0.0
  %1003 = vmatprep.subr.mxu0 0.0
  %1004 = vmatpush1.msra.mxu0 0.0
  %1005 = vmatprep.subr.mxu0 0.0
  %1006 = vmatpush1.msra.mxu0 0.0
  %1007 = vmatprep.subr.mxu0 0.0
  %1008 = vmatpush1.msra.mxu0 0.0
  %1009 = vmatprep.subr.mxu0 0.0
  %1010 = vmatpush1.msra.mxu0 0.0
  %1011 = vmatprep.subr.mxu0 0.0
  %1012 = vmatpush1.msra.mxu0 0.0
  %1013 = vmatprep.subr.mxu0 0.0
  %1014 = vmatpush1.msra.mxu0 0.0
  %1015 = vmatprep.subr.mxu0 0.0
  %1016 = vmatpush1.msra.mxu0 0.0
  %1017 = vmatprep.subr.mxu0 0.0
  %1018 = vmatpush1.msra.mxu0 0.0
  %1019 = vmatprep.subr.mxu0 0.0
  %1020 = vmatpush1.msra.mxu0 0.0
  %1021 = vmatprep.subr.mxu0 0.0
  %1022 = vmatpush1.msra.mxu0 0.0
  %1023 = vmatprep.subr.mxu0 0.0
  %1024 = vmatpush1.msra.mxu0 0.0
  %1025 = vmatprep.subr.mxu0 0.0
  %1026 = vmatpush1.msra.mxu0 0.0
  %1027 = vmatprep.mubr.f32.mxu0 0.0
  %1028 = vmatmul.mubr.f32.gmra.mrb[0].mxu0 %v955
  %v1029 = vpop.f32.mrb[0].mxu0
  %v1030 = vadd.f32 %v937, %v1029
  %v1031 = vpop.f32.mrb[0].mxu0
  %1032 = vmatprep.mubr.f32.mxu0 0.0
  %1033 = vmatmul.mubr.f32.gmra.mrb[0].mxu0 %v957
  %v1034 = vpop.f32.mrb[0].mxu0
  %v1035 = vadd.f32 %v942, %v1034
  %v1036 = vpop.f32.mrb[0].mxu0
  %1037 = vmatprep.mubr.f32.mxu0 0.0
  %1038 = vmatmul.mubr.f32.gmra.mrb[0].mxu0 %v959
  %v1039 = vpop.f32.mrb[0].mxu0
  %v1040 = vadd.f32 %v947, %v1039
  %v1041 = vpop.f32.mrb[0].mxu0
  %1042 = vmatprep.mubr.f32.mxu0 0.0
  %1043 = vmatmul.mubr.f32.gmra.mrb[0].mxu0 %v961
  %v1044 = vpop.f32.mrb[0].mxu0
  %v1045 = vadd.f32 %v952, %v1044
  %v1046 = vpop.f32.mrb[0].mxu0
  %1047 = vdwg.mxu0
  %v1048 = vmul.f32 %v1030, 0.5
  %v1049 = vmul.f32 %v1035, 0.5
  %v1050 = vmul.f32 %v1040, 0.5
  %v1051 = vmul.f32 %v1045, 0.5
  %v1052 = vlaneseq
  %v1053 = vshrl.u32 %v1052, 7
  %v1054 = vadd.s32 %v1053, 8
  %v1055 = vadd.s32 %v1053, 16
  %v1056 = vadd.s32 %v1053, 24
  %v1057 = vlaneseq
  %v1058 = vand.u32 %v1057, 127
  %vm1059 = vcmask 523264
  %v1061 = vsel %vm1059, %v58, 0
  %v1064 = vsel %vm1059, %v1048, 0
  %v1067 = vsel %vm1059, %v1049, 0
  %v1070 = vsel %vm1059, %v1050, 0
  %v1073 = vsel %vm1059, %v1051, 0
  %1075 = vmatprep.subr.mxu0 0.0
  %1076 = vmatpush1.xpose.msra.mxu0 %v1064
  %1077 = vmatprep.subr.mxu0 0.0
  %1078 = vmatpush1.xpose.msra.mxu0 %v1067
  %1079 = vmatprep.subr.mxu0 0.0
  %1080 = vmatpush1.xpose.msra.mxu0 %v1070
  %1081 = vmatprep.subr.mxu0 0.0
  %1082 = vmatpush1.xpose.msra.mxu0 %v1073
  %1083 = vmatprep.subr.mxu0 0.0
  %1084 = vmatpush1.xpose.msra.mxu0 0.0
  %1085 = vmatprep.subr.mxu0 0.0
  %1086 = vmatpush1.xpose.msra.mxu0 0.0
  %1087 = vmatprep.subr.mxu0 0.0
  %1088 = vmatpush1.xpose.msra.mxu0 0.0
  %1089 = vmatprep.subr.mxu0 0.0
  %1090 = vmatpush1.xpose.msra.mxu0 0.0
  %1091 = vmatprep.subr.mxu0 0.0
  %1092 = vmatpush1.xpose.msra.mxu0 0.0
  %1093 = vmatprep.subr.mxu0 0.0
  %1094 = vmatpush1.xpose.msra.mxu0 0.0
  %1095 = vmatprep.subr.mxu0 0.0
  %1096 = vmatpush1.xpose.msra.mxu0 0.0
  %1097 = vmatprep.subr.mxu0 0.0
  %1098 = vmatpush1.xpose.msra.mxu0 0.0
  %1099 = vmatprep.subr.mxu0 0.0
  %1100 = vmatpush1.xpose.msra.mxu0 0.0
  %1101 = vmatprep.subr.mxu0 0.0
  %1102 = vmatpush1.xpose.msra.mxu0 0.0
  %1103 = vmatprep.subr.mxu0 0.0
  %1104 = vmatpush1.xpose.msra.mxu0 0.0
  %1105 = vmatprep.subr.mxu0 0.0
  %1106 = vmatpush1.xpose.msra.mxu0 0.0
  %1107 = vmatprep.subr.mxu0 0.0
  %1108 = vmatpush1.xpose.msra.mxu0 0.0
  %1109 = vmatprep.subr.mxu0 0.0
  %1110 = vmatpush1.xpose.msra.mxu0 0.0
  %1111 = vmatprep.subr.mxu0 0.0
  %1112 = vmatpush1.xpose.msra.mxu0 0.0
  %1113 = vmatprep.subr.mxu0 0.0
  %1114 = vmatpush1.xpose.msra.mxu0 0.0
  %1115 = vmatprep.subr.mxu0 0.0
  %1116 = vmatpush1.xpose.msra.mxu0 0.0
  %1117 = vmatprep.subr.mxu0 0.0
  %1118 = vmatpush1.xpose.msra.mxu0 0.0
  %1119 = vmatprep.subr.mxu0 0.0
  %1120 = vmatpush1.xpose.msra.mxu0 0.0
  %1121 = vmatprep.subr.mxu0 0.0
  %1122 = vmatpush1.xpose.msra.mxu0 0.0
  %1123 = vmatprep.subr.mxu0 0.0
  %1124 = vmatpush1.xpose.msra.mxu0 0.0
  %1125 = vmatprep.subr.mxu0 0.0
  %1126 = vmatpush1.xpose.msra.mxu0 0.0
  %1127 = vmatprep.subr.mxu0 0.0
  %1128 = vmatpush1.xpose.msra.mxu0 0.0
  %1129 = vmatprep.subr.mxu0 0.0
  %1130 = vmatpush1.xpose.msra.mxu0 0.0
  %1131 = vmatprep.subr.mxu0 0.0
  %1132 = vmatpush1.xpose.msra.mxu0 0.0
  %1133 = vmatprep.subr.mxu0 0.0
  %1134 = vmatpush1.xpose.msra.mxu0 0.0
  %1135 = vmatprep.subr.mxu0 0.0
  %1136 = vmatpush1.xpose.msra.mxu0 0.0
  %1137 = vmatprep.subr.mxu0 0.0
  %1138 = vmatpush1.xpose.msra.mxu0 0.0
  %1139 = vmatprep.mubr.f32.mxu0 0.0
  %1140 = vmatmul.mubr.f32.gmra.mrb[0].mxu0 %v1061
  %v1141 = vpop.f32.mrb[0].mxu0
  %v1142 = vadd.f32 0.0, %v1141
  %v1143 = vpop.f32.mrb[0].mxu0
  %1144 = vdwg.mxu0
  %v1145 = vlaneseq
  %v1146 = vshrl.u32 %v1145, 7
  %v1147 = vsub.s32 0, %v1146
  %v1148 = vrot.slane %v1142, %v1147
  %1149 = vxpose.xlu0.b32.start [1/16] %v1148, 128
  %1150 = vxpose.xlu0.b32.cont [2/16] %v1148, 128
  %1151 = vxpose.xlu0.b32.cont [3/16] %v1148, 128
  %1152 = vxpose.xlu0.b32.cont [4/16] %v1148, 128
  %1153 = vxpose.xlu0.b32.cont [5/16] 0.0, 128
  %1154 = vxpose.xlu0.b32.cont [6/16] 0.0, 128
  %1155 = vxpose.xlu0.b32.cont [7/16] 0.0, 128
  %1156 = vxpose.xlu0.b32.cont [8/16] 0.0, 128
  %1157 = vxpose.xlu0.b32.cont [9/16] 0.0, 128
  %1158 = vxpose.xlu0.b32.cont [10/16] 0.0, 128
  %1159 = vxpose.xlu0.b32.cont [11/16] 0.0, 128
  %1160 = vxpose.xlu0.b32.cont [12/16] 0.0, 128
  %1161 = vxpose.xlu0.b32.cont [13/16] 0.0, 128
  %1162 = vxpose.xlu0.b32.cont [14/16] 0.0, 128
  %1163 = vxpose.xlu0.b32.cont [15/16] 0.0, 128
  %1164 = vxpose.xlu0.b32.end [16/16] 0.0, 128
  %v1165 = vpop.trf.xlu0
  %v1166 = vpop.trf.xlu0
  %v1167 = vpop.trf.xlu0
  %v1168 = vpop.trf.xlu0
  %v1169 = vpop.trf.xlu0
  %v1170 = vpop.trf.xlu0
  %v1171 = vpop.trf.xlu0
  %v1172 = vpop.trf.xlu0
  %v1173 = vpop.trf.xlu0
  %v1174 = vpop.trf.xlu0
  %v1175 = vpop.trf.xlu0
  %v1176 = vpop.trf.xlu0
  %v1177 = vpop.trf.xlu0
  %v1178 = vpop.trf.xlu0
  %v1179 = vpop.trf.xlu0
  %v1180 = vpop.trf.xlu0
  %vm1181 = vcmp.gt.f32.partialorder %v1165, %v1148
  %vm1182 = vcmp.gt.f32.partialorder %v1166, %v1148
  %vm1183 = vcmp.gt.f32.partialorder %v1167, %v1148
  %vm1184 = vcmp.gt.f32.partialorder %v1168, %v1148
  %vm1185 = vcmp.eq.f32.partialorder %v1165, %v1148
  %vm1186 = vcmp.eq.f32.partialorder %v1166, %v1148
  %vm1187 = vcmp.eq.f32.partialorder %v1167, %v1148
  %vm1188 = vcmp.eq.f32.partialorder %v1168, %v1148
  %vm1189 = vcmp.lt.s32.totalorder %v1053, %v1058
  %vm1190 = vcmp.lt.s32.totalorder %v1054, %v1058
  %vm1191 = vcmp.lt.s32.totalorder %v1055, %v1058
  %vm1192 = vcmp.lt.s32.totalorder %v1056, %v1058
  %vm1193 = vmand %vm1185, %vm1189
  %vm1194 = vmand %vm1186, %vm1190
  %vm1195 = vmand %vm1187, %vm1191
  %vm1196 = vmand %vm1188, %vm1192
  %vm1197 = vmor %vm1181, %vm1193
  %vm1198 = vmor %vm1182, %vm1194
  %vm1199 = vmor %vm1183, %vm1195
  %vm1200 = vmor %vm1184, %vm1196
  %v1201 = vsel %vm1197, 1, 0
  %v1202 = vsel %vm1198, 1, 0
  %v1203 = vsel %vm1199, 1, 0
  %v1204 = vsel %vm1200, 1, 0
  %v1205 = vcvt.s32.f32 %v1201
  %v1206 = vcvt.s32.f32 %v1202
  %v1207 = vcvt.s32.f32 %v1203
  %v1208 = vcvt.s32.f32 %v1204
  %v1210 = vsel %vm114, 1.0, 0
  %1212 = vmatprep.subr.mxu0 0.0
  %1213 = vmatpush1.msra.mxu0 %v1205
  %1214 = vmatprep.subr.mxu0 0.0
  %1215 = vmatpush1.msra.mxu0 %v1206
  %1216 = vmatprep.subr.mxu0 0.0
  %1217 = vmatpush1.msra.mxu0 %v1207
  %1218 = vmatprep.subr.mxu0 0.0
  %1219 = vmatpush1.msra.mxu0 %v1208
  %1220 = vmatprep.subr.mxu0 0.0
  %1221 = vmatpush1.msra.mxu0 0.0
  %1222 = vmatprep.subr.mxu0 0.0
  %1223 = vmatpush1.msra.mxu0 0.0
  %1224 = vmatprep.subr.mxu0 0.0
  %1225 = vmatpush1.msra.mxu0 0.0
  %1226 = vmatprep.subr.mxu0 0.0
  %1227 = vmatpush1.msra.mxu0 0.0
  %1228 = vmatprep.subr.mxu0 0.0
  %1229 = vmatpush1.msra.mxu0 0.0
  %1230 = vmatprep.subr.mxu0 0.0
  %1231 = vmatpush1.msra.mxu0 0.0
  %1232 = vmatprep.subr.mxu0 0.0
  %1233 = vmatpush1.msra.mxu0 0.0
  %1234 = vmatprep.subr.mxu0 0.0
  %1235 = vmatpush1.msra.mxu0 0.0
  %1236 = vmatprep.subr.mxu0 0.0
  %1237 = vmatpush1.msra.mxu0 0.0
  %1238 = vmatprep.subr.mxu0 0.0
  %1239 = vmatpush1.msra.mxu0 0.0
  %1240 = vmatprep.subr.mxu0 0.0
  %1241 = vmatpush1.msra.mxu0 0.0
  %1242 = vmatprep.subr.mxu0 0.0
  %1243 = vmatpush1.msra.mxu0 0.0
  %1244 = vmatprep.subr.mxu0 0.0
  %1245 = vmatpush1.msra.mxu0 0.0
  %1246 = vmatprep.subr.mxu0 0.0
  %1247 = vmatpush1.msra.mxu0 0.0
  %1248 = vmatprep.subr.mxu0 0.0
  %1249 = vmatpush1.msra.mxu0 0.0
  %1250 = vmatprep.subr.mxu0 0.0
  %1251 = vmatpush1.msra.mxu0 0.0
  %1252 = vmatprep.subr.mxu0 0.0
  %1253 = vmatpush1.msra.mxu0 0.0
  %1254 = vmatprep.subr.mxu0 0.0
  %1255 = vmatpush1.msra.mxu0 0.0
  %1256 = vmatprep.subr.mxu0 0.0
  %1257 = vmatpush1.msra.mxu0 0.0
  %1258 = vmatprep.subr.mxu0 0.0
  %1259 = vmatpush1.msra.mxu0 0.0
  %1260 = vmatprep.subr.mxu0 0.0
  %1261 = vmatpush1.msra.mxu0 0.0
  %1262 = vmatprep.subr.mxu0 0.0
  %1263 = vmatpush1.msra.mxu0 0.0
  %1264 = vmatprep.subr.mxu0 0.0
  %1265 = vmatpush1.msra.mxu0 0.0
  %1266 = vmatprep.subr.mxu0 0.0
  %1267 = vmatpush1.msra.mxu0 0.0
  %1268 = vmatprep.subr.mxu0 0.0
  %1269 = vmatpush1.msra.mxu0 0.0
  %1270 = vmatprep.subr.mxu0 0.0
  %1271 = vmatpush1.msra.mxu0 0.0
  %1272 = vmatprep.subr.mxu0 0.0
  %1273 = vmatpush1.msra.mxu0 0.0
  %1274 = vmatprep.subr.mxu0 0.0
  %1275 = vmatpush1.msra.mxu0 0.0
  %1276 = vmatprep.mubr.f32.mxu0 0.0
  %1277 = vmatmul.mubr.f32.gmra.mrb[0].mxu0 %v1210
  %v1278 = vpop.f32.mrb[0].mxu0
  %v1279 = vadd.f32 0.0, %v1278
  %v1280 = vpop.f32.mrb[0].mxu0
  %1281 = vdwg.mxu0
  %vm1282 = vcmp.lt.f32.partialorder %v1279, 30.0
  %v1283 = vsel %vm1282, 1, 0
  %v1284 = vcvt.s32.f32 %v1283
  %v1285 = vlaneseq
  %v1286 = vshrl.u32 %v1285, 7
  %v1287 = vsub.s32 0, %v1286
  %v1288 = vrot.slane %v1284, %v1287
  %1289 = vxpose.xlu0.b32.start [1/16] %v1288, 128
  %1290 = vxpose.xlu0.b32.cont [2/16] %v1288, 128
  %1291 = vxpose.xlu0.b32.cont [3/16] %v1288, 128
  %1292 = vxpose.xlu0.b32.cont [4/16] %v1288, 128
  %1293 = vxpose.xlu0.b32.cont [5/16] 0.0, 128
  %1294 = vxpose.xlu0.b32.cont [6/16] 0.0, 128
  %1295 = vxpose.xlu0.b32.cont [7/16] 0.0, 128
  %1296 = vxpose.xlu0.b32.cont [8/16] 0.0, 128
  %1297 = vxpose.xlu0.b32.cont [9/16] 0.0, 128
  %1298 = vxpose.xlu0.b32.cont [10/16] 0.0, 128
  %1299 = vxpose.xlu0.b32.cont [11/16] 0.0, 128
  %1300 = vxpose.xlu0.b32.cont [12/16] 0.0, 128
  %1301 = vxpose.xlu0.b32.cont [13/16] 0.0, 128
  %1302 = vxpose.xlu0.b32.cont [14/16] 0.0, 128
  %1303 = vxpose.xlu0.b32.cont [15/16] 0.0, 128
  %1304 = vxpose.xlu0.b32.end [16/16] 0.0, 128
  %v1305 = vpop.trf.xlu0
  %v1306 = vpop.trf.xlu0
  %v1307 = vpop.trf.xlu0
  %v1308 = vpop.trf.xlu0
  %v1309 = vpop.trf.xlu0
  %v1310 = vpop.trf.xlu0
  %v1311 = vpop.trf.xlu0
  %v1312 = vpop.trf.xlu0
  %v1313 = vpop.trf.xlu0
  %v1314 = vpop.trf.xlu0
  %v1315 = vpop.trf.xlu0
  %v1316 = vpop.trf.xlu0
  %v1317 = vpop.trf.xlu0
  %v1318 = vpop.trf.xlu0
  %v1319 = vpop.trf.xlu0
  %v1320 = vpop.trf.xlu0
  %v1321 = vmul.f32 %v1288, %v1305
  %v1322 = vmul.f32 %v1288, %v1306
  %v1323 = vmul.f32 %v1288, %v1307
  %v1324 = vmul.f32 %v1288, %v1308
  %v1325 = vmul.f32 %v40, %v1321
  %v1326 = vmul.f32 %v41, %v1322
  %v1327 = vmul.f32 %v42, %v1323
  %v1328 = vmul.f32 %v43, %v1324
  %v1329 = vmul.f32 %v644, %v1321
  %v1330 = vmul.f32 %v645, %v1322
  %v1331 = vmul.f32 %v646, %v1323
  %v1332 = vmul.f32 %v647, %v1324
  %1333 = vmatprep.subr.mxu0 0.0
  %1334 = vmatpush1.msra.mxu0 %v48
  %1335 = vmatprep.subr.mxu0 0.0
  %1336 = vmatpush1.msra.mxu0 %v49
  %1337 = vmatprep.subr.mxu0 0.0
  %1338 = vmatpush1.msra.mxu0 %v50
  %1339 = vmatprep.subr.mxu0 0.0
  %1340 = vmatpush1.msra.mxu0 %v51
  %1341 = vmatprep.subr.mxu0 0.0
  %1342 = vmatpush1.msra.mxu0 %v52
  %1343 = vmatprep.subr.mxu0 0.0
  %1344 = vmatpush1.msra.mxu0 %v53
  %1345 = vmatprep.subr.mxu0 0.0
  %1346 = vmatpush1.msra.mxu0 %v54
  %1347 = vmatprep.subr.mxu0 0.0
  %1348 = vmatpush1.msra.mxu0 %v55
  %1349 = vmatprep.subr.mxu0 0.0
  %1350 = vmatpush1.msra.mxu0 0.0
  %1351 = vmatprep.subr.mxu0 0.0
  %1352 = vmatpush1.msra.mxu0 0.0
  %1353 = vmatprep.subr.mxu0 0.0
  %1354 = vmatpush1.msra.mxu0 0.0
  %1355 = vmatprep.subr.mxu0 0.0
  %1356 = vmatpush1.msra.mxu0 0.0
  %1357 = vmatprep.subr.mxu0 0.0
  %1358 = vmatpush1.msra.mxu0 0.0
  %1359 = vmatprep.subr.mxu0 0.0
  %1360 = vmatpush1.msra.mxu0 0.0
  %1361 = vmatprep.subr.mxu0 0.0
  %1362 = vmatpush1.msra.mxu0 0.0
  %1363 = vmatprep.subr.mxu0 0.0
  %1364 = vmatpush1.msra.mxu0 0.0
  %1365 = vmatprep.subr.mxu0 0.0
  %1366 = vmatpush1.msra.mxu0 0.0
  %1367 = vmatprep.subr.mxu0 0.0
  %1368 = vmatpush1.msra.mxu0 0.0
  %1369 = vmatprep.subr.mxu0 0.0
  %1370 = vmatpush1.msra.mxu0 0.0
  %1371 = vmatprep.subr.mxu0 0.0
  %1372 = vmatpush1.msra.mxu0 0.0
  %1373 = vmatprep.subr.mxu0 0.0
  %1374 = vmatpush1.msra.mxu0 0.0
  %1375 = vmatprep.subr.mxu0 0.0
  %1376 = vmatpush1.msra.mxu0 0.0
  %1377 = vmatprep.subr.mxu0 0.0
  %1378 = vmatpush1.msra.mxu0 0.0
  %1379 = vmatprep.subr.mxu0 0.0
  %1380 = vmatpush1.msra.mxu0 0.0
  %1381 = vmatprep.subr.mxu0 0.0
  %1382 = vmatpush1.msra.mxu0 0.0
  %1383 = vmatprep.subr.mxu0 0.0
  %1384 = vmatpush1.msra.mxu0 0.0
  %1385 = vmatprep.subr.mxu0 0.0
  %1386 = vmatpush1.msra.mxu0 0.0
  %1387 = vmatprep.subr.mxu0 0.0
  %1388 = vmatpush1.msra.mxu0 0.0
  %1389 = vmatprep.subr.mxu0 0.0
  %1390 = vmatpush1.msra.mxu0 0.0
  %1391 = vmatprep.subr.mxu0 0.0
  %1392 = vmatpush1.msra.mxu0 0.0
  %1393 = vmatprep.subr.mxu0 0.0
  %1394 = vmatpush1.msra.mxu0 0.0
  %1395 = vmatprep.subr.mxu0 0.0
  %1396 = vmatpush1.msra.mxu0 0.0
  %1397 = vmatprep.mubr.f32.mxu0 0.0
  %1398 = vmatmul.mubr.f32.gmra.mrb[0].mxu0 %v1064
  %v1399 = vpop.f32.mrb[0].mxu0
  %v1400 = vadd.f32 0.0, %v1399
  %v1401 = vpop.f32.mrb[0].mxu0
  %1402 = vmatprep.mubr.f32.mxu0 0.0
  %1403 = vmatmul.mubr.f32.gmra.mrb[0].mxu0 %v1067
  %v1404 = vpop.f32.mrb[0].mxu0
  %v1405 = vadd.f32 0.0, %v1404
  %v1406 = vpop.f32.mrb[0].mxu0
  %1407 = vmatprep.mubr.f32.mxu0 0.0
  %1408 = vmatmul.mubr.f32.gmra.mrb[0].mxu0 %v1070
  %v1409 = vpop.f32.mrb[0].mxu0
  %v1410 = vadd.f32 0.0, %v1409
  %v1411 = vpop.f32.mrb[0].mxu0
  %1412 = vmatprep.mubr.f32.mxu0 0.0
  %1413 = vmatmul.mubr.f32.gmra.mrb[0].mxu0 %v1073
  %v1414 = vpop.f32.mrb[0].mxu0
  %v1415 = vadd.f32 0.0, %v1414
  %v1416 = vpop.f32.mrb[0].mxu0
  %1417 = vdwg.mxu0
  %1426 = vrot.lane.b32.xlu0 %v48, 112
  %v1427 = vpop.permute.xlu0 %1426
  %1428 = vrot.lane.b32.xlu0 %v49, 112
  %v1429 = vpop.permute.xlu0 %1428
  %1430 = vrot.lane.b32.xlu0 %v50, 112
  %v1431 = vpop.permute.xlu0 %1430
  %1432 = vrot.lane.b32.xlu0 %v51, 112
  %v1433 = vpop.permute.xlu0 %1432
  %1434 = vrot.lane.b32.xlu0 %v52, 112
  %v1435 = vpop.permute.xlu0 %1434
  %1436 = vrot.lane.b32.xlu0 %v53, 112
  %v1437 = vpop.permute.xlu0 %1436
  %1438 = vrot.lane.b32.xlu0 %v54, 112
  %v1439 = vpop.permute.xlu0 %1438
  %1440 = vrot.lane.b32.xlu0 %v55, 112
  %v1441 = vpop.permute.xlu0 %1440
  %1450 = vmatprep.subr.mxu0 0.0
  %1451 = vmatpush1.msra.mxu0 %v1427
  %1452 = vmatprep.subr.mxu0 0.0
  %1453 = vmatpush1.msra.mxu0 %v1429
  %1454 = vmatprep.subr.mxu0 0.0
  %1455 = vmatpush1.msra.mxu0 %v1431
  %1456 = vmatprep.subr.mxu0 0.0
  %1457 = vmatpush1.msra.mxu0 %v1433
  %1458 = vmatprep.subr.mxu0 0.0
  %1459 = vmatpush1.msra.mxu0 %v1435
  %1460 = vmatprep.subr.mxu0 0.0
  %1461 = vmatpush1.msra.mxu0 %v1437
  %1462 = vmatprep.subr.mxu0 0.0
  %1463 = vmatpush1.msra.mxu0 %v1439
  %1464 = vmatprep.subr.mxu0 0.0
  %1465 = vmatpush1.msra.mxu0 %v1441
  %1466 = vmatprep.subr.mxu0 0.0
  %1467 = vmatpush1.msra.mxu0 0.0
  %1468 = vmatprep.subr.mxu0 0.0
  %1469 = vmatpush1.msra.mxu0 0.0
  %1470 = vmatprep.subr.mxu0 0.0
  %1471 = vmatpush1.msra.mxu0 0.0
  %1472 = vmatprep.subr.mxu0 0.0
  %1473 = vmatpush1.msra.mxu0 0.0
  %1474 = vmatprep.subr.mxu0 0.0
  %1475 = vmatpush1.msra.mxu0 0.0
  %1476 = vmatprep.subr.mxu0 0.0
  %1477 = vmatpush1.msra.mxu0 0.0
  %1478 = vmatprep.subr.mxu0 0.0
  %1479 = vmatpush1.msra.mxu0 0.0
  %1480 = vmatprep.subr.mxu0 0.0
  %1481 = vmatpush1.msra.mxu0 0.0
  %1482 = vmatprep.subr.mxu0 0.0
  %1483 = vmatpush1.msra.mxu0 0.0
  %1484 = vmatprep.subr.mxu0 0.0
  %1485 = vmatpush1.msra.mxu0 0.0
  %1486 = vmatprep.subr.mxu0 0.0
  %1487 = vmatpush1.msra.mxu0 0.0
  %1488 = vmatprep.subr.mxu0 0.0
  %1489 = vmatpush1.msra.mxu0 0.0
  %1490 = vmatprep.subr.mxu0 0.0
  %1491 = vmatpush1.msra.mxu0 0.0
  %1492 = vmatprep.subr.mxu0 0.0
  %1493 = vmatpush1.msra.mxu0 0.0
  %1494 = vmatprep.subr.mxu0 0.0
  %1495 = vmatpush1.msra.mxu0 0.0
  %1496 = vmatprep.subr.mxu0 0.0
  %1497 = vmatpush1.msra.mxu0 0.0
  %1498 = vmatprep.subr.mxu0 0.0
  %1499 = vmatpush1.msra.mxu0 0.0
  %1500 = vmatprep.subr.mxu0 0.0
  %1501 = vmatpush1.msra.mxu0 0.0
  %1502 = vmatprep.subr.mxu0 0.0
  %1503 = vmatpush1.msra.mxu0 0.0
  %1504 = vmatprep.subr.mxu0 0.0
  %1505 = vmatpush1.msra.mxu0 0.0
  %1506 = vmatprep.subr.mxu0 0.0
  %1507 = vmatpush1.msra.mxu0 0.0
  %1508 = vmatprep.subr.mxu0 0.0
  %1509 = vmatpush1.msra.mxu0 0.0
  %1510 = vmatprep.subr.mxu0 0.0
  %1511 = vmatpush1.msra.mxu0 0.0
  %1512 = vmatprep.subr.mxu0 0.0
  %1513 = vmatpush1.msra.mxu0 0.0
  %1514 = vmatprep.mubr.f32.mxu0 0.0
  %1515 = vmatmul.mubr.f32.gmra.mrb[0].mxu0 %v1064
  %v1516 = vpop.f32.mrb[0].mxu0
  %v1517 = vadd.f32 0.0, %v1516
  %v1518 = vpop.f32.mrb[0].mxu0
  %1519 = vmatprep.mubr.f32.mxu0 0.0
  %1520 = vmatmul.mubr.f32.gmra.mrb[0].mxu0 %v1067
  %v1521 = vpop.f32.mrb[0].mxu0
  %v1522 = vadd.f32 0.0, %v1521
  %v1523 = vpop.f32.mrb[0].mxu0
  %1524 = vmatprep.mubr.f32.mxu0 0.0
  %1525 = vmatmul.mubr.f32.gmra.mrb[0].mxu0 %v1070
  %v1526 = vpop.f32.mrb[0].mxu0
  %v1527 = vadd.f32 0.0, %v1526
  %v1528 = vpop.f32.mrb[0].mxu0
  %1529 = vmatprep.mubr.f32.mxu0 0.0
  %1530 = vmatmul.mubr.f32.gmra.mrb[0].mxu0 %v1073
  %v1531 = vpop.f32.mrb[0].mxu0
  %v1532 = vadd.f32 0.0, %v1531
  %v1533 = vpop.f32.mrb[0].mxu0
  %1534 = vdwg.mxu0
  %v1536 = vsel %vm114, %v1329, 0
  %v1539 = vsel %vm114, %v1330, 0
  %v1542 = vsel %vm114, %v1331, 0
  %v1545 = vsel %vm114, %v1332, 0
  %1547 = vmatprep.subr.mxu0 0.0
  %1548 = vmatpush1.msra.mxu0 %v1517
  %1549 = vmatprep.subr.mxu0 0.0
  %1550 = vmatpush1.msra.mxu0 %v1522
  %1551 = vmatprep.subr.mxu0 0.0
  %1552 = vmatpush1.msra.mxu0 %v1527
  %1553 = vmatprep.subr.mxu0 0.0
  %1554 = vmatpush1.msra.mxu0 %v1532
  %1555 = vmatprep.subr.mxu0 0.0
  %1556 = vmatpush1.msra.mxu0 0.0
  %1557 = vmatprep.subr.mxu0 0.0
  %1558 = vmatpush1.msra.mxu0 0.0
  %1559 = vmatprep.subr.mxu0 0.0
  %1560 = vmatpush1.msra.mxu0 0.0
  %1561 = vmatprep.subr.mxu0 0.0
  %1562 = vmatpush1.msra.mxu0 0.0
  %1563 = vmatprep.subr.mxu0 0.0
  %1564 = vmatpush1.msra.mxu0 0.0
  %1565 = vmatprep.subr.mxu0 0.0
  %1566 = vmatpush1.msra.mxu0 0.0
  %1567 = vmatprep.subr.mxu0 0.0
  %1568 = vmatpush1.msra.mxu0 0.0
  %1569 = vmatprep.subr.mxu0 0.0
  %1570 = vmatpush1.msra.mxu0 0.0
  %1571 = vmatprep.subr.mxu0 0.0
  %1572 = vmatpush1.msra.mxu0 0.0
  %1573 = vmatprep.subr.mxu0 0.0
  %1574 = vmatpush1.msra.mxu0 0.0
  %1575 = vmatprep.subr.mxu0 0.0
  %1576 = vmatpush1.msra.mxu0 0.0
  %1577 = vmatprep.subr.mxu0 0.0
  %1578 = vmatpush1.msra.mxu0 0.0
  %1579 = vmatprep.subr.mxu0 0.0
  %1580 = vmatpush1.msra.mxu0 0.0
  %1581 = vmatprep.subr.mxu0 0.0
  %1582 = vmatpush1.msra.mxu0 0.0
  %1583 = vmatprep.subr.mxu0 0.0
  %1584 = vmatpush1.msra.mxu0 0.0
  %1585 = vmatprep.subr.mxu0 0.0
  %1586 = vmatpush1.msra.mxu0 0.0
  %1587 = vmatprep.subr.mxu0 0.0
  %1588 = vmatpush1.msra.mxu0 0.0
  %1589 = vmatprep.subr.mxu0 0.0
  %1590 = vmatpush1.msra.mxu0 0.0
  %1591 = vmatprep.subr.mxu0 0.0
  %1592 = vmatpush1.msra.mxu0 0.0
  %1593 = vmatprep.subr.mxu0 0.0
  %1594 = vmatpush1.msra.mxu0 0.0
  %1595 = vmatprep.subr.mxu0 0.0
  %1596 = vmatpush1.msra.mxu0 0.0
  %1597 = vmatprep.subr.mxu0 0.0
  %1598 = vmatpush1.msra.mxu0 0.0
  %1599 = vmatprep.subr.mxu0 0.0
  %1600 = vmatpush1.msra.mxu0 0.0
  %1601 = vmatprep.subr.mxu0 0.0
  %1602 = vmatpush1.msra.mxu0 0.0
  %1603 = vmatprep.subr.mxu0 0.0
  %1604 = vmatpush1.msra.mxu0 0.0
  %1605 = vmatprep.subr.mxu0 0.0
  %1606 = vmatpush1.msra.mxu0 0.0
  %1607 = vmatprep.subr.mxu0 0.0
  %1608 = vmatpush1.msra.mxu0 0.0
  %1609 = vmatprep.subr.mxu0 0.0
  %1610 = vmatpush1.msra.mxu0 0.0
  %1611 = vmatprep.mubr.f32.mxu0 0.0
  %1612 = vmatmul.mubr.f32.gmra.mrb[0].mxu0 %v1536
  %v1613 = vpop.f32.mrb[0].mxu0
  %v1614 = vadd.f32 0.0, %v1613
  %v1615 = vpop.f32.mrb[0].mxu0
  %1616 = vmatprep.mubr.f32.mxu0 0.0
  %1617 = vmatmul.mubr.f32.gmra.mrb[0].mxu0 %v1539
  %v1618 = vpop.f32.mrb[0].mxu0
  %v1619 = vadd.f32 0.0, %v1618
  %v1620 = vpop.f32.mrb[0].mxu0
  %1621 = vmatprep.mubr.f32.mxu0 0.0
  %1622 = vmatmul.mubr.f32.gmra.mrb[0].mxu0 %v1542
  %v1623 = vpop.f32.mrb[0].mxu0
  %v1624 = vadd.f32 0.0, %v1623
  %v1625 = vpop.f32.mrb[0].mxu0
  %1626 = vmatprep.mubr.f32.mxu0 0.0
  %1627 = vmatmul.mubr.f32.gmra.mrb[0].mxu0 %v1545
  %v1628 = vpop.f32.mrb[0].mxu0
  %v1629 = vadd.f32 0.0, %v1628
  %v1630 = vpop.f32.mrb[0].mxu0
  %1631 = vdwg.mxu0
  %v1633 = vsel %vm114, %v1325, 0
  %v1636 = vsel %vm114, %v1326, 0
  %v1639 = vsel %vm114, %v1327, 0
  %v1642 = vsel %vm114, %v1328, 0
  %1644 = vmatprep.subr.mxu0 0.0
  %1645 = vmatpush1.msra.mxu0 %v1400
  %1646 = vmatprep.subr.mxu0 0.0
  %1647 = vmatpush1.msra.mxu0 %v1405
  %1648 = vmatprep.subr.mxu0 0.0
  %1649 = vmatpush1.msra.mxu0 %v1410
  %1650 = vmatprep.subr.mxu0 0.0
  %1651 = vmatpush1.msra.mxu0 %v1415
  %1652 = vmatprep.subr.mxu0 0.0
  %1653 = vmatpush1.msra.mxu0 0.0
  %1654 = vmatprep.subr.mxu0 0.0
  %1655 = vmatpush1.msra.mxu0 0.0
  %1656 = vmatprep.subr.mxu0 0.0
  %1657 = vmatpush1.msra.mxu0 0.0
  %1658 = vmatprep.subr.mxu0 0.0
  %1659 = vmatpush1.msra.mxu0 0.0
  %1660 = vmatprep.subr.mxu0 0.0
  %1661 = vmatpush1.msra.mxu0 0.0
  %1662 = vmatprep.subr.mxu0 0.0
  %1663 = vmatpush1.msra.mxu0 0.0
  %1664 = vmatprep.subr.mxu0 0.0
  %1665 = vmatpush1.msra.mxu0 0.0
  %1666 = vmatprep.subr.mxu0 0.0
  %1667 = vmatpush1.msra.mxu0 0.0
  %1668 = vmatprep.subr.mxu0 0.0
  %1669 = vmatpush1.msra.mxu0 0.0
  %1670 = vmatprep.subr.mxu0 0.0
  %1671 = vmatpush1.msra.mxu0 0.0
  %1672 = vmatprep.subr.mxu0 0.0
  %1673 = vmatpush1.msra.mxu0 0.0
  %1674 = vmatprep.subr.mxu0 0.0
  %1675 = vmatpush1.msra.mxu0 0.0
  %1676 = vmatprep.subr.mxu0 0.0
  %1677 = vmatpush1.msra.mxu0 0.0
  %1678 = vmatprep.subr.mxu0 0.0
  %1679 = vmatpush1.msra.mxu0 0.0
  %1680 = vmatprep.subr.mxu0 0.0
  %1681 = vmatpush1.msra.mxu0 0.0
  %1682 = vmatprep.subr.mxu0 0.0
  %1683 = vmatpush1.msra.mxu0 0.0
  %1684 = vmatprep.subr.mxu0 0.0
  %1685 = vmatpush1.msra.mxu0 0.0
  %1686 = vmatprep.subr.mxu0 0.0
  %1687 = vmatpush1.msra.mxu0 0.0
  %1688 = vmatprep.subr.mxu0 0.0
  %1689 = vmatpush1.msra.mxu0 0.0
  %1690 = vmatprep.subr.mxu0 0.0
  %1691 = vmatpush1.msra.mxu0 0.0
  %1692 = vmatprep.subr.mxu0 0.0
  %1693 = vmatpush1.msra.mxu0 0.0
  %1694 = vmatprep.subr.mxu0 0.0
  %1695 = vmatpush1.msra.mxu0 0.0
  %1696 = vmatprep.subr.mxu0 0.0
  %1697 = vmatpush1.msra.mxu0 0.0
  %1698 = vmatprep.subr.mxu0 0.0
  %1699 = vmatpush1.msra.mxu0 0.0
  %1700 = vmatprep.subr.mxu0 0.0
  %1701 = vmatpush1.msra.mxu0 0.0
  %1702 = vmatprep.subr.mxu0 0.0
  %1703 = vmatpush1.msra.mxu0 0.0
  %1704 = vmatprep.subr.mxu0 0.0
  %1705 = vmatpush1.msra.mxu0 0.0
  %1706 = vmatprep.subr.mxu0 0.0
  %1707 = vmatpush1.msra.mxu0 0.0
  %1708 = vmatprep.mubr.f32.mxu0 0.0
  %1709 = vmatmul.mubr.f32.gmra.mrb[0].mxu0 %v1633
  %v1710 = vpop.f32.mrb[0].mxu0
  %v1711 = vadd.f32 %v1614, %v1710
  %v1712 = vpop.f32.mrb[0].mxu0
  %1713 = vmatprep.mubr.f32.mxu0 0.0
  %1714 = vmatmul.mubr.f32.gmra.mrb[0].mxu0 %v1636
  %v1715 = vpop.f32.mrb[0].mxu0
  %v1716 = vadd.f32 %v1619, %v1715
  %v1717 = vpop.f32.mrb[0].mxu0
  %1718 = vmatprep.mubr.f32.mxu0 0.0
  %1719 = vmatmul.mubr.f32.gmra.mrb[0].mxu0 %v1639
  %v1720 = vpop.f32.mrb[0].mxu0
  %v1721 = vadd.f32 %v1624, %v1720
  %v1722 = vpop.f32.mrb[0].mxu0
  %1723 = vmatprep.mubr.f32.mxu0 0.0
  %1724 = vmatmul.mubr.f32.gmra.mrb[0].mxu0 %v1642
  %v1725 = vpop.f32.mrb[0].mxu0
  %v1726 = vadd.f32 %v1629, %v1725
  %v1727 = vpop.f32.mrb[0].mxu0
  %1728 = vdwg.mxu0
  %v1729 = vmul.f32 %v1711, 0.5
  %v1730 = vmul.f32 %v1716, 0.5
  %v1731 = vmul.f32 %v1721, 0.5
  %v1732 = vmul.f32 %v1726, 0.5
  %vm1733 = vcmask 130048
  %v1735 = vsel %vm1733, %v59, 0
  %v1738 = vsel %vm1733, %v1729, 0
  %v1741 = vsel %vm1733, %v1730, 0
  %v1744 = vsel %vm1733, %v1731, 0
  %v1747 = vsel %vm1733, %v1732, 0
  %1749 = vmatprep.subr.mxu0 0.0
  %1750 = vmatpush1.xpose.msra.mxu0 %v1738
  %1751 = vmatprep.subr.mxu0 0.0
  %1752 = vmatpush1.xpose.msra.mxu0 %v1741
  %1753 = vmatprep.subr.mxu0 0.0
  %1754 = vmatpush1.xpose.msra.mxu0 %v1744
  %1755 = vmatprep.subr.mxu0 0.0
  %1756 = vmatpush1.xpose.msra.mxu0 %v1747
  %1757 = vmatprep.subr.mxu0 0.0
  %1758 = vmatpush1.xpose.msra.mxu0 0.0
  %1759 = vmatprep.subr.mxu0 0.0
  %1760 = vmatpush1.xpose.msra.mxu0 0.0
  %1761 = vmatprep.subr.mxu0 0.0
  %1762 = vmatpush1.xpose.msra.mxu0 0.0
  %1763 = vmatprep.subr.mxu0 0.0
  %1764 = vmatpush1.xpose.msra.mxu0 0.0
  %1765 = vmatprep.subr.mxu0 0.0
  %1766 = vmatpush1.xpose.msra.mxu0 0.0
  %1767 = vmatprep.subr.mxu0 0.0
  %1768 = vmatpush1.xpose.msra.mxu0 0.0
  %1769 = vmatprep.subr.mxu0 0.0
  %1770 = vmatpush1.xpose.msra.mxu0 0.0
  %1771 = vmatprep.subr.mxu0 0.0
  %1772 = vmatpush1.xpose.msra.mxu0 0.0
  %1773 = vmatprep.subr.mxu0 0.0
  %1774 = vmatpush1.xpose.msra.mxu0 0.0
  %1775 = vmatprep.subr.mxu0 0.0
  %1776 = vmatpush1.xpose.msra.mxu0 0.0
  %1777 = vmatprep.subr.mxu0 0.0
  %1778 = vmatpush1.xpose.msra.mxu0 0.0
  %1779 = vmatprep.subr.mxu0 0.0
  %1780 = vmatpush1.xpose.msra.mxu0 0.0
  %1781 = vmatprep.subr.mxu0 0.0
  %1782 = vmatpush1.xpose.msra.mxu0 0.0
  %1783 = vmatprep.subr.mxu0 0.0
  %1784 = vmatpush1.xpose.msra.mxu0 0.0
  %1785 = vmatprep.subr.mxu0 0.0
  %1786 = vmatpush1.xpose.msra.mxu0 0.0
  %1787 = vmatprep.subr.mxu0 0.0
  %1788 = vmatpush1.xpose.msra.mxu0 0.0
  %1789 = vmatprep.subr.mxu0 0.0
  %1790 = vmatpush1.xpose.msra.mxu0 0.0
  %1791 = vmatprep.subr.mxu0 0.0
  %1792 = vmatpush1.xpose.msra.mxu0 0.0
  %1793 = vmatprep.subr.mxu0 0.0
  %1794 = vmatpush1.xpose.msra.mxu0 0.0
  %1795 = vmatprep.subr.mxu0 0.0
  %1796 = vmatpush1.xpose.msra.mxu0 0.0
  %1797 = vmatprep.subr.mxu0 0.0
  %1798 = vmatpush1.xpose.msra.mxu0 0.0
  %1799 = vmatprep.subr.mxu0 0.0
  %1800 = vmatpush1.xpose.msra.mxu0 0.0
  %1801 = vmatprep.subr.mxu0 0.0
  %1802 = vmatpush1.xpose.msra.mxu0 0.0
  %1803 = vmatprep.subr.mxu0 0.0
  %1804 = vmatpush1.xpose.msra.mxu0 0.0
  %1805 = vmatprep.subr.mxu0 0.0
  %1806 = vmatpush1.xpose.msra.mxu0 0.0
  %1807 = vmatprep.subr.mxu0 0.0
  %1808 = vmatpush1.xpose.msra.mxu0 0.0
  %1809 = vmatprep.subr.mxu0 0.0
  %1810 = vmatpush1.xpose.msra.mxu0 0.0
  %1811 = vmatprep.subr.mxu0 0.0
  %1812 = vmatpush1.xpose.msra.mxu0 0.0
  %1813 = vmatprep.mubr.f32.mxu0 0.0
  %1814 = vmatmul.mubr.f32.gmra.mrb[0].mxu0 %v1735
  %v1815 = vpop.f32.mrb[0].mxu0
  %v1816 = vadd.f32 0.0, %v1815
  %v1817 = vpop.f32.mrb[0].mxu0
  %1818 = vdwg.mxu0
  %v1819 = vsel %vm1282, %v1816, -1e+30
  %v1820 = vlaneseq
  %v1821 = vshrl.u32 %v1820, 7
  %v1822 = vsub.s32 0, %v1821
  %v1823 = vrot.slane %v1819, %v1822
  %1824 = vxpose.xlu0.b32.start [1/16] %v1823, 128
  %1825 = vxpose.xlu0.b32.cont [2/16] %v1823, 128
  %1826 = vxpose.xlu0.b32.cont [3/16] %v1823, 128
  %1827 = vxpose.xlu0.b32.cont [4/16] %v1823, 128
  %1828 = vxpose.xlu0.b32.cont [5/16] 0.0, 128
  %1829 = vxpose.xlu0.b32.cont [6/16] 0.0, 128
  %1830 = vxpose.xlu0.b32.cont [7/16] 0.0, 128
  %1831 = vxpose.xlu0.b32.cont [8/16] 0.0, 128
  %1832 = vxpose.xlu0.b32.cont [9/16] 0.0, 128
  %1833 = vxpose.xlu0.b32.cont [10/16] 0.0, 128
  %1834 = vxpose.xlu0.b32.cont [11/16] 0.0, 128
  %1835 = vxpose.xlu0.b32.cont [12/16] 0.0, 128
  %1836 = vxpose.xlu0.b32.cont [13/16] 0.0, 128
  %1837 = vxpose.xlu0.b32.cont [14/16] 0.0, 128
  %1838 = vxpose.xlu0.b32.cont [15/16] 0.0, 128
  %1839 = vxpose.xlu0.b32.end [16/16] 0.0, 128
  %v1840 = vpop.trf.xlu0
  %v1841 = vpop.trf.xlu0
  %v1842 = vpop.trf.xlu0
  %v1843 = vpop.trf.xlu0
  %v1844 = vpop.trf.xlu0
  %v1845 = vpop.trf.xlu0
  %v1846 = vpop.trf.xlu0
  %v1847 = vpop.trf.xlu0
  %v1848 = vpop.trf.xlu0
  %v1849 = vpop.trf.xlu0
  %v1850 = vpop.trf.xlu0
  %v1851 = vpop.trf.xlu0
  %v1852 = vpop.trf.xlu0
  %v1853 = vpop.trf.xlu0
  %v1854 = vpop.trf.xlu0
  %v1855 = vpop.trf.xlu0
  %vm1856 = vcmp.gt.f32.partialorder %v1840, %v1823
  %vm1857 = vcmp.gt.f32.partialorder %v1841, %v1823
  %vm1858 = vcmp.gt.f32.partialorder %v1842, %v1823
  %vm1859 = vcmp.gt.f32.partialorder %v1843, %v1823
  %vm1860 = vcmp.eq.f32.partialorder %v1840, %v1823
  %vm1861 = vcmp.eq.f32.partialorder %v1841, %v1823
  %vm1862 = vcmp.eq.f32.partialorder %v1842, %v1823
  %vm1863 = vcmp.eq.f32.partialorder %v1843, %v1823
  %vm1864 = vmand %vm1860, %vm1189
  %vm1865 = vmand %vm1861, %vm1190
  %vm1866 = vmand %vm1862, %vm1191
  %vm1867 = vmand %vm1863, %vm1192
  %vm1868 = vmor %vm1856, %vm1864
  %vm1869 = vmor %vm1857, %vm1865
  %vm1870 = vmor %vm1858, %vm1866
  %vm1871 = vmor %vm1859, %vm1867
  %v1872 = vsel %vm1868, 1, 0
  %v1873 = vsel %vm1869, 1, 0
  %v1874 = vsel %vm1870, 1, 0
  %v1875 = vsel %vm1871, 1, 0
  %v1876 = vcvt.s32.f32 %v1872
  %v1877 = vcvt.s32.f32 %v1873
  %v1878 = vcvt.s32.f32 %v1874
  %v1879 = vcvt.s32.f32 %v1875
  %1880 = vmatprep.subr.mxu0 0.0
  %1881 = vmatpush1.msra.mxu0 %v1876
  %1882 = vmatprep.subr.mxu0 0.0
  %1883 = vmatpush1.msra.mxu0 %v1877
  %1884 = vmatprep.subr.mxu0 0.0
  %1885 = vmatpush1.msra.mxu0 %v1878
  %1886 = vmatprep.subr.mxu0 0.0
  %1887 = vmatpush1.msra.mxu0 %v1879
  %1888 = vmatprep.subr.mxu0 0.0
  %1889 = vmatpush1.msra.mxu0 0.0
  %1890 = vmatprep.subr.mxu0 0.0
  %1891 = vmatpush1.msra.mxu0 0.0
  %1892 = vmatprep.subr.mxu0 0.0
  %1893 = vmatpush1.msra.mxu0 0.0
  %1894 = vmatprep.subr.mxu0 0.0
  %1895 = vmatpush1.msra.mxu0 0.0
  %1896 = vmatprep.subr.mxu0 0.0
  %1897 = vmatpush1.msra.mxu0 0.0
  %1898 = vmatprep.subr.mxu0 0.0
  %1899 = vmatpush1.msra.mxu0 0.0
  %1900 = vmatprep.subr.mxu0 0.0
  %1901 = vmatpush1.msra.mxu0 0.0
  %1902 = vmatprep.subr.mxu0 0.0
  %1903 = vmatpush1.msra.mxu0 0.0
  %1904 = vmatprep.subr.mxu0 0.0
  %1905 = vmatpush1.msra.mxu0 0.0
  %1906 = vmatprep.subr.mxu0 0.0
  %1907 = vmatpush1.msra.mxu0 0.0
  %1908 = vmatprep.subr.mxu0 0.0
  %1909 = vmatpush1.msra.mxu0 0.0
  %1910 = vmatprep.subr.mxu0 0.0
  %1911 = vmatpush1.msra.mxu0 0.0
  %1912 = vmatprep.subr.mxu0 0.0
  %1913 = vmatpush1.msra.mxu0 0.0
  %1914 = vmatprep.subr.mxu0 0.0
  %1915 = vmatpush1.msra.mxu0 0.0
  %1916 = vmatprep.subr.mxu0 0.0
  %1917 = vmatpush1.msra.mxu0 0.0
  %1918 = vmatprep.subr.mxu0 0.0
  %1919 = vmatpush1.msra.mxu0 0.0
  %1920 = vmatprep.subr.mxu0 0.0
  %1921 = vmatpush1.msra.mxu0 0.0
  %1922 = vmatprep.subr.mxu0 0.0
  %1923 = vmatpush1.msra.mxu0 0.0
  %1924 = vmatprep.subr.mxu0 0.0
  %1925 = vmatpush1.msra.mxu0 0.0
  %1926 = vmatprep.subr.mxu0 0.0
  %1927 = vmatpush1.msra.mxu0 0.0
  %1928 = vmatprep.subr.mxu0 0.0
  %1929 = vmatpush1.msra.mxu0 0.0
  %1930 = vmatprep.subr.mxu0 0.0
  %1931 = vmatpush1.msra.mxu0 0.0
  %1932 = vmatprep.subr.mxu0 0.0
  %1933 = vmatpush1.msra.mxu0 0.0
  %1934 = vmatprep.subr.mxu0 0.0
  %1935 = vmatpush1.msra.mxu0 0.0
  %1936 = vmatprep.subr.mxu0 0.0
  %1937 = vmatpush1.msra.mxu0 0.0
  %1938 = vmatprep.subr.mxu0 0.0
  %1939 = vmatpush1.msra.mxu0 0.0
  %1940 = vmatprep.subr.mxu0 0.0
  %1941 = vmatpush1.msra.mxu0 0.0
  %1942 = vmatprep.subr.mxu0 0.0
  %1943 = vmatpush1.msra.mxu0 0.0
  %1944 = vmatprep.mubr.f32.mxu0 0.0
  %1945 = vmatmul.mubr.f32.gmra.mrb[0].mxu0 %v1210
  %v1946 = vpop.f32.mrb[0].mxu0
  %v1947 = vadd.f32 0.0, %v1946
  %v1948 = vpop.f32.mrb[0].mxu0
  %1949 = vdwg.mxu0
  %vm1950 = vcmp.lt.f32.partialorder %v1947, 10.0
  %v1951 = vsel %vm1950, 1, 0
  %v1952 = vcvt.s32.f32 %v1951
  %1953 = vrot.lane.b32.xlu0 %v40, 96
  %v1954 = vpop.permute.xlu0 %1953
  %1955 = vrot.lane.b32.xlu0 %v41, 96
  %v1956 = vpop.permute.xlu0 %1955
  %1957 = vrot.lane.b32.xlu0 %v42, 96
  %v1958 = vpop.permute.xlu0 %1957
  %1959 = vrot.lane.b32.xlu0 %v43, 96
  %v1960 = vpop.permute.xlu0 %1959
  %v1966 = vsel %vm114, %v1284, 0
  %1968 = vmatprep.subr.mxu0 0.0
  %1969 = vmatpush1.msra.mxu0 %v1954
  %1970 = vmatprep.subr.mxu0 0.0
  %1971 = vmatpush1.msra.mxu0 %v1956
  %1972 = vmatprep.subr.mxu0 0.0
  %1973 = vmatpush1.msra.mxu0 %v1958
  %1974 = vmatprep.subr.mxu0 0.0
  %1975 = vmatpush1.msra.mxu0 %v1960
  %1976 = vmatprep.subr.mxu0 0.0
  %1977 = vmatpush1.msra.mxu0 0.0
  %1978 = vmatprep.subr.mxu0 0.0
  %1979 = vmatpush1.msra.mxu0 0.0
  %1980 = vmatprep.subr.mxu0 0.0
  %1981 = vmatpush1.msra.mxu0 0.0
  %1982 = vmatprep.subr.mxu0 0.0
  %1983 = vmatpush1.msra.mxu0 0.0
  %1984 = vmatprep.subr.mxu0 0.0
  %1985 = vmatpush1.msra.mxu0 0.0
  %1986 = vmatprep.subr.mxu0 0.0
  %1987 = vmatpush1.msra.mxu0 0.0
  %1988 = vmatprep.subr.mxu0 0.0
  %1989 = vmatpush1.msra.mxu0 0.0
  %1990 = vmatprep.subr.mxu0 0.0
  %1991 = vmatpush1.msra.mxu0 0.0
  %1992 = vmatprep.subr.mxu0 0.0
  %1993 = vmatpush1.msra.mxu0 0.0
  %1994 = vmatprep.subr.mxu0 0.0
  %1995 = vmatpush1.msra.mxu0 0.0
  %1996 = vmatprep.subr.mxu0 0.0
  %1997 = vmatpush1.msra.mxu0 0.0
  %1998 = vmatprep.subr.mxu0 0.0
  %1999 = vmatpush1.msra.mxu0 0.0
  %2000 = vmatprep.subr.mxu0 0.0
  %2001 = vmatpush1.msra.mxu0 0.0
  %2002 = vmatprep.subr.mxu0 0.0
  %2003 = vmatpush1.msra.mxu0 0.0
  %2004 = vmatprep.subr.mxu0 0.0
  %2005 = vmatpush1.msra.mxu0 0.0
  %2006 = vmatprep.subr.mxu0 0.0
  %2007 = vmatpush1.msra.mxu0 0.0
  %2008 = vmatprep.subr.mxu0 0.0
  %2009 = vmatpush1.msra.mxu0 0.0
  %2010 = vmatprep.subr.mxu0 0.0
  %2011 = vmatpush1.msra.mxu0 0.0
  %2012 = vmatprep.subr.mxu0 0.0
  %2013 = vmatpush1.msra.mxu0 0.0
  %2014 = vmatprep.subr.mxu0 0.0
  %2015 = vmatpush1.msra.mxu0 0.0
  %2016 = vmatprep.subr.mxu0 0.0
  %2017 = vmatpush1.msra.mxu0 0.0
  %2018 = vmatprep.subr.mxu0 0.0
  %2019 = vmatpush1.msra.mxu0 0.0
  %2020 = vmatprep.subr.mxu0 0.0
  %2021 = vmatpush1.msra.mxu0 0.0
  %2022 = vmatprep.subr.mxu0 0.0
  %2023 = vmatpush1.msra.mxu0 0.0
  %2024 = vmatprep.subr.mxu0 0.0
  %2025 = vmatpush1.msra.mxu0 0.0
  %2026 = vmatprep.subr.mxu0 0.0
  %2027 = vmatpush1.msra.mxu0 0.0
  %2028 = vmatprep.subr.mxu0 0.0
  %2029 = vmatpush1.msra.mxu0 0.0
  %2030 = vmatprep.subr.mxu0 0.0
  %2031 = vmatpush1.msra.mxu0 0.0
  %2032 = vmatprep.mubr.f32.mxu0 0.0
  %2033 = vmatmul.mubr.f32.gmra.mrb[0].mxu0 %v1966
  %v2034 = vpop.f32.mrb[0].mxu0
  %v2035 = vadd.f32 0.0, %v2034
  %v2036 = vpop.f32.mrb[0].mxu0
  %2037 = vdwg.mxu0
  %v2038 = vsub.f32 %v2035, 1.0
  %v2040 = vsel %vm114, %v1952, 0
  %2042 = vmatprep.subr.mxu0 0.0
  %2043 = vmatpush1.msra.mxu0 %v1954
  %2044 = vmatprep.subr.mxu0 0.0
  %2045 = vmatpush1.msra.mxu0 %v1956
  %2046 = vmatprep.subr.mxu0 0.0
  %2047 = vmatpush1.msra.mxu0 %v1958
  %2048 = vmatprep.subr.mxu0 0.0
  %2049 = vmatpush1.msra.mxu0 %v1960
  %2050 = vmatprep.subr.mxu0 0.0
  %2051 = vmatpush1.msra.mxu0 0.0
  %2052 = vmatprep.subr.mxu0 0.0
  %2053 = vmatpush1.msra.mxu0 0.0
  %2054 = vmatprep.subr.mxu0 0.0
  %2055 = vmatpush1.msra.mxu0 0.0
  %2056 = vmatprep.subr.mxu0 0.0
  %2057 = vmatpush1.msra.mxu0 0.0
  %2058 = vmatprep.subr.mxu0 0.0
  %2059 = vmatpush1.msra.mxu0 0.0
  %2060 = vmatprep.subr.mxu0 0.0
  %2061 = vmatpush1.msra.mxu0 0.0
  %2062 = vmatprep.subr.mxu0 0.0
  %2063 = vmatpush1.msra.mxu0 0.0
  %2064 = vmatprep.subr.mxu0 0.0
  %2065 = vmatpush1.msra.mxu0 0.0
  %2066 = vmatprep.subr.mxu0 0.0
  %2067 = vmatpush1.msra.mxu0 0.0
  %2068 = vmatprep.subr.mxu0 0.0
  %2069 = vmatpush1.msra.mxu0 0.0
  %2070 = vmatprep.subr.mxu0 0.0
  %2071 = vmatpush1.msra.mxu0 0.0
  %2072 = vmatprep.subr.mxu0 0.0
  %2073 = vmatpush1.msra.mxu0 0.0
  %2074 = vmatprep.subr.mxu0 0.0
  %2075 = vmatpush1.msra.mxu0 0.0
  %2076 = vmatprep.subr.mxu0 0.0
  %2077 = vmatpush1.msra.mxu0 0.0
  %2078 = vmatprep.subr.mxu0 0.0
  %2079 = vmatpush1.msra.mxu0 0.0
  %2080 = vmatprep.subr.mxu0 0.0
  %2081 = vmatpush1.msra.mxu0 0.0
  %2082 = vmatprep.subr.mxu0 0.0
  %2083 = vmatpush1.msra.mxu0 0.0
  %2084 = vmatprep.subr.mxu0 0.0
  %2085 = vmatpush1.msra.mxu0 0.0
  %2086 = vmatprep.subr.mxu0 0.0
  %2087 = vmatpush1.msra.mxu0 0.0
  %2088 = vmatprep.subr.mxu0 0.0
  %2089 = vmatpush1.msra.mxu0 0.0
  %2090 = vmatprep.subr.mxu0 0.0
  %2091 = vmatpush1.msra.mxu0 0.0
  %2092 = vmatprep.subr.mxu0 0.0
  %2093 = vmatpush1.msra.mxu0 0.0
  %2094 = vmatprep.subr.mxu0 0.0
  %2095 = vmatpush1.msra.mxu0 0.0
  %2096 = vmatprep.subr.mxu0 0.0
  %2097 = vmatpush1.msra.mxu0 0.0
  %2098 = vmatprep.subr.mxu0 0.0
  %2099 = vmatpush1.msra.mxu0 0.0
  %2100 = vmatprep.subr.mxu0 0.0
  %2101 = vmatpush1.msra.mxu0 0.0
  %2102 = vmatprep.subr.mxu0 0.0
  %2103 = vmatpush1.msra.mxu0 0.0
  %2104 = vmatprep.subr.mxu0 0.0
  %2105 = vmatpush1.msra.mxu0 0.0
  %2106 = vmatprep.mubr.f32.mxu0 0.0
  %2107 = vmatmul.mubr.f32.gmra.mrb[0].mxu0 %v2040
  %v2108 = vpop.f32.mrb[0].mxu0
  %v2109 = vadd.f32 0.0, %v2108
  %v2110 = vpop.f32.mrb[0].mxu0
  %2111 = vdwg.mxu0
  %v2112 = vsub.f32 %v2109, 1.0
  %v2113 = vcvt.s32.f32 %v1053
  %v2114 = vcvt.s32.f32 %v1054
  %v2115 = vlaneseq
  %v2116 = vshrl.u32 %v2115, 7
  %v2117 = vsub.s32 0, %v2116
  %v2118 = vrot.slane %v2112, %v2117
  %vm2119 = vcmp.eq.f32.partialorder %v2113, %v2118
  %vm2120 = vcmp.eq.f32.partialorder %v2114, %v2118
  %v2121 = vlaneseq
  %v2122 = vshrl.u32 %v2121, 7
  %v2123 = vsub.s32 0, %v2122
  %v2124 = vrot.slane %v1951, %v2123
  %vm2125 = vcmp.eq.s32.totalorder %v2124, 1
  %vm2126 = vmand %vm2119, %vm2125
  %vm2127 = vmand %vm2120, %vm2125
  %v2128 = vsel %vm2126, 1.0, 0.0
  %v2129 = vsel %vm2127, 1.0, 0.0
  %v2131 = vsel %vm114, %v2038, 0
  %v2134 = vsel %vm114, %v2128, 0
  %v2137 = vsel %vm114, %v2129, 0
  %2139 = vmatprep.subr.mxu0 0.0
  %2140 = vmatpush1.xpose.msra.mxu0 %v2134
  %2141 = vmatprep.subr.mxu0 0.0
  %2142 = vmatpush1.xpose.msra.mxu0 %v2137
  %2143 = vmatprep.subr.mxu0 0.0
  %2144 = vmatpush1.xpose.msra.mxu0 0.0
  %2145 = vmatprep.subr.mxu0 0.0
  %2146 = vmatpush1.xpose.msra.mxu0 0.0
  %2147 = vmatprep.subr.mxu0 0.0
  %2148 = vmatpush1.xpose.msra.mxu0 0.0
  %2149 = vmatprep.subr.mxu0 0.0
  %2150 = vmatpush1.xpose.msra.mxu0 0.0
  %2151 = vmatprep.subr.mxu0 0.0
  %2152 = vmatpush1.xpose.msra.mxu0 0.0
  %2153 = vmatprep.subr.mxu0 0.0
  %2154 = vmatpush1.xpose.msra.mxu0 0.0
  %2155 = vmatprep.subr.mxu0 0.0
  %2156 = vmatpush1.xpose.msra.mxu0 0.0
  %2157 = vmatprep.subr.mxu0 0.0
  %2158 = vmatpush1.xpose.msra.mxu0 0.0
  %2159 = vmatprep.subr.mxu0 0.0
  %2160 = vmatpush1.xpose.msra.mxu0 0.0
  %2161 = vmatprep.subr.mxu0 0.0
  %2162 = vmatpush1.xpose.msra.mxu0 0.0
  %2163 = vmatprep.subr.mxu0 0.0
  %2164 = vmatpush1.xpose.msra.mxu0 0.0
  %2165 = vmatprep.subr.mxu0 0.0
  %2166 = vmatpush1.xpose.msra.mxu0 0.0
  %2167 = vmatprep.subr.mxu0 0.0
  %2168 = vmatpush1.xpose.msra.mxu0 0.0
  %2169 = vmatprep.subr.mxu0 0.0
  %2170 = vmatpush1.xpose.msra.mxu0 0.0
  %2171 = vmatprep.subr.mxu0 0.0
  %2172 = vmatpush1.xpose.msra.mxu0 0.0
  %2173 = vmatprep.subr.mxu0 0.0
  %2174 = vmatpush1.xpose.msra.mxu0 0.0
  %2175 = vmatprep.subr.mxu0 0.0
  %2176 = vmatpush1.xpose.msra.mxu0 0.0
  %2177 = vmatprep.subr.mxu0 0.0
  %2178 = vmatpush1.xpose.msra.mxu0 0.0
  %2179 = vmatprep.subr.mxu0 0.0
  %2180 = vmatpush1.xpose.msra.mxu0 0.0
  %2181 = vmatprep.subr.mxu0 0.0
  %2182 = vmatpush1.xpose.msra.mxu0 0.0
  %2183 = vmatprep.subr.mxu0 0.0
  %2184 = vmatpush1.xpose.msra.mxu0 0.0
  %2185 = vmatprep.subr.mxu0 0.0
  %2186 = vmatpush1.xpose.msra.mxu0 0.0
  %2187 = vmatprep.subr.mxu0 0.0
  %2188 = vmatpush1.xpose.msra.mxu0 0.0
  %2189 = vmatprep.subr.mxu0 0.0
  %2190 = vmatpush1.xpose.msra.mxu0 0.0
  %2191 = vmatprep.subr.mxu0 0.0
  %2192 = vmatpush1.xpose.msra.mxu0 0.0
  %2193 = vmatprep.subr.mxu0 0.0
  %2194 = vmatpush1.xpose.msra.mxu0 0.0
  %2195 = vmatprep.subr.mxu0 0.0
  %2196 = vmatpush1.xpose.msra.mxu0 0.0
  %2197 = vmatprep.subr.mxu0 0.0
  %2198 = vmatpush1.xpose.msra.mxu0 0.0
  %2199 = vmatprep.subr.mxu0 0.0
  %2200 = vmatpush1.xpose.msra.mxu0 0.0
  %2201 = vmatprep.subr.mxu0 0.0
  %2202 = vmatpush1.xpose.msra.mxu0 0.0
  %2203 = vmatprep.mubr.f32.mxu0 0.0
  %2204 = vmatmul.mubr.f32.gmra.mrb[0].mxu0 %v2131
  %v2205 = vpop.f32.mrb[0].mxu0
  %v2206 = vadd.f32 0.0, %v2205
  %v2207 = vpop.f32.mrb[0].mxu0
  %2208 = vdwg.mxu0
  %2209 = vmatprep.subr.mxu0 0.0
  %2210 = vmatpush1.msra.mxu0 %v1729
  %2211 = vmatprep.subr.mxu0 0.0
  %2212 = vmatpush1.msra.mxu0 %v1730
  %2213 = vmatprep.subr.mxu0 0.0
  %2214 = vmatpush1.msra.mxu0 %v1731
  %2215 = vmatprep.subr.mxu0 0.0
  %2216 = vmatpush1.msra.mxu0 %v1732
  %2217 = vmatprep.subr.mxu0 0.0
  %2218 = vmatpush1.msra.mxu0 0.0
  %2219 = vmatprep.subr.mxu0 0.0
  %2220 = vmatpush1.msra.mxu0 0.0
  %2221 = vmatprep.subr.mxu0 0.0
  %2222 = vmatpush1.msra.mxu0 0.0
  %2223 = vmatprep.subr.mxu0 0.0
  %2224 = vmatpush1.msra.mxu0 0.0
  %2225 = vmatprep.subr.mxu0 0.0
  %2226 = vmatpush1.msra.mxu0 0.0
  %2227 = vmatprep.subr.mxu0 0.0
  %2228 = vmatpush1.msra.mxu0 0.0
  %2229 = vmatprep.subr.mxu0 0.0
  %2230 = vmatpush1.msra.mxu0 0.0
  %2231 = vmatprep.subr.mxu0 0.0
  %2232 = vmatpush1.msra.mxu0 0.0
  %2233 = vmatprep.subr.mxu0 0.0
  %2234 = vmatpush1.msra.mxu0 0.0
  %2235 = vmatprep.subr.mxu0 0.0
  %2236 = vmatpush1.msra.mxu0 0.0
  %2237 = vmatprep.subr.mxu0 0.0
  %2238 = vmatpush1.msra.mxu0 0.0
  %2239 = vmatprep.subr.mxu0 0.0
  %2240 = vmatpush1.msra.mxu0 0.0
  %2241 = vmatprep.subr.mxu0 0.0
  %2242 = vmatpush1.msra.mxu0 0.0
  %2243 = vmatprep.subr.mxu0 0.0
  %2244 = vmatpush1.msra.mxu0 0.0
  %2245 = vmatprep.subr.mxu0 0.0
  %2246 = vmatpush1.msra.mxu0 0.0
  %2247 = vmatprep.subr.mxu0 0.0
  %2248 = vmatpush1.msra.mxu0 0.0
  %2249 = vmatprep.subr.mxu0 0.0
  %2250 = vmatpush1.msra.mxu0 0.0
  %2251 = vmatprep.subr.mxu0 0.0
  %2252 = vmatpush1.msra.mxu0 0.0
  %2253 = vmatprep.subr.mxu0 0.0
  %2254 = vmatpush1.msra.mxu0 0.0
  %2255 = vmatprep.subr.mxu0 0.0
  %2256 = vmatpush1.msra.mxu0 0.0
  %2257 = vmatprep.subr.mxu0 0.0
  %2258 = vmatpush1.msra.mxu0 0.0
  %2259 = vmatprep.subr.mxu0 0.0
  %2260 = vmatpush1.msra.mxu0 0.0
  %2261 = vmatprep.subr.mxu0 0.0
  %2262 = vmatpush1.msra.mxu0 0.0
  %2263 = vmatprep.subr.mxu0 0.0
  %2264 = vmatpush1.msra.mxu0 0.0
  %2265 = vmatprep.subr.mxu0 0.0
  %2266 = vmatpush1.msra.mxu0 0.0
  %2267 = vmatprep.subr.mxu0 0.0
  %2268 = vmatpush1.msra.mxu0 0.0
  %2269 = vmatprep.subr.mxu0 0.0
  %2270 = vmatpush1.msra.mxu0 0.0
  %2271 = vmatprep.subr.mxu0 0.0
  %2272 = vmatpush1.msra.mxu0 0.0
  %2273 = vmatprep.mubr.f32.mxu0 0.0
  %2274 = vmatmul.mubr.f32.gmra.mrb[0].mxu0 %v2134
  %v2275 = vpop.f32.mrb[0].mxu0
  %v2276 = vadd.f32 0.0, %v2275
  %v2277 = vpop.f32.mrb[0].mxu0
  %2278 = vmatprep.mubr.f32.mxu0 0.0
  %2279 = vmatmul.mubr.f32.gmra.mrb[0].mxu0 %v2137
  %v2280 = vpop.f32.mrb[0].mxu0
  %v2281 = vadd.f32 0.0, %v2280
  %v2282 = vpop.f32.mrb[0].mxu0
  %2283 = vdwg.mxu0
  %v2284 = vsel %vm114, %v578, 0.0
  %v2285 = vsel %vm114, %v583, 0.0
  %v2286 = vsel %vm114, %v588, 0.0
  %v2287 = vsel %vm114, %v593, 0.0
  %2288 = vst [vmem:[%s5] sm:$0xff] %v2284
  %2289 = vst [vmem:[%s5 + $0x8] sm:$0xff] %v2285
  %2290 = vst [vmem:[%s5 + $0x10] sm:$0xff] %v2286
  %2291 = vst [vmem:[%s5 + $0x18] sm:$0xff] %v2287
  %2293 = vrot.lane.b32.xlu0 %v2206, 32
  %v2294 = vpop.permute.xlu0 %2293
  %v2296 = vsel %vm114, %v1284, %v2294
  %vm2297 = vcmask 343040
  %v2298 = vsel %vm2297, %v2296, 0.0
  %2299 = vst [vmem:[%s5 + $0x20] sm:$0x1] %v2298
  %vm2300 = vcmask 64512
  %v2302 = vsel %vm2300, %v2276, 0
  %v2305 = vsel %vm2300, %v2281, 0
  %2307 = vmatprep.subr.mxu0 %v64
  %2308 = vmatpush1.msra.mxu0 %v63
  %2309 = vmatprep.subr.mxu0 0.0
  %2310 = vmatpush1.msra.mxu0 0.0
  %2311 = vmatprep.subr.mxu0 0.0
  %2312 = vmatpush1.msra.mxu0 0.0
  %2313 = vmatprep.subr.mxu0 0.0
  %2314 = vmatpush1.msra.mxu0 0.0
  %2315 = vmatprep.subr.mxu0 0.0
  %2316 = vmatpush1.msra.mxu0 0.0
  %2317 = vmatprep.subr.mxu0 0.0
  %2318 = vmatpush1.msra.mxu0 0.0
  %2319 = vmatprep.subr.mxu0 0.0
  %2320 = vmatpush1.msra.mxu0 0.0
  %2321 = vmatprep.subr.mxu0 0.0
  %2322 = vmatpush1.msra.mxu0 0.0
  %2323 = vmatprep.subr.mxu0 0.0
  %2324 = vmatpush1.msra.mxu0 0.0
  %2325 = vmatprep.subr.mxu0 0.0
  %2326 = vmatpush1.msra.mxu0 0.0
  %2327 = vmatprep.subr.mxu0 0.0
  %2328 = vmatpush1.msra.mxu0 0.0
  %2329 = vmatprep.subr.mxu0 0.0
  %2330 = vmatpush1.msra.mxu0 0.0
  %2331 = vmatprep.subr.mxu0 0.0
  %2332 = vmatpush1.msra.mxu0 0.0
  %2333 = vmatprep.subr.mxu0 0.0
  %2334 = vmatpush1.msra.mxu0 0.0
  %2335 = vmatprep.subr.mxu0 0.0
  %2336 = vmatpush1.msra.mxu0 0.0
  %2337 = vmatprep.subr.mxu0 0.0
  %2338 = vmatpush1.msra.mxu0 0.0
  %2339 = vmatprep.subr.mxu0 0.0
  %2340 = vmatpush1.msra.mxu0 0.0
  %2341 = vmatprep.subr.mxu0 0.0
  %2342 = vmatpush1.msra.mxu0 0.0
  %2343 = vmatprep.subr.mxu0 0.0
  %2344 = vmatpush1.msra.mxu0 0.0
  %2345 = vmatprep.subr.mxu0 0.0
  %2346 = vmatpush1.msra.mxu0 0.0
  %2347 = vmatprep.subr.mxu0 0.0
  %2348 = vmatpush1.msra.mxu0 0.0
  %2349 = vmatprep.subr.mxu0 0.0
  %2350 = vmatpush1.msra.mxu0 0.0
  %2351 = vmatprep.subr.mxu0 0.0
  %2352 = vmatpush1.msra.mxu0 0.0
  %2353 = vmatprep.subr.mxu0 0.0
  %2354 = vmatpush1.msra.mxu0 0.0
  %2355 = vmatprep.subr.mxu0 0.0
  %2356 = vmatpush1.msra.mxu0 0.0
  %2357 = vmatprep.subr.mxu0 0.0
  %2358 = vmatpush1.msra.mxu0 0.0
  %2359 = vmatprep.subr.mxu0 0.0
  %2360 = vmatpush1.msra.mxu0 0.0
  %2361 = vmatprep.subr.mxu0 0.0
  %2362 = vmatpush1.msra.mxu0 0.0
  %2363 = vmatprep.subr.mxu0 0.0
  %2364 = vmatpush1.msra.mxu0 0.0
  %2365 = vmatprep.subr.mxu0 0.0
  %2366 = vmatpush1.msra.mxu0 0.0
  %2367 = vmatprep.subr.mxu0 0.0
  %2368 = vmatpush1.msra.mxu0 0.0
  %2369 = vmatprep.subr.mxu0 0.0
  %2370 = vmatpush1.msra.mxu0 0.0
  %2371 = vmatprep.mubr.f32.mxu0 0.0
  %2372 = vmatmul.mubr.f32.gmra.mrb[0].mxu0 %v2302
  %v2373 = vpop.f32.mrb[0].mxu0
  %v2374 = vadd.f32 0.0, %v2373
  %v2375 = vpop.f32.mrb[0].mxu0
  %v2376 = vadd.f32 0.0, %v2375
  %2377 = vmatprep.mubr.f32.mxu0 0.0
  %2378 = vmatmul.mubr.f32.gmra.mrb[0].mxu0 %v2305
  %v2379 = vpop.f32.mrb[0].mxu0
  %v2380 = vadd.f32 0.0, %v2379
  %v2381 = vpop.f32.mrb[0].mxu0
  %v2382 = vadd.f32 0.0, %v2381
  %2383 = vdwg.mxu0
  %v2384 = vmul.f32 %v2374, %v65
  %v2385 = vmul.f32 %v2376, %v66
  %v2386 = vmul.f32 %v2380, %v67
  %v2387 = vmul.f32 %v2382, %v68
  %vm2388 = vcmask 80896
  %v2389 = vsel %vm2388, 1.0, 0
  %vm2391 = vcmask 1041408
  %v2393 = vsel %vm2391, %v2386, 0
  %v2396 = vsel %vm2391, %v2387, 0
  %2398 = vmatprep.subr.mxu0 %v2385
  %2399 = vmatpush1.msra.mxu0 %v2384
  %2400 = vmatprep.subr.mxu0 %v2396
  %2401 = vmatpush1.msra.mxu0 %v2393
  %2402 = vmatprep.subr.mxu0 0.0
  %2403 = vmatpush1.msra.mxu0 0.0
  %2404 = vmatprep.subr.mxu0 0.0
  %2405 = vmatpush1.msra.mxu0 0.0
  %2406 = vmatprep.subr.mxu0 0.0
  %2407 = vmatpush1.msra.mxu0 0.0
  %2408 = vmatprep.subr.mxu0 0.0
  %2409 = vmatpush1.msra.mxu0 0.0
  %2410 = vmatprep.subr.mxu0 0.0
  %2411 = vmatpush1.msra.mxu0 0.0
  %2412 = vmatprep.subr.mxu0 0.0
  %2413 = vmatpush1.msra.mxu0 0.0
  %2414 = vmatprep.subr.mxu0 0.0
  %2415 = vmatpush1.msra.mxu0 0.0
  %2416 = vmatprep.subr.mxu0 0.0
  %2417 = vmatpush1.msra.mxu0 0.0
  %2418 = vmatprep.subr.mxu0 0.0
  %2419 = vmatpush1.msra.mxu0 0.0
  %2420 = vmatprep.subr.mxu0 0.0
  %2421 = vmatpush1.msra.mxu0 0.0
  %2422 = vmatprep.subr.mxu0 0.0
  %2423 = vmatpush1.msra.mxu0 0.0
  %2424 = vmatprep.subr.mxu0 0.0
  %2425 = vmatpush1.msra.mxu0 0.0
  %2426 = vmatprep.subr.mxu0 0.0
  %2427 = vmatpush1.msra.mxu0 0.0
  %2428 = vmatprep.subr.mxu0 0.0
  %2429 = vmatpush1.msra.mxu0 0.0
  %2430 = vmatprep.subr.mxu0 0.0
  %2431 = vmatpush1.msra.mxu0 0.0
  %2432 = vmatprep.subr.mxu0 0.0
  %2433 = vmatpush1.msra.mxu0 0.0
  %2434 = vmatprep.subr.mxu0 0.0
  %2435 = vmatpush1.msra.mxu0 0.0
  %2436 = vmatprep.subr.mxu0 0.0
  %2437 = vmatpush1.msra.mxu0 0.0
  %2438 = vmatprep.subr.mxu0 0.0
  %2439 = vmatpush1.msra.mxu0 0.0
  %2440 = vmatprep.subr.mxu0 0.0
  %2441 = vmatpush1.msra.mxu0 0.0
  %2442 = vmatprep.subr.mxu0 0.0
  %2443 = vmatpush1.msra.mxu0 0.0
  %2444 = vmatprep.subr.mxu0 0.0
  %2445 = vmatpush1.msra.mxu0 0.0
  %2446 = vmatprep.subr.mxu0 0.0
  %2447 = vmatpush1.msra.mxu0 0.0
  %2448 = vmatprep.subr.mxu0 0.0
  %2449 = vmatpush1.msra.mxu0 0.0
  %2450 = vmatprep.subr.mxu0 0.0
  %2451 = vmatpush1.msra.mxu0 0.0
  %2452 = vmatprep.subr.mxu0 0.0
  %2453 = vmatpush1.msra.mxu0 0.0
  %2454 = vmatprep.subr.mxu0 0.0
  %2455 = vmatpush1.msra.mxu0 0.0
  %2456 = vmatprep.subr.mxu0 0.0
  %2457 = vmatpush1.msra.mxu0 0.0
  %2458 = vmatprep.subr.mxu0 0.0
  %2459 = vmatpush1.msra.mxu0 0.0
  %2460 = vmatprep.subr.mxu0 0.0
  %2461 = vmatpush1.msra.mxu0 0.0
  %2462 = vmatprep.mubr.f32.mxu0 0.0
  %2463 = vmatmul.mubr.f32.gmra.mrb[0].mxu0 %v2389
  %v2464 = vpop.f32.mrb[0].mxu0
  %v2465 = vadd.f32 0.0, %v2464
  %v2466 = vpop.f32.mrb[0].mxu0
  %v2467 = vadd.f32 0.0, %v2466
  %2468 = vdwg.mxu0
  %v2470 = vsel %vm114, %v2467, 0
  %2472 = vmatprep.subr.mxu0 0.0
  %2473 = vmatpush1.msra.mxu0 %v69
  %2474 = vmatprep.subr.mxu0 0.0
  %2475 = vmatpush1.msra.mxu0 %v70
  %2476 = vmatprep.subr.mxu0 0.0
  %2477 = vmatpush1.msra.mxu0 %v71
  %2478 = vmatprep.subr.mxu0 0.0
  %2479 = vmatpush1.msra.mxu0 %v72
  %2480 = vmatprep.subr.mxu0 0.0
  %2481 = vmatpush1.msra.mxu0 %v73
  %2482 = vmatprep.subr.mxu0 0.0
  %2483 = vmatpush1.msra.mxu0 %v74
  %2484 = vmatprep.subr.mxu0 0.0
  %2485 = vmatpush1.msra.mxu0 %v75
  %2486 = vmatprep.subr.mxu0 0.0
  %2487 = vmatpush1.msra.mxu0 %v76
  %2488 = vmatprep.subr.mxu0 0.0
  %2489 = vmatpush1.msra.mxu0 %v77
  %2490 = vmatprep.subr.mxu0 0.0
  %2491 = vmatpush1.msra.mxu0 %v78
  %2492 = vmatprep.subr.mxu0 0.0
  %2493 = vmatpush1.msra.mxu0 %v79
  %2494 = vmatprep.subr.mxu0 0.0
  %2495 = vmatpush1.msra.mxu0 %v80
  %2496 = vmatprep.subr.mxu0 0.0
  %2497 = vmatpush1.msra.mxu0 %v81
  %2498 = vmatprep.subr.mxu0 0.0
  %2499 = vmatpush1.msra.mxu0 %v82
  %2500 = vmatprep.subr.mxu0 0.0
  %2501 = vmatpush1.msra.mxu0 %v83
  %2502 = vmatprep.subr.mxu0 0.0
  %2503 = vmatpush1.msra.mxu0 %v84
  %2504 = vmatprep.subr.mxu0 0.0
  %2505 = vmatpush1.msra.mxu0 %v85
  %2506 = vmatprep.subr.mxu0 0.0
  %2507 = vmatpush1.msra.mxu0 %v86
  %2508 = vmatprep.subr.mxu0 0.0
  %2509 = vmatpush1.msra.mxu0 %v87
  %2510 = vmatprep.subr.mxu0 0.0
  %2511 = vmatpush1.msra.mxu0 %v88
  %2512 = vmatprep.subr.mxu0 0.0
  %2513 = vmatpush1.msra.mxu0 0.0
  %2514 = vmatprep.subr.mxu0 0.0
  %2515 = vmatpush1.msra.mxu0 0.0
  %2516 = vmatprep.subr.mxu0 0.0
  %2517 = vmatpush1.msra.mxu0 0.0
  %2518 = vmatprep.subr.mxu0 0.0
  %2519 = vmatpush1.msra.mxu0 0.0
  %2520 = vmatprep.subr.mxu0 0.0
  %2521 = vmatpush1.msra.mxu0 0.0
  %2522 = vmatprep.subr.mxu0 0.0
  %2523 = vmatpush1.msra.mxu0 0.0
  %2524 = vmatprep.subr.mxu0 0.0
  %2525 = vmatpush1.msra.mxu0 0.0
  %2526 = vmatprep.subr.mxu0 0.0
  %2527 = vmatpush1.msra.mxu0 0.0
  %2528 = vmatprep.subr.mxu0 0.0
  %2529 = vmatpush1.msra.mxu0 0.0
  %2530 = vmatprep.subr.mxu0 0.0
  %2531 = vmatpush1.msra.mxu0 0.0
  %2532 = vmatprep.subr.mxu0 0.0
  %2533 = vmatpush1.msra.mxu0 0.0
  %2534 = vmatprep.subr.mxu0 0.0
  %2535 = vmatpush1.msra.mxu0 0.0
  %2536 = vmatprep.mubr.f32.mxu0 %v2470
  %2537 = vmatmul.mubr.f32.gmra.mrb[0].mxu0 %v2465
  %v2538 = vpop.f32.mrb[0].mxu0
  %v2539 = vadd.f32 %v61, %v2538
  %v2540 = vpop.f32.mrb[0].mxu0
  %2541 = vdwg.mxu0
  %v2542 = vmax.f32 %v2539, 0.0
  %v2544 = vsel %vm1733, %v2542, 0
  %2546 = vmatprep.subr.mxu0 0.0
  %2547 = vmatpush1.msra.mxu0 %v56
  %2548 = vmatprep.subr.mxu0 0.0
  %2549 = vmatpush1.msra.mxu0 %v57
  %2550 = vmatprep.subr.mxu0 0.0
  %2551 = vmatpush1.msra.mxu0 0.0
  %2552 = vmatprep.subr.mxu0 0.0
  %2553 = vmatpush1.msra.mxu0 0.0
  %2554 = vmatprep.subr.mxu0 0.0
  %2555 = vmatpush1.msra.mxu0 0.0
  %2556 = vmatprep.subr.mxu0 0.0
  %2557 = vmatpush1.msra.mxu0 0.0
  %2558 = vmatprep.subr.mxu0 0.0
  %2559 = vmatpush1.msra.mxu0 0.0
  %2560 = vmatprep.subr.mxu0 0.0
  %2561 = vmatpush1.msra.mxu0 0.0
  %2562 = vmatprep.subr.mxu0 0.0
  %2563 = vmatpush1.msra.mxu0 0.0
  %2564 = vmatprep.subr.mxu0 0.0
  %2565 = vmatpush1.msra.mxu0 0.0
  %2566 = vmatprep.subr.mxu0 0.0
  %2567 = vmatpush1.msra.mxu0 0.0
  %2568 = vmatprep.subr.mxu0 0.0
  %2569 = vmatpush1.msra.mxu0 0.0
  %2570 = vmatprep.subr.mxu0 0.0
  %2571 = vmatpush1.msra.mxu0 0.0
  %2572 = vmatprep.subr.mxu0 0.0
  %2573 = vmatpush1.msra.mxu0 0.0
  %2574 = vmatprep.subr.mxu0 0.0
  %2575 = vmatpush1.msra.mxu0 0.0
  %2576 = vmatprep.subr.mxu0 0.0
  %2577 = vmatpush1.msra.mxu0 0.0
  %2578 = vmatprep.subr.mxu0 0.0
  %2579 = vmatpush1.msra.mxu0 0.0
  %2580 = vmatprep.subr.mxu0 0.0
  %2581 = vmatpush1.msra.mxu0 0.0
  %2582 = vmatprep.subr.mxu0 0.0
  %2583 = vmatpush1.msra.mxu0 0.0
  %2584 = vmatprep.subr.mxu0 0.0
  %2585 = vmatpush1.msra.mxu0 0.0
  %2586 = vmatprep.subr.mxu0 0.0
  %2587 = vmatpush1.msra.mxu0 0.0
  %2588 = vmatprep.subr.mxu0 0.0
  %2589 = vmatpush1.msra.mxu0 0.0
  %2590 = vmatprep.subr.mxu0 0.0
  %2591 = vmatpush1.msra.mxu0 0.0
  %2592 = vmatprep.subr.mxu0 0.0
  %2593 = vmatpush1.msra.mxu0 0.0
  %2594 = vmatprep.subr.mxu0 0.0
  %2595 = vmatpush1.msra.mxu0 0.0
  %2596 = vmatprep.subr.mxu0 0.0
  %2597 = vmatpush1.msra.mxu0 0.0
  %2598 = vmatprep.subr.mxu0 0.0
  %2599 = vmatpush1.msra.mxu0 0.0
  %2600 = vmatprep.subr.mxu0 0.0
  %2601 = vmatpush1.msra.mxu0 0.0
  %2602 = vmatprep.subr.mxu0 0.0
  %2603 = vmatpush1.msra.mxu0 0.0
  %2604 = vmatprep.subr.mxu0 0.0
  %2605 = vmatpush1.msra.mxu0 0.0
  %2606 = vmatprep.subr.mxu0 0.0
  %2607 = vmatpush1.msra.mxu0 0.0
  %2608 = vmatprep.subr.mxu0 0.0
  %2609 = vmatpush1.msra.mxu0 0.0
  %2610 = vmatprep.mubr.f32.mxu0 0.0
  %2611 = vmatmul.mubr.f32.gmra.mrb[0].mxu0 %v2544
  %v2612 = vpop.f32.mrb[0].mxu0
  %v2613 = vadd.f32 %v62, %v2612
  %v2614 = vpop.f32.mrb[0].mxu0
  %2615 = vdwg.mxu0
  %vm2616 = vcmask 8192
  %v2617 = vsel %vm2616, %v2613, -inf
  %2618 = vmax.xlane.f32.xlu0 %v2617
  %v2619 = vpop.xlane.xlu0 %2618
  %v2620 = vsub.f32 %v2613, %v2619
  %v2621 = vmul.f32 %v2620, 1.442695
  %v2622 = vpow.pop %v2621
  %v2623 = vsel %vm2616, %v2622, 0.0
  %2624 = vadd.xlane.f32.xlu0 %v2623
  %v2625 = vpop.xlane.xlu0 %2624
  %v2626 = vrcp.pop %v2625
  %v2627 = vmul.f32 %v2622, %v2626
  %vm2628 = vcmask 15360
  %v2629 = vsel %vm2628, %v2627, 0.0
  %2630 = vst [vmem:[%s5 + $0x21] sm:$0x1] %v2629
  %2631 = vrot.lane.b32.xlu0 %v2276, 120
  %v2632 = vpop.permute.xlu0 %2631
  %2633 = vrot.lane.b32.xlu0 %v2281, 120
  %v2634 = vpop.permute.xlu0 %2633
  %v2635 = vsel %vm2300, %v2632, 0
  %v2637 = vsel %vm2300, %v2634, 0
  %2639 = vmatprep.subr.mxu0 %v64
  %2640 = vmatpush1.msra.mxu0 %v63
  %2641 = vmatprep.subr.mxu0 0.0
  %2642 = vmatpush1.msra.mxu0 0.0
  %2643 = vmatprep.subr.mxu0 0.0
  %2644 = vmatpush1.msra.mxu0 0.0
  %2645 = vmatprep.subr.mxu0 0.0
  %2646 = vmatpush1.msra.mxu0 0.0
  %2647 = vmatprep.subr.mxu0 0.0
  %2648 = vmatpush1.msra.mxu0 0.0
  %2649 = vmatprep.subr.mxu0 0.0
  %2650 = vmatpush1.msra.mxu0 0.0
  %2651 = vmatprep.subr.mxu0 0.0
  %2652 = vmatpush1.msra.mxu0 0.0
  %2653 = vmatprep.subr.mxu0 0.0
  %2654 = vmatpush1.msra.mxu0 0.0
  %2655 = vmatprep.subr.mxu0 0.0
  %2656 = vmatpush1.msra.mxu0 0.0
  %2657 = vmatprep.subr.mxu0 0.0
  %2658 = vmatpush1.msra.mxu0 0.0
  %2659 = vmatprep.subr.mxu0 0.0
  %2660 = vmatpush1.msra.mxu0 0.0
  %2661 = vmatprep.subr.mxu0 0.0
  %2662 = vmatpush1.msra.mxu0 0.0
  %2663 = vmatprep.subr.mxu0 0.0
  %2664 = vmatpush1.msra.mxu0 0.0
  %2665 = vmatprep.subr.mxu0 0.0
  %2666 = vmatpush1.msra.mxu0 0.0
  %2667 = vmatprep.subr.mxu0 0.0
  %2668 = vmatpush1.msra.mxu0 0.0
  %2669 = vmatprep.subr.mxu0 0.0
  %2670 = vmatpush1.msra.mxu0 0.0
  %2671 = vmatprep.subr.mxu0 0.0
  %2672 = vmatpush1.msra.mxu0 0.0
  %2673 = vmatprep.subr.mxu0 0.0
  %2674 = vmatpush1.msra.mxu0 0.0
  %2675 = vmatprep.subr.mxu0 0.0
  %2676 = vmatpush1.msra.mxu0 0.0
  %2677 = vmatprep.subr.mxu0 0.0
  %2678 = vmatpush1.msra.mxu0 0.0
  %2679 = vmatprep.subr.mxu0 0.0
  %2680 = vmatpush1.msra.mxu0 0.0
  %2681 = vmatprep.subr.mxu0 0.0
  %2682 = vmatpush1.msra.mxu0 0.0
  %2683 = vmatprep.subr.mxu0 0.0
  %2684 = vmatpush1.msra.mxu0 0.0
  %2685 = vmatprep.subr.mxu0 0.0
  %2686 = vmatpush1.msra.mxu0 0.0
  %2687 = vmatprep.subr.mxu0 0.0
  %2688 = vmatpush1.msra.mxu0 0.0
  %2689 = vmatprep.subr.mxu0 0.0
  %2690 = vmatpush1.msra.mxu0 0.0
  %2691 = vmatprep.subr.mxu0 0.0
  %2692 = vmatpush1.msra.mxu0 0.0
  %2693 = vmatprep.subr.mxu0 0.0
  %2694 = vmatpush1.msra.mxu0 0.0
  %2695 = vmatprep.subr.mxu0 0.0
  %2696 = vmatpush1.msra.mxu0 0.0
  %2697 = vmatprep.subr.mxu0 0.0
  %2698 = vmatpush1.msra.mxu0 0.0
  %2699 = vmatprep.subr.mxu0 0.0
  %2700 = vmatpush1.msra.mxu0 0.0
  %2701 = vmatprep.subr.mxu0 0.0
  %2702 = vmatpush1.msra.mxu0 0.0
  %2703 = vmatprep.mubr.f32.mxu0 0.0
  %2704 = vmatmul.mubr.f32.gmra.mrb[0].mxu0 %v2635
  %v2705 = vpop.f32.mrb[0].mxu0
  %v2706 = vadd.f32 0.0, %v2705
  %v2707 = vpop.f32.mrb[0].mxu0
  %v2708 = vadd.f32 0.0, %v2707
  %2709 = vmatprep.mubr.f32.mxu0 0.0
  %2710 = vmatmul.mubr.f32.gmra.mrb[0].mxu0 %v2637
  %v2711 = vpop.f32.mrb[0].mxu0
  %v2712 = vadd.f32 0.0, %v2711
  %v2713 = vpop.f32.mrb[0].mxu0
  %v2714 = vadd.f32 0.0, %v2713
  %2715 = vdwg.mxu0
  %v2716 = vmul.f32 %v2706, %v65
  %v2717 = vmul.f32 %v2708, %v66
  %v2718 = vmul.f32 %v2712, %v67
  %v2719 = vmul.f32 %v2714, %v68
  %v2721 = vsel %vm2391, %v2718, 0
  %v2724 = vsel %vm2391, %v2719, 0
  %2726 = vmatprep.subr.mxu0 %v2717
  %2727 = vmatpush1.msra.mxu0 %v2716
  %2728 = vmatprep.subr.mxu0 %v2724
  %2729 = vmatpush1.msra.mxu0 %v2721
  %2730 = vmatprep.subr.mxu0 0.0
  %2731 = vmatpush1.msra.mxu0 0.0
  %2732 = vmatprep.subr.mxu0 0.0
  %2733 = vmatpush1.msra.mxu0 0.0
  %2734 = vmatprep.subr.mxu0 0.0
  %2735 = vmatpush1.msra.mxu0 0.0
  %2736 = vmatprep.subr.mxu0 0.0
  %2737 = vmatpush1.msra.mxu0 0.0
  %2738 = vmatprep.subr.mxu0 0.0
  %2739 = vmatpush1.msra.mxu0 0.0
  %2740 = vmatprep.subr.mxu0 0.0
  %2741 = vmatpush1.msra.mxu0 0.0
  %2742 = vmatprep.subr.mxu0 0.0
  %2743 = vmatpush1.msra.mxu0 0.0
  %2744 = vmatprep.subr.mxu0 0.0
  %2745 = vmatpush1.msra.mxu0 0.0
  %2746 = vmatprep.subr.mxu0 0.0
  %2747 = vmatpush1.msra.mxu0 0.0
  %2748 = vmatprep.subr.mxu0 0.0
  %2749 = vmatpush1.msra.mxu0 0.0
  %2750 = vmatprep.subr.mxu0 0.0
  %2751 = vmatpush1.msra.mxu0 0.0
  %2752 = vmatprep.subr.mxu0 0.0
  %2753 = vmatpush1.msra.mxu0 0.0
  %2754 = vmatprep.subr.mxu0 0.0
  %2755 = vmatpush1.msra.mxu0 0.0
  %2756 = vmatprep.subr.mxu0 0.0
  %2757 = vmatpush1.msra.mxu0 0.0
  %2758 = vmatprep.subr.mxu0 0.0
  %2759 = vmatpush1.msra.mxu0 0.0
  %2760 = vmatprep.subr.mxu0 0.0
  %2761 = vmatpush1.msra.mxu0 0.0
  %2762 = vmatprep.subr.mxu0 0.0
  %2763 = vmatpush1.msra.mxu0 0.0
  %2764 = vmatprep.subr.mxu0 0.0
  %2765 = vmatpush1.msra.mxu0 0.0
  %2766 = vmatprep.subr.mxu0 0.0
  %2767 = vmatpush1.msra.mxu0 0.0
  %2768 = vmatprep.subr.mxu0 0.0
  %2769 = vmatpush1.msra.mxu0 0.0
  %2770 = vmatprep.subr.mxu0 0.0
  %2771 = vmatpush1.msra.mxu0 0.0
  %2772 = vmatprep.subr.mxu0 0.0
  %2773 = vmatpush1.msra.mxu0 0.0
  %2774 = vmatprep.subr.mxu0 0.0
  %2775 = vmatpush1.msra.mxu0 0.0
  %2776 = vmatprep.subr.mxu0 0.0
  %2777 = vmatpush1.msra.mxu0 0.0
  %2778 = vmatprep.subr.mxu0 0.0
  %2779 = vmatpush1.msra.mxu0 0.0
  %2780 = vmatprep.subr.mxu0 0.0
  %2781 = vmatpush1.msra.mxu0 0.0
  %2782 = vmatprep.subr.mxu0 0.0
  %2783 = vmatpush1.msra.mxu0 0.0
  %2784 = vmatprep.subr.mxu0 0.0
  %2785 = vmatpush1.msra.mxu0 0.0
  %2786 = vmatprep.subr.mxu0 0.0
  %2787 = vmatpush1.msra.mxu0 0.0
  %2788 = vmatprep.subr.mxu0 0.0
  %2789 = vmatpush1.msra.mxu0 0.0
  %2790 = vmatprep.mubr.f32.mxu0 0.0
  %2791 = vmatmul.mubr.f32.gmra.mrb[0].mxu0 %v2389
  %v2792 = vpop.f32.mrb[0].mxu0
  %v2793 = vadd.f32 0.0, %v2792
  %v2794 = vpop.f32.mrb[0].mxu0
  %v2795 = vadd.f32 0.0, %v2794
  %2796 = vdwg.mxu0
  %v2798 = vsel %vm114, %v2795, 0
  %2800 = vmatprep.subr.mxu0 0.0
  %2801 = vmatpush1.msra.mxu0 %v69
  %2802 = vmatprep.subr.mxu0 0.0
  %2803 = vmatpush1.msra.mxu0 %v70
  %2804 = vmatprep.subr.mxu0 0.0
  %2805 = vmatpush1.msra.mxu0 %v71
  %2806 = vmatprep.subr.mxu0 0.0
  %2807 = vmatpush1.msra.mxu0 %v72
  %2808 = vmatprep.subr.mxu0 0.0
  %2809 = vmatpush1.msra.mxu0 %v73
  %2810 = vmatprep.subr.mxu0 0.0
  %2811 = vmatpush1.msra.mxu0 %v74
  %2812 = vmatprep.subr.mxu0 0.0
  %2813 = vmatpush1.msra.mxu0 %v75
  %2814 = vmatprep.subr.mxu0 0.0
  %2815 = vmatpush1.msra.mxu0 %v76
  %2816 = vmatprep.subr.mxu0 0.0
  %2817 = vmatpush1.msra.mxu0 %v77
  %2818 = vmatprep.subr.mxu0 0.0
  %2819 = vmatpush1.msra.mxu0 %v78
  %2820 = vmatprep.subr.mxu0 0.0
  %2821 = vmatpush1.msra.mxu0 %v79
  %2822 = vmatprep.subr.mxu0 0.0
  %2823 = vmatpush1.msra.mxu0 %v80
  %2824 = vmatprep.subr.mxu0 0.0
  %2825 = vmatpush1.msra.mxu0 %v81
  %2826 = vmatprep.subr.mxu0 0.0
  %2827 = vmatpush1.msra.mxu0 %v82
  %2828 = vmatprep.subr.mxu0 0.0
  %2829 = vmatpush1.msra.mxu0 %v83
  %2830 = vmatprep.subr.mxu0 0.0
  %2831 = vmatpush1.msra.mxu0 %v84
  %2832 = vmatprep.subr.mxu0 0.0
  %2833 = vmatpush1.msra.mxu0 %v85
  %2834 = vmatprep.subr.mxu0 0.0
  %2835 = vmatpush1.msra.mxu0 %v86
  %2836 = vmatprep.subr.mxu0 0.0
  %2837 = vmatpush1.msra.mxu0 %v87
  %2838 = vmatprep.subr.mxu0 0.0
  %2839 = vmatpush1.msra.mxu0 %v88
  %2840 = vmatprep.subr.mxu0 0.0
  %2841 = vmatpush1.msra.mxu0 0.0
  %2842 = vmatprep.subr.mxu0 0.0
  %2843 = vmatpush1.msra.mxu0 0.0
  %2844 = vmatprep.subr.mxu0 0.0
  %2845 = vmatpush1.msra.mxu0 0.0
  %2846 = vmatprep.subr.mxu0 0.0
  %2847 = vmatpush1.msra.mxu0 0.0
  %2848 = vmatprep.subr.mxu0 0.0
  %2849 = vmatpush1.msra.mxu0 0.0
  %2850 = vmatprep.subr.mxu0 0.0
  %2851 = vmatpush1.msra.mxu0 0.0
  %2852 = vmatprep.subr.mxu0 0.0
  %2853 = vmatpush1.msra.mxu0 0.0
  %2854 = vmatprep.subr.mxu0 0.0
  %2855 = vmatpush1.msra.mxu0 0.0
  %2856 = vmatprep.subr.mxu0 0.0
  %2857 = vmatpush1.msra.mxu0 0.0
  %2858 = vmatprep.subr.mxu0 0.0
  %2859 = vmatpush1.msra.mxu0 0.0
  %2860 = vmatprep.subr.mxu0 0.0
  %2861 = vmatpush1.msra.mxu0 0.0
  %2862 = vmatprep.subr.mxu0 0.0
  %2863 = vmatpush1.msra.mxu0 0.0
  %2864 = vmatprep.mubr.f32.mxu0 %v2798
  %2865 = vmatmul.mubr.f32.gmra.mrb[0].mxu0 %v2793
  %v2866 = vpop.f32.mrb[0].mxu0
  %v2867 = vadd.f32 %v61, %v2866
  %v2868 = vpop.f32.mrb[0].mxu0
  %2869 = vdwg.mxu0
  %v2870 = vmax.f32 %v2867, 0.0
  %v2872 = vsel %vm1733, %v2870, 0
  %2874 = vmatprep.subr.mxu0 0.0
  %2875 = vmatpush1.msra.mxu0 %v56
  %2876 = vmatprep.subr.mxu0 0.0
  %2877 = vmatpush1.msra.mxu0 %v57
  %2878 = vmatprep.subr.mxu0 0.0
  %2879 = vmatpush1.msra.mxu0 0.0
  %2880 = vmatprep.subr.mxu0 0.0
  %2881 = vmatpush1.msra.mxu0 0.0
  %2882 = vmatprep.subr.mxu0 0.0
  %2883 = vmatpush1.msra.mxu0 0.0
  %2884 = vmatprep.subr.mxu0 0.0
  %2885 = vmatpush1.msra.mxu0 0.0
  %2886 = vmatprep.subr.mxu0 0.0
  %2887 = vmatpush1.msra.mxu0 0.0
  %2888 = vmatprep.subr.mxu0 0.0
  %2889 = vmatpush1.msra.mxu0 0.0
  %2890 = vmatprep.subr.mxu0 0.0
  %2891 = vmatpush1.msra.mxu0 0.0
  %2892 = vmatprep.subr.mxu0 0.0
  %2893 = vmatpush1.msra.mxu0 0.0
  %2894 = vmatprep.subr.mxu0 0.0
  %2895 = vmatpush1.msra.mxu0 0.0
  %2896 = vmatprep.subr.mxu0 0.0
  %2897 = vmatpush1.msra.mxu0 0.0
  %2898 = vmatprep.subr.mxu0 0.0
  %2899 = vmatpush1.msra.mxu0 0.0
  %2900 = vmatprep.subr.mxu0 0.0
  %2901 = vmatpush1.msra.mxu0 0.0
  %2902 = vmatprep.subr.mxu0 0.0
  %2903 = vmatpush1.msra.mxu0 0.0
  %2904 = vmatprep.subr.mxu0 0.0
  %2905 = vmatpush1.msra.mxu0 0.0
  %2906 = vmatprep.subr.mxu0 0.0
  %2907 = vmatpush1.msra.mxu0 0.0
  %2908 = vmatprep.subr.mxu0 0.0
  %2909 = vmatpush1.msra.mxu0 0.0
  %2910 = vmatprep.subr.mxu0 0.0
  %2911 = vmatpush1.msra.mxu0 0.0
  %2912 = vmatprep.subr.mxu0 0.0
  %2913 = vmatpush1.msra.mxu0 0.0
  %2914 = vmatprep.subr.mxu0 0.0
  %2915 = vmatpush1.msra.mxu0 0.0
  %2916 = vmatprep.subr.mxu0 0.0
  %2917 = vmatpush1.msra.mxu0 0.0
  %2918 = vmatprep.subr.mxu0 0.0
  %2919 = vmatpush1.msra.mxu0 0.0
  %2920 = vmatprep.subr.mxu0 0.0
  %2921 = vmatpush1.msra.mxu0 0.0
  %2922 = vmatprep.subr.mxu0 0.0
  %2923 = vmatpush1.msra.mxu0 0.0
  %2924 = vmatprep.subr.mxu0 0.0
  %2925 = vmatpush1.msra.mxu0 0.0
  %2926 = vmatprep.subr.mxu0 0.0
  %2927 = vmatpush1.msra.mxu0 0.0
  %2928 = vmatprep.subr.mxu0 0.0
  %2929 = vmatpush1.msra.mxu0 0.0
  %2930 = vmatprep.subr.mxu0 0.0
  %2931 = vmatpush1.msra.mxu0 0.0
  %2932 = vmatprep.subr.mxu0 0.0
  %2933 = vmatpush1.msra.mxu0 0.0
  %2934 = vmatprep.subr.mxu0 0.0
  %2935 = vmatpush1.msra.mxu0 0.0
  %2936 = vmatprep.subr.mxu0 0.0
  %2937 = vmatpush1.msra.mxu0 0.0
  %2938 = vmatprep.mubr.f32.mxu0 0.0
  %2939 = vmatmul.mubr.f32.gmra.mrb[0].mxu0 %v2872
  %v2940 = vpop.f32.mrb[0].mxu0
  %v2941 = vadd.f32 %v62, %v2940
  %v2942 = vpop.f32.mrb[0].mxu0
  %2943 = vdwg.mxu0
  %v2944 = vsel %vm2616, %v2941, -inf
  %2945 = vmax.xlane.f32.xlu0 %v2944
  %v2946 = vpop.xlane.xlu0 %2945
  %v2947 = vsub.f32 %v2941, %v2946
  %v2948 = vmul.f32 %v2947, 1.442695
  %v2949 = vpow.pop %v2948
  %v2950 = vsel %vm2616, %v2949, 0.0
  %2951 = vadd.xlane.f32.xlu0 %v2950
  %v2952 = vpop.xlane.xlu0 %2951
  %v2953 = vrcp.pop %v2952
  %v2954 = vmul.f32 %v2949, %v2953
  %v2955 = vsel %vm2628, %v2954, 0.0
  %2956 = vst [vmem:[%s5 + $0x22] sm:$0x1] %v2955
  %2957 = vst [vmem:[%s5 + $0x23] sm:$0x1f] 0.0
  // Predicated region
  $region22: #{crgnn_forward.1} parent=0 // pred_check
    _
  $region23: #{crgnn_forward.1} parent=0 // pred_check_branch
    %2959 = sbr.rel (0) target = $region25
  $region24: #{crgnn_forward.1} parent=0 // pred_region
    _
  $region25: #{crgnn_forward.1} parent=0 // pred_fallthru
    _
  // Predicated region
  $region26: #{crgnn_forward.1} parent=0 // pred_check
    _
  $region27: #{crgnn_forward.1} parent=0 // pred_check_branch
    %2961 = sbr.rel (0) target = $region29
  $region28: #{crgnn_forward.1} parent=0 // pred_region
    _
  $region29: #{crgnn_forward.1} parent=0 // pred_fallthru
    _

</llo_original>
